<compile_context>
chip_gen: v7x
topology: tpu7x:2x2x1
jax: 0.10.0
libtpu: 0.0.40
codegen_flags: <defaults>
</compile_context>

<pallas_src>
import functools

import jax
import jax.numpy as jnp
from jax import lax
from jax.experimental import pallas as pl
from jax.experimental.pallas import tpu as pltpu


# ----------------------------------------------------------------------------
# Fused kernel: all LSTM layers + FC head, one time chunk per grid step
# ----------------------------------------------------------------------------
def _stock_lstm_kernel(*refs, num_layers, tc, batch, hidden):
    B, H = batch, hidden
    H4 = 4 * H
    L = num_layers
    n_w = 1 + 3 * (L - 1)

    gx0_ref = refs[0]                      # (tc*B, 4H)  layer-0 gates (precomputed)
    w_refs = refs[1:1 + n_w]               # per-layer fused weights / biases
    fc_w_ref = refs[1 + n_w]               # (H, O)  pre-transposed
    fc_b_ref = refs[2 + n_w]               # (1, O)
    out_ref = refs[3 + n_w]                # (B, O)
    gx, hseq, h_st, c_st = refs[4 + n_w:]  # VMEM scratch

    # h0 = c0 = 0 at the first time chunk (matches torch.zeros in forward()).
    @pl.when(pl.program_id(0) == 0)
    def _init():
        h_st[...] = jnp.zeros_like(h_st)
        c_st[...] = jnp.zeros_like(c_st)

    # Gate activation on the full 4H width: tanh on the 'g' lanes [2H, 3H),
    # sigmoid elsewhere -> one lane-dense select instead of 4 narrow activations.
    lane = lax.broadcasted_iota(jnp.int32, (B, H4), 1)
    is_g = jnp.logical_and(lane >= 2 * H, lane < 3 * H)

    big_h = H >= 128
    unroll = 4 if big_h else (True if tc <= 32 else 8)

    for layer in range(L):
        if layer == 0:
            gx_src = gx0_ref               # streamed, already bias-folded
            w_hh_ref = w_refs[0]
        else:
            w_ih_ref, w_hh_ref, b_ref = w_refs[1 + 3 * (layer - 1):1 + 3 * layer]
            # Hoisted input projection: one fused (tc*B, H) @ (H, 4H) matmul per
            # chunk with the bias folded in.  hseq (previous layer's output) is
            # fully consumed here BEFORE this layer's loop overwrites it.
            gx[...] = jnp.dot(hseq[...], w_ih_ref[...],
                              preferred_element_type=jnp.float32) + b_ref[...]
            gx_src = gx

        # For small H hoist the recurrent weight into vregs once per chunk; for
        # large H keep it as a ref read (avoids vreg spills under unrolling).
        w_hh_val = None if big_h else w_hh_ref[...]
        write_seq = layer < L - 1

        def step(t, carry, gx_src=gx_src, w_hh_ref=w_hh_ref,
                 w_hh_val=w_hh_val, write_seq=write_seq):
            h, c = carry                   # carried in registers, not VMEM
            row = pl.multiple_of(t * B, B)
            w = w_hh_val if w_hh_val is not None else w_hh_ref[...]
            # ONE fused recurrent matmul per step.
            pre = gx_src[pl.ds(row, B), :] + jnp.dot(
                h, w, preferred_element_type=jnp.float32)
            act = jnp.where(is_g, jnp.tanh(pre), jax.nn.sigmoid(pre))
            gi = act[:, 0 * H:1 * H]
            gf = act[:, 1 * H:2 * H]
            gg = act[:, 2 * H:3 * H]
            go = act[:, 3 * H:4 * H]
            c_new = gf * c + gi * gg
            h_new = go * jnp.tanh(c_new)
            if write_seq:                  # next layer's input, stays in VMEM
                hseq[pl.ds(row, B), :] = h_new
            return (h_new, c_new)

        h_fin, c_fin = lax.fori_loop(0, tc, step,
                                     (h_st[layer], c_st[layer]),
                                     unroll=unroll)
        # Write the carried state back only once per chunk.
        h_st[layer] = h_fin
        c_st[layer] = c_fin

    # FC head fused into the same kernel; only the last grid step writes it.
    @pl.when(pl.program_id(0) == pl.num_programs(0) - 1)
    def _finish():
        h_last = h_st[L - 1]               # == out[:, -1, :]
        out_ref[...] = (jnp.dot(h_last, fc_w_ref[...],
                                preferred_element_type=jnp.float32)
                        + fc_b_ref[...]).astype(out_ref.dtype)


# ----------------------------------------------------------------------------
# Wrapper
# ----------------------------------------------------------------------------
def stock_lstm_forward(x_btd, params, *, time_chunk=None):
    """x_btd: (B, T, input_size), batch_first=True like the PyTorch module."""
    x = jnp.asarray(x_btd, jnp.float32)
    B, T, D = x.shape
    layers = params["lstm_layers"]
    L = len(layers)
    H = layers[0]["w_hh_t"].shape[0]
    H4 = 4 * H
    O = params["fc_w_t"].shape[1]

    # Pad batch to the sublane width (8): padded rows are independent garbage
    # lanes on the MXU and are sliced off the output.
    Bp = max(8, ((B + 7) // 8) * 8)

    # Layer-0 input projection in plain JAX (input_size is tiny / lane-sparse);
    # stream the lane-dense (tc*Bp, 4H) gx0 chunk instead of the raw x chunk.
    gx0 = jnp.einsum("btd,dg->tbg", x, layers[0]["w_ih_t"]) + layers[0]["b"]
    if Bp != B:
        gx0 = jnp.pad(gx0, ((0, 0), (0, Bp - B), (0, 0)))
    gx0_2d = gx0.reshape(T * Bp, H4)       # rows are (t-major, b-minor)

    inputs = [gx0_2d, layers[0]["w_hh_t"]]
    for lyr in layers[1:]:
        inputs += [lyr["w_ih_t"], lyr["w_hh_t"], lyr["b"]]
    inputs += [params["fc_w_t"], params["fc_b"]]
    weight_bytes = sum(int(a.size) for a in inputs[1:]) * 4

    # Generation-aware VMEM budget (v5e/v6e 128 MiB, v7x 64 MiB).
    try:
        vmem_cap = int(getattr(pltpu.get_tpu_info(), "vmem_capacity_bytes",
                               128 << 20))
    except Exception:
        vmem_cap = 128 << 20
    budget = int(0.85 * vmem_cap)

    def _vmem_bytes(tc):
        by = 4
        chunk = 2 * tc * Bp * H4 * by                      # double-buffered gx0
        scratch = (tc * Bp * H4 + tc * Bp * H + 2 * L * Bp * H) * by
        return weight_bytes + chunk + scratch + 2 * Bp * O * by

    # Default: tc = T (single grid step); chunk time only under VMEM pressure.
    if time_chunk is None:
        tc = T
        if _vmem_bytes(tc) > budget:
            tc = 1
            for cand in range(T, 0, -1):
                if T % cand == 0 and _vmem_bytes(cand) <= budget:
                    tc = cand
                    break
    else:
        tc = max(1, min(int(time_chunk), T))
        while T % tc:
            tc -= 1
    n_chunks = T // tc
    vmem_limit = int(min(budget, max(16 << 20, _vmem_bytes(tc) + (2 << 20))))

    def _const_spec(arr, pmode):
        nd = arr.ndim
        if pmode is None:
            return pl.BlockSpec(arr.shape, lambda i, _nd=nd: (0,) * _nd)
        return pl.BlockSpec(arr.shape, lambda i, _nd=nd: (0,) * _nd,
                            pipeline_mode=pmode)

    def _build(pmode):
        in_specs = [pl.BlockSpec((tc * Bp, H4), lambda i: (i, 0))]
        in_specs += [_const_spec(a, pmode) for a in inputs[1:]]
        scratch = [
            pltpu.VMEM((tc * Bp, H4), jnp.float32),  # fused gate projection gx
            pltpu.VMEM((tc * Bp, H), jnp.float32),   # inter-layer hidden sequence
            pltpu.VMEM((L, Bp, H), jnp.float32),     # h state per layer (carried)
            pltpu.VMEM((L, Bp, H), jnp.float32),     # c state per layer (carried)
        ]
        kernel = functools.partial(_stock_lstm_kernel, num_layers=L, tc=tc,
                                   batch=Bp, hidden=H)
        return pl.pallas_call(
            kernel,
            out_shape=jax.ShapeDtypeStruct((Bp, O), jnp.float32),
            grid_spec=pltpu.PrefetchScalarGridSpec(
                num_scalar_prefetch=0,
                grid=(n_chunks,),
                in_specs=in_specs,
                out_specs=pl.BlockSpec((Bp, O), lambda i: (0, 0)),
                scratch_shapes=scratch,
            ),
            compiler_params=pltpu.CompilerParams(
                dimension_semantics=("arbitrary",),  # recurrence across chunks
                vmem_limit_bytes=vmem_limit,
            ),
        )

    try:
        # Single-buffer the grid-invariant weights (halves their VMEM footprint).
        out = _build(pl.Buffered(1))(*inputs)
    except Exception:
        out = _build(None)(*inputs)
    return out[:B]


# ----------------------------------------------------------------------------
# Parameters (PyTorch layout) + kernel-layout preparation
# ----------------------------------------------------------------------------
def init_params(key, input_size, hidden_size, num_layers, output_size):
    """PyTorch-layout params, nn.LSTM/Linear-style uniform(-1/sqrt(H), 1/sqrt(H))."""
    bound = 1.0 / jnp.sqrt(jnp.float32(hidden_size))
    layers = []
    for layer_idx in range(num_layers):
        d_in = input_size if layer_idx == 0 else hidden_size
        key, k1, k2, k3, k4 = jax.random.split(key, 5)
        layers.append(dict(
            w_ih=jax.random.uniform(k1, (4 * hidden_size, d_in), jnp.float32,
                                    -bound, bound),
            w_hh=jax.random.uniform(k2, (4 * hidden_size, hidden_size),
                                    jnp.float32, -bound, bound),
            b_ih=jax.random.uniform(k3, (4 * hidden_size,), jnp.float32,
                                    -bound, bound),
            b_hh=jax.random.uniform(k4, (4 * hidden_size,), jnp.float32,
                                    -bound, bound)))
    key, kf1, kf2 = jax.random.split(key, 3)
    fc_w = jax.random.uniform(kf1, (output_size, hidden_size), jnp.float32,
                              -bound, bound)
    fc_b = jax.random.uniform(kf2, (output_size,), jnp.float32, -bound, bound)
    return dict(lstm_layers=layers, fc_w=fc_w, fc_b=fc_b)


def prepare_kernel_params(raw):
    """Pre-transpose (keep gates fused): plain-JAX layout plumbing done once."""
    layers = []
    for lyr in raw["lstm_layers"]:
        layers.append(dict(
            w_ih_t=lyr["w_ih"].T,                               # (D_in, 4H)
            w_hh_t=lyr["w_hh"].T,                               # (H, 4H)
            b=(lyr["b_ih"] + lyr["b_hh"]).reshape(1, -1)))      # (1, 4H)
    return dict(lstm_layers=layers,
                fc_w_t=raw["fc_w"].T,                           # (H, O)
                fc_b=raw["fc_b"].reshape(1, -1))                # (1, O)


# ----------------------------------------------------------------------------
# Pure-JAX reference (PyTorch-layout params) for correctness check
# ----------------------------------------------------------------------------
def _reference_forward(x_btd, raw):
    h_seq = jnp.transpose(jnp.asarray(x_btd, jnp.float32), (1, 0, 2))
    T, B, _ = h_seq.shape
    for lyr in raw["lstm_layers"]:
        H = lyr["w_hh"].shape[1]
        bias = lyr["b_ih"] + lyr["b_hh"]
        h = jnp.zeros((B, H), jnp.float32)
        c = jnp.zeros((B, H), jnp.float32)
        outs = []
        for t in range(T):
            gates = h_seq[t] @ lyr["w_ih"].T + h @ lyr["w_hh"].T + bias
            i_g = jax.nn.sigmoid(gates[:, 0 * H:1 * H])
            f_g = jax.nn.sigmoid(gates[:, 1 * H:2 * H])
            g_g = jnp.tanh(gates[:, 2 * H:3 * H])
            o_g = jax.nn.sigmoid(gates[:, 3 * H:4 * H])
            c = f_g * c + i_g * g_g
            h = o_g * jnp.tanh(c)
            outs.append(h)
        h_seq = jnp.stack(outs, axis=0)
    return h_seq[-1] @ raw["fc_w"].T + raw["fc_b"]


if __name__ == "__main__":
    # StockLSTM(input_size=4, hidden_size=32, num_layers=2, output_size=1,
    #           drop_out=0.0, bidirectional=False); batch=2, seq=8.
    B, T, D, H, L, O = 2, 8, 4, 32, 2, 1

    key = jax.random.PRNGKey(0)
    key, kx = jax.random.split(key)
    x = jax.random.normal(kx, (B, T, D), dtype=jnp.float32)

    raw = init_params(key, input_size=D, hidden_size=H,
                      num_layers=L, output_size=O)
    kparams = prepare_kernel_params(raw)
    ref = _reference_forward(x, raw)

    # Default path: single grid step (tc = T).
    out1 = jax.block_until_ready(stock_lstm_forward(x, kparams))
    # Chunked path: exercises the cross-chunk (h, c) carry.
    out2 = jax.block_until_ready(stock_lstm_forward(x, kparams, time_chunk=4))

    assert out1.shape == (B, O), out1.shape
    assert jnp.allclose(out1, ref, atol=1e-4, rtol=1e-4), (out1, ref)
    assert jnp.allclose(out2, ref, atol=1e-4, rtol=1e-4), (out2, ref)

    print("KERNEL_OK")
</pallas_src>

<mosaic_0001>
module attributes {stable_mosaic.version = 11 : i64} {
  func.func @_stock_lstm_kernel(%arg0: i32, %arg1: memref<64x128xf32, #tpu.memory_space<vmem>>, %arg2: memref<32x128xf32, #tpu.memory_space<vmem>>, %arg3: memref<32x128xf32, #tpu.memory_space<vmem>>, %arg4: memref<32x128xf32, #tpu.memory_space<vmem>>, %arg5: memref<1x128xf32, #tpu.memory_space<vmem>>, %arg6: memref<32x1xf32, #tpu.memory_space<vmem>>, %arg7: memref<1x1xf32, #tpu.memory_space<vmem>>, %arg8: memref<8x1xf32, #tpu.memory_space<vmem>>, %arg9: memref<64x128xf32, #tpu.memory_space<vmem>>, %arg10: memref<64x32xf32, #tpu.memory_space<vmem>>, %arg11: memref<2x8x32xf32, #tpu.memory_space<vmem>>, %arg12: memref<2x8x32xf32, #tpu.memory_space<vmem>>) attributes {dimension_semantics = [#tpu.dimension_semantics<arbitrary>], iteration_bounds = array<i64: 1>, scalar_prefetch = 0 : i64, scratch_operands = 4 : i64, tpu.core_type = #tpu.core_type<tc>, window_params = [{transform_indices = @transform_0, window_bounds = array<i64: 64, 128>}, {pipeline_mode = #tpu.pipeline_mode<synchronous>, transform_indices = @transform_1, window_bounds = array<i64: 32, 128>}, {pipeline_mode = #tpu.pipeline_mode<synchronous>, transform_indices = @transform_2, window_bounds = array<i64: 32, 128>}, {pipeline_mode = #tpu.pipeline_mode<synchronous>, transform_indices = @transform_3, window_bounds = array<i64: 32, 128>}, {pipeline_mode = #tpu.pipeline_mode<synchronous>, transform_indices = @transform_4, window_bounds = array<i64: 1, 128>}, {pipeline_mode = #tpu.pipeline_mode<synchronous>, transform_indices = @transform_5, window_bounds = array<i64: 32, 1>}, {pipeline_mode = #tpu.pipeline_mode<synchronous>, transform_indices = @transform_6, window_bounds = array<i64: 1, 1>}, {pipeline_mode = #tpu.pipeline_mode<synchronous>, transform_indices = @transform_7, window_bounds = array<i64: 8, 1>}]} {
    %c0_i32 = arith.constant 0 : i32
    %0 = arith.cmpi eq, %arg0, %c0_i32 : i32
    %1 = arith.extui %0 : i1 to i32
    %c0_i32_0 = arith.constant 0 : i32
    %2 = arith.cmpi ne, %1, %c0_i32_0 : i32
    scf.if %2 {
      %cst_119 = arith.constant 0.000000e+00 : f32
      %409 = vector.broadcast %cst_119 : f32 to vector<2x8x32xf32>
      %c0_120 = arith.constant 0 : index
      %c0_121 = arith.constant 0 : index
      %c0_122 = arith.constant 0 : index
      %410 = vector.load %arg11[%c0_120, %c0_121, %c0_122] : memref<2x8x32xf32, #tpu.memory_space<vmem>>, vector<2x8x32xf32>
      tpu.vector_store %arg11[%c0_120, %c0_121, %c0_122], %409 {strides = array<i32>} : memref<2x8x32xf32, #tpu.memory_space<vmem>>, vector<2x8x32xf32>,
      %cst_123 = arith.constant 0.000000e+00 : f32
      %411 = vector.broadcast %cst_123 : f32 to vector<2x8x32xf32>
      %c0_124 = arith.constant 0 : index
      %c0_125 = arith.constant 0 : index
      %c0_126 = arith.constant 0 : index
      %412 = vector.load %arg12[%c0_124, %c0_125, %c0_126] : memref<2x8x32xf32, #tpu.memory_space<vmem>>, vector<2x8x32xf32>
      tpu.vector_store %arg12[%c0_124, %c0_125, %c0_126], %411 {strides = array<i32>} : memref<2x8x32xf32, #tpu.memory_space<vmem>>, vector<2x8x32xf32>,
    } else {
    }
    %3 = tpu.iota {dimensions = array<i32: 1>} : vector<8x128xi32>
    %c64_i32 = arith.constant 64 : i32
    %4 = vector.broadcast %c64_i32 : i32 to vector<8x128xi32>
    %5 = arith.cmpi sge, %3, %4 : vector<8x128xi32>
    %c96_i32 = arith.constant 96 : i32
    %6 = vector.broadcast %c96_i32 : i32 to vector<8x128xi32>
    %7 = arith.cmpi slt, %3, %6 : vector<8x128xi32>
    %8 = arith.andi %5, %7 : vector<8x128xi1>
    %c0 = arith.constant 0 : index
    %c0_1 = arith.constant 0 : index
    %9 = vector.load %arg2[%c0, %c0_1] : memref<32x128xf32, #tpu.memory_space<vmem>>, vector<32x128xf32>
    %c0_2 = arith.constant 0 : index
    %c0_3 = arith.constant 0 : index
    %c0_4 = arith.constant 0 : index
    %10 = vector.load %arg11[%c0_2, %c0_3, %c0_4] : memref<2x8x32xf32, #tpu.memory_space<vmem>>, vector<1x8x32xf32>
    %11 = vector.shape_cast %10 : vector<1x8x32xf32> to vector<8x32xf32>
    %c0_5 = arith.constant 0 : index
    %c0_6 = arith.constant 0 : index
    %c0_7 = arith.constant 0 : index
    %12 = vector.load %arg12[%c0_5, %c0_6, %c0_7] : memref<2x8x32xf32, #tpu.memory_space<vmem>>, vector<1x8x32xf32>
    %13 = vector.shape_cast %12 : vector<1x8x32xf32> to vector<8x32xf32>
    %c0_i32_8 = arith.constant 0 : i32
    %c8_i32 = arith.constant 8 : i32
    %14 = arith.muli %c0_i32_8, %c8_i32 : i32
    %15 = tpu.assume_multiple %14, 8 : i32
    %16 = arith.index_cast %15 : i32 to index
    %c0_9 = arith.constant 0 : index
    %17 = vector.load %arg1[%16, %c0_9] : memref<64x128xf32, #tpu.memory_space<vmem>>, vector<8x128xf32>
    %cst = arith.constant dense<0.000000e+00> : vector<8x128xf32>
    %18 = tpu.matmul %11, %9, %cst {dimension_numbers = #tpu.dot_dimension_numbers<[1], [0], [0], [1], [0, 0, 1, 1], [], []>} : vector<8x32xf32>, vector<32x128xf32>, vector<8x128xf32> -> vector<8x128xf32>
    %19 = arith.addf %17, %18 : vector<8x128xf32>
    %20 = math.tanh %19 : vector<8x128xf32>
    %21 = arith.negf %19 : vector<8x128xf32>
    %22 = math.exp %21 : vector<8x128xf32>
    %cst_10 = arith.constant 1.000000e+00 : f32
    %23 = vector.broadcast %cst_10 : f32 to vector<8x128xf32>
    %24 = arith.addf %23, %22 : vector<8x128xf32>
    %25 = arith.divf %23, %24 : vector<8x128xf32>
    %26 = arith.select %8, %20, %25 : vector<8x128xi1>, vector<8x128xf32>
    %27 = vector.extract_strided_slice %26 {offsets = [0, 0], sizes = [8, 32], strides = [1, 1]} : vector<8x128xf32> to vector<8x32xf32>
    %28 = vector.extract_strided_slice %26 {offsets = [0, 32], sizes = [8, 32], strides = [1, 1]} : vector<8x128xf32> to vector<8x32xf32>
    %29 = vector.extract_strided_slice %26 {offsets = [0, 64], sizes = [8, 32], strides = [1, 1]} : vector<8x128xf32> to vector<8x32xf32>
    %30 = vector.extract_strided_slice %26 {offsets = [0, 96], sizes = [8, 32], strides = [1, 1]} : vector<8x128xf32> to vector<8x32xf32>
    %31 = arith.mulf %28, %13 : vector<8x32xf32>
    %32 = arith.mulf %27, %29 : vector<8x32xf32>
    %33 = arith.addf %31, %32 : vector<8x32xf32>
    %34 = math.tanh %33 : vector<8x32xf32>
    %35 = arith.mulf %30, %34 : vector<8x32xf32>
    %36 = arith.index_cast %15 : i32 to index
    %c0_11 = arith.constant 0 : index
    %37 = vector.load %arg10[%36, %c0_11] : memref<64x32xf32, #tpu.memory_space<vmem>>, vector<8x32xf32>
    tpu.vector_store %arg10[%36, %c0_11], %35 {strides = array<i32>} : memref<64x32xf32, #tpu.memory_space<vmem>>, vector<8x32xf32>,
    %c1_i32 = arith.constant 1 : i32
    %c8_i32_12 = arith.constant 8 : i32
    %38 = arith.muli %c1_i32, %c8_i32_12 : i32
    %39 = tpu.assume_multiple %38, 8 : i32
    %40 = arith.index_cast %39 : i32 to index
    %c0_13 = arith.constant 0 : index
    %41 = vector.load %arg1[%40, %c0_13] : memref<64x128xf32, #tpu.memory_space<vmem>>, vector<8x128xf32>
    %cst_14 = arith.constant dense<0.000000e+00> : vector<8x128xf32>
    %42 = tpu.matmul %35, %9, %cst_14 {dimension_numbers = #tpu.dot_dimension_numbers<[1], [0], [0], [1], [0, 0, 1, 1], [], []>} : vector<8x32xf32>, vector<32x128xf32>, vector<8x128xf32> -> vector<8x128xf32>
    %43 = arith.addf %41, %42 : vector<8x128xf32>
    %44 = math.tanh %43 : vector<8x128xf32>
    %45 = arith.negf %43 : vector<8x128xf32>
    %46 = math.exp %45 : vector<8x128xf32>
    %cst_15 = arith.constant 1.000000e+00 : f32
    %47 = vector.broadcast %cst_15 : f32 to vector<8x128xf32>
    %48 = arith.addf %47, %46 : vector<8x128xf32>
    %49 = arith.divf %47, %48 : vector<8x128xf32>
    %50 = arith.select %8, %44, %49 : vector<8x128xi1>, vector<8x128xf32>
    %51 = vector.extract_strided_slice %50 {offsets = [0, 0], sizes = [8, 32], strides = [1, 1]} : vector<8x128xf32> to vector<8x32xf32>
    %52 = vector.extract_strided_slice %50 {offsets = [0, 32], sizes = [8, 32], strides = [1, 1]} : vector<8x128xf32> to vector<8x32xf32>
    %53 = vector.extract_strided_slice %50 {offsets = [0, 64], sizes = [8, 32], strides = [1, 1]} : vector<8x128xf32> to vector<8x32xf32>
    %54 = vector.extract_strided_slice %50 {offsets = [0, 96], sizes = [8, 32], strides = [1, 1]} : vector<8x128xf32> to vector<8x32xf32>
    %55 = arith.mulf %52, %33 : vector<8x32xf32>
    %56 = arith.mulf %51, %53 : vector<8x32xf32>
    %57 = arith.addf %55, %56 : vector<8x32xf32>
    %58 = math.tanh %57 : vector<8x32xf32>
    %59 = arith.mulf %54, %58 : vector<8x32xf32>
    %60 = arith.index_cast %39 : i32 to index
    %c0_16 = arith.constant 0 : index
    %61 = vector.load %arg10[%60, %c0_16] : memref<64x32xf32, #tpu.memory_space<vmem>>, vector<8x32xf32>
    tpu.vector_store %arg10[%60, %c0_16], %59 {strides = array<i32>} : memref<64x32xf32, #tpu.memory_space<vmem>>, vector<8x32xf32>,
    %c2_i32 = arith.constant 2 : i32
    %c8_i32_17 = arith.constant 8 : i32
    %62 = arith.muli %c2_i32, %c8_i32_17 : i32
    %63 = tpu.assume_multiple %62, 8 : i32
    %64 = arith.index_cast %63 : i32 to index
    %c0_18 = arith.constant 0 : index
    %65 = vector.load %arg1[%64, %c0_18] : memref<64x128xf32, #tpu.memory_space<vmem>>, vector<8x128xf32>
    %cst_19 = arith.constant dense<0.000000e+00> : vector<8x128xf32>
    %66 = tpu.matmul %59, %9, %cst_19 {dimension_numbers = #tpu.dot_dimension_numbers<[1], [0], [0], [1], [0, 0, 1, 1], [], []>} : vector<8x32xf32>, vector<32x128xf32>, vector<8x128xf32> -> vector<8x128xf32>
    %67 = arith.addf %65, %66 : vector<8x128xf32>
    %68 = math.tanh %67 : vector<8x128xf32>
    %69 = arith.negf %67 : vector<8x128xf32>
    %70 = math.exp %69 : vector<8x128xf32>
    %cst_20 = arith.constant 1.000000e+00 : f32
    %71 = vector.broadcast %cst_20 : f32 to vector<8x128xf32>
    %72 = arith.addf %71, %70 : vector<8x128xf32>
    %73 = arith.divf %71, %72 : vector<8x128xf32>
    %74 = arith.select %8, %68, %73 : vector<8x128xi1>, vector<8x128xf32>
    %75 = vector.extract_strided_slice %74 {offsets = [0, 0], sizes = [8, 32], strides = [1, 1]} : vector<8x128xf32> to vector<8x32xf32>
    %76 = vector.extract_strided_slice %74 {offsets = [0, 32], sizes = [8, 32], strides = [1, 1]} : vector<8x128xf32> to vector<8x32xf32>
    %77 = vector.extract_strided_slice %74 {offsets = [0, 64], sizes = [8, 32], strides = [1, 1]} : vector<8x128xf32> to vector<8x32xf32>
    %78 = vector.extract_strided_slice %74 {offsets = [0, 96], sizes = [8, 32], strides = [1, 1]} : vector<8x128xf32> to vector<8x32xf32>
    %79 = arith.mulf %76, %57 : vector<8x32xf32>
    %80 = arith.mulf %75, %77 : vector<8x32xf32>
    %81 = arith.addf %79, %80 : vector<8x32xf32>
    %82 = math.tanh %81 : vector<8x32xf32>
    %83 = arith.mulf %78, %82 : vector<8x32xf32>
    %84 = arith.index_cast %63 : i32 to index
    %c0_21 = arith.constant 0 : index
    %85 = vector.load %arg10[%84, %c0_21] : memref<64x32xf32, #tpu.memory_space<vmem>>, vector<8x32xf32>
    tpu.vector_store %arg10[%84, %c0_21], %83 {strides = array<i32>} : memref<64x32xf32, #tpu.memory_space<vmem>>, vector<8x32xf32>,
    %c3_i32 = arith.constant 3 : i32
    %c8_i32_22 = arith.constant 8 : i32
    %86 = arith.muli %c3_i32, %c8_i32_22 : i32
    %87 = tpu.assume_multiple %86, 8 : i32
    %88 = arith.index_cast %87 : i32 to index
    %c0_23 = arith.constant 0 : index
    %89 = vector.load %arg1[%88, %c0_23] : memref<64x128xf32, #tpu.memory_space<vmem>>, vector<8x128xf32>
    %cst_24 = arith.constant dense<0.000000e+00> : vector<8x128xf32>
    %90 = tpu.matmul %83, %9, %cst_24 {dimension_numbers = #tpu.dot_dimension_numbers<[1], [0], [0], [1], [0, 0, 1, 1], [], []>} : vector<8x32xf32>, vector<32x128xf32>, vector<8x128xf32> -> vector<8x128xf32>
    %91 = arith.addf %89, %90 : vector<8x128xf32>
    %92 = math.tanh %91 : vector<8x128xf32>
    %93 = arith.negf %91 : vector<8x128xf32>
    %94 = math.exp %93 : vector<8x128xf32>
    %cst_25 = arith.constant 1.000000e+00 : f32
    %95 = vector.broadcast %cst_25 : f32 to vector<8x128xf32>
    %96 = arith.addf %95, %94 : vector<8x128xf32>
    %97 = arith.divf %95, %96 : vector<8x128xf32>
    %98 = arith.select %8, %92, %97 : vector<8x128xi1>, vector<8x128xf32>
    %99 = vector.extract_strided_slice %98 {offsets = [0, 0], sizes = [8, 32], strides = [1, 1]} : vector<8x128xf32> to vector<8x32xf32>
    %100 = vector.extract_strided_slice %98 {offsets = [0, 32], sizes = [8, 32], strides = [1, 1]} : vector<8x128xf32> to vector<8x32xf32>
    %101 = vector.extract_strided_slice %98 {offsets = [0, 64], sizes = [8, 32], strides = [1, 1]} : vector<8x128xf32> to vector<8x32xf32>
    %102 = vector.extract_strided_slice %98 {offsets = [0, 96], sizes = [8, 32], strides = [1, 1]} : vector<8x128xf32> to vector<8x32xf32>
    %103 = arith.mulf %100, %81 : vector<8x32xf32>
    %104 = arith.mulf %99, %101 : vector<8x32xf32>
    %105 = arith.addf %103, %104 : vector<8x32xf32>
    %106 = math.tanh %105 : vector<8x32xf32>
    %107 = arith.mulf %102, %106 : vector<8x32xf32>
    %108 = arith.index_cast %87 : i32 to index
    %c0_26 = arith.constant 0 : index
    %109 = vector.load %arg10[%108, %c0_26] : memref<64x32xf32, #tpu.memory_space<vmem>>, vector<8x32xf32>
    tpu.vector_store %arg10[%108, %c0_26], %107 {strides = array<i32>} : memref<64x32xf32, #tpu.memory_space<vmem>>, vector<8x32xf32>,
    %c4_i32 = arith.constant 4 : i32
    %c8_i32_27 = arith.constant 8 : i32
    %110 = arith.muli %c4_i32, %c8_i32_27 : i32
    %111 = tpu.assume_multiple %110, 8 : i32
    %112 = arith.index_cast %111 : i32 to index
    %c0_28 = arith.constant 0 : index
    %113 = vector.load %arg1[%112, %c0_28] : memref<64x128xf32, #tpu.memory_space<vmem>>, vector<8x128xf32>
    %cst_29 = arith.constant dense<0.000000e+00> : vector<8x128xf32>
    %114 = tpu.matmul %107, %9, %cst_29 {dimension_numbers = #tpu.dot_dimension_numbers<[1], [0], [0], [1], [0, 0, 1, 1], [], []>} : vector<8x32xf32>, vector<32x128xf32>, vector<8x128xf32> -> vector<8x128xf32>
    %115 = arith.addf %113, %114 : vector<8x128xf32>
    %116 = math.tanh %115 : vector<8x128xf32>
    %117 = arith.negf %115 : vector<8x128xf32>
    %118 = math.exp %117 : vector<8x128xf32>
    %cst_30 = arith.constant 1.000000e+00 : f32
    %119 = vector.broadcast %cst_30 : f32 to vector<8x128xf32>
    %120 = arith.addf %119, %118 : vector<8x128xf32>
    %121 = arith.divf %119, %120 : vector<8x128xf32>
    %122 = arith.select %8, %116, %121 : vector<8x128xi1>, vector<8x128xf32>
    %123 = vector.extract_strided_slice %122 {offsets = [0, 0], sizes = [8, 32], strides = [1, 1]} : vector<8x128xf32> to vector<8x32xf32>
    %124 = vector.extract_strided_slice %122 {offsets = [0, 32], sizes = [8, 32], strides = [1, 1]} : vector<8x128xf32> to vector<8x32xf32>
    %125 = vector.extract_strided_slice %122 {offsets = [0, 64], sizes = [8, 32], strides = [1, 1]} : vector<8x128xf32> to vector<8x32xf32>
    %126 = vector.extract_strided_slice %122 {offsets = [0, 96], sizes = [8, 32], strides = [1, 1]} : vector<8x128xf32> to vector<8x32xf32>
    %127 = arith.mulf %124, %105 : vector<8x32xf32>
    %128 = arith.mulf %123, %125 : vector<8x32xf32>
    %129 = arith.addf %127, %128 : vector<8x32xf32>
    %130 = math.tanh %129 : vector<8x32xf32>
    %131 = arith.mulf %126, %130 : vector<8x32xf32>
    %132 = arith.index_cast %111 : i32 to index
    %c0_31 = arith.constant 0 : index
    %133 = vector.load %arg10[%132, %c0_31] : memref<64x32xf32, #tpu.memory_space<vmem>>, vector<8x32xf32>
    tpu.vector_store %arg10[%132, %c0_31], %131 {strides = array<i32>} : memref<64x32xf32, #tpu.memory_space<vmem>>, vector<8x32xf32>,
    %c5_i32 = arith.constant 5 : i32
    %c8_i32_32 = arith.constant 8 : i32
    %134 = arith.muli %c5_i32, %c8_i32_32 : i32
    %135 = tpu.assume_multiple %134, 8 : i32
    %136 = arith.index_cast %135 : i32 to index
    %c0_33 = arith.constant 0 : index
    %137 = vector.load %arg1[%136, %c0_33] : memref<64x128xf32, #tpu.memory_space<vmem>>, vector<8x128xf32>
    %cst_34 = arith.constant dense<0.000000e+00> : vector<8x128xf32>
    %138 = tpu.matmul %131, %9, %cst_34 {dimension_numbers = #tpu.dot_dimension_numbers<[1], [0], [0], [1], [0, 0, 1, 1], [], []>} : vector<8x32xf32>, vector<32x128xf32>, vector<8x128xf32> -> vector<8x128xf32>
    %139 = arith.addf %137, %138 : vector<8x128xf32>
    %140 = math.tanh %139 : vector<8x128xf32>
    %141 = arith.negf %139 : vector<8x128xf32>
    %142 = math.exp %141 : vector<8x128xf32>
    %cst_35 = arith.constant 1.000000e+00 : f32
    %143 = vector.broadcast %cst_35 : f32 to vector<8x128xf32>
    %144 = arith.addf %143, %142 : vector<8x128xf32>
    %145 = arith.divf %143, %144 : vector<8x128xf32>
    %146 = arith.select %8, %140, %145 : vector<8x128xi1>, vector<8x128xf32>
    %147 = vector.extract_strided_slice %146 {offsets = [0, 0], sizes = [8, 32], strides = [1, 1]} : vector<8x128xf32> to vector<8x32xf32>
    %148 = vector.extract_strided_slice %146 {offsets = [0, 32], sizes = [8, 32], strides = [1, 1]} : vector<8x128xf32> to vector<8x32xf32>
    %149 = vector.extract_strided_slice %146 {offsets = [0, 64], sizes = [8, 32], strides = [1, 1]} : vector<8x128xf32> to vector<8x32xf32>
    %150 = vector.extract_strided_slice %146 {offsets = [0, 96], sizes = [8, 32], strides = [1, 1]} : vector<8x128xf32> to vector<8x32xf32>
    %151 = arith.mulf %148, %129 : vector<8x32xf32>
    %152 = arith.mulf %147, %149 : vector<8x32xf32>
    %153 = arith.addf %151, %152 : vector<8x32xf32>
    %154 = math.tanh %153 : vector<8x32xf32>
    %155 = arith.mulf %150, %154 : vector<8x32xf32>
    %156 = arith.index_cast %135 : i32 to index
    %c0_36 = arith.constant 0 : index
    %157 = vector.load %arg10[%156, %c0_36] : memref<64x32xf32, #tpu.memory_space<vmem>>, vector<8x32xf32>
    tpu.vector_store %arg10[%156, %c0_36], %155 {strides = array<i32>} : memref<64x32xf32, #tpu.memory_space<vmem>>, vector<8x32xf32>,
    %c6_i32 = arith.constant 6 : i32
    %c8_i32_37 = arith.constant 8 : i32
    %158 = arith.muli %c6_i32, %c8_i32_37 : i32
    %159 = tpu.assume_multiple %158, 8 : i32
    %160 = arith.index_cast %159 : i32 to index
    %c0_38 = arith.constant 0 : index
    %161 = vector.load %arg1[%160, %c0_38] : memref<64x128xf32, #tpu.memory_space<vmem>>, vector<8x128xf32>
    %cst_39 = arith.constant dense<0.000000e+00> : vector<8x128xf32>
    %162 = tpu.matmul %155, %9, %cst_39 {dimension_numbers = #tpu.dot_dimension_numbers<[1], [0], [0], [1], [0, 0, 1, 1], [], []>} : vector<8x32xf32>, vector<32x128xf32>, vector<8x128xf32> -> vector<8x128xf32>
    %163 = arith.addf %161, %162 : vector<8x128xf32>
    %164 = math.tanh %163 : vector<8x128xf32>
    %165 = arith.negf %163 : vector<8x128xf32>
    %166 = math.exp %165 : vector<8x128xf32>
    %cst_40 = arith.constant 1.000000e+00 : f32
    %167 = vector.broadcast %cst_40 : f32 to vector<8x128xf32>
    %168 = arith.addf %167, %166 : vector<8x128xf32>
    %169 = arith.divf %167, %168 : vector<8x128xf32>
    %170 = arith.select %8, %164, %169 : vector<8x128xi1>, vector<8x128xf32>
    %171 = vector.extract_strided_slice %170 {offsets = [0, 0], sizes = [8, 32], strides = [1, 1]} : vector<8x128xf32> to vector<8x32xf32>
    %172 = vector.extract_strided_slice %170 {offsets = [0, 32], sizes = [8, 32], strides = [1, 1]} : vector<8x128xf32> to vector<8x32xf32>
    %173 = vector.extract_strided_slice %170 {offsets = [0, 64], sizes = [8, 32], strides = [1, 1]} : vector<8x128xf32> to vector<8x32xf32>
    %174 = vector.extract_strided_slice %170 {offsets = [0, 96], sizes = [8, 32], strides = [1, 1]} : vector<8x128xf32> to vector<8x32xf32>
    %175 = arith.mulf %172, %153 : vector<8x32xf32>
    %176 = arith.mulf %171, %173 : vector<8x32xf32>
    %177 = arith.addf %175, %176 : vector<8x32xf32>
    %178 = math.tanh %177 : vector<8x32xf32>
    %179 = arith.mulf %174, %178 : vector<8x32xf32>
    %180 = arith.index_cast %159 : i32 to index
    %c0_41 = arith.constant 0 : index
    %181 = vector.load %arg10[%180, %c0_41] : memref<64x32xf32, #tpu.memory_space<vmem>>, vector<8x32xf32>
    tpu.vector_store %arg10[%180, %c0_41], %179 {strides = array<i32>} : memref<64x32xf32, #tpu.memory_space<vmem>>, vector<8x32xf32>,
    %c7_i32 = arith.constant 7 : i32
    %c8_i32_42 = arith.constant 8 : i32
    %182 = arith.muli %c7_i32, %c8_i32_42 : i32
    %183 = tpu.assume_multiple %182, 8 : i32
    %184 = arith.index_cast %183 : i32 to index
    %c0_43 = arith.constant 0 : index
    %185 = vector.load %arg1[%184, %c0_43] : memref<64x128xf32, #tpu.memory_space<vmem>>, vector<8x128xf32>
    %cst_44 = arith.constant dense<0.000000e+00> : vector<8x128xf32>
    %186 = tpu.matmul %179, %9, %cst_44 {dimension_numbers = #tpu.dot_dimension_numbers<[1], [0], [0], [1], [0, 0, 1, 1], [], []>} : vector<8x32xf32>, vector<32x128xf32>, vector<8x128xf32> -> vector<8x128xf32>
    %187 = arith.addf %185, %186 : vector<8x128xf32>
    %188 = math.tanh %187 : vector<8x128xf32>
    %189 = arith.negf %187 : vector<8x128xf32>
    %190 = math.exp %189 : vector<8x128xf32>
    %cst_45 = arith.constant 1.000000e+00 : f32
    %191 = vector.broadcast %cst_45 : f32 to vector<8x128xf32>
    %192 = arith.addf %191, %190 : vector<8x128xf32>
    %193 = arith.divf %191, %192 : vector<8x128xf32>
    %194 = arith.select %8, %188, %193 : vector<8x128xi1>, vector<8x128xf32>
    %195 = vector.extract_strided_slice %194 {offsets = [0, 0], sizes = [8, 32], strides = [1, 1]} : vector<8x128xf32> to vector<8x32xf32>
    %196 = vector.extract_strided_slice %194 {offsets = [0, 32], sizes = [8, 32], strides = [1, 1]} : vector<8x128xf32> to vector<8x32xf32>
    %197 = vector.extract_strided_slice %194 {offsets = [0, 64], sizes = [8, 32], strides = [1, 1]} : vector<8x128xf32> to vector<8x32xf32>
    %198 = vector.extract_strided_slice %194 {offsets = [0, 96], sizes = [8, 32], strides = [1, 1]} : vector<8x128xf32> to vector<8x32xf32>
    %199 = arith.mulf %196, %177 : vector<8x32xf32>
    %200 = arith.mulf %195, %197 : vector<8x32xf32>
    %201 = arith.addf %199, %200 : vector<8x32xf32>
    %202 = math.tanh %201 : vector<8x32xf32>
    %203 = arith.mulf %198, %202 : vector<8x32xf32>
    %204 = arith.index_cast %183 : i32 to index
    %c0_46 = arith.constant 0 : index
    %205 = vector.load %arg10[%204, %c0_46] : memref<64x32xf32, #tpu.memory_space<vmem>>, vector<8x32xf32>
    tpu.vector_store %arg10[%204, %c0_46], %203 {strides = array<i32>} : memref<64x32xf32, #tpu.memory_space<vmem>>, vector<8x32xf32>,
    %c8_i32_47 = arith.constant 8 : i32
    %c0_48 = arith.constant 0 : index
    %c0_49 = arith.constant 0 : index
    %c0_50 = arith.constant 0 : index
    %206 = vector.load %arg11[%c0_48, %c0_49, %c0_50] : memref<2x8x32xf32, #tpu.memory_space<vmem>>, vector<1x8x32xf32>
    %207 = vector.shape_cast %206 : vector<1x8x32xf32> to vector<8x32xf32>
    %208 = vector.shape_cast %203 : vector<8x32xf32> to vector<1x8x32xf32>
    tpu.vector_store %arg11[%c0_48, %c0_49, %c0_50], %208 {strides = array<i32>} : memref<2x8x32xf32, #tpu.memory_space<vmem>>, vector<1x8x32xf32>,
    %c0_51 = arith.constant 0 : index
    %c0_52 = arith.constant 0 : index
    %c0_53 = arith.constant 0 : index
    %209 = vector.load %arg12[%c0_51, %c0_52, %c0_53] : memref<2x8x32xf32, #tpu.memory_space<vmem>>, vector<1x8x32xf32>
    %210 = vector.shape_cast %209 : vector<1x8x32xf32> to vector<8x32xf32>
    %211 = vector.shape_cast %201 : vector<8x32xf32> to vector<1x8x32xf32>
    tpu.vector_store %arg12[%c0_51, %c0_52, %c0_53], %211 {strides = array<i32>} : memref<2x8x32xf32, #tpu.memory_space<vmem>>, vector<1x8x32xf32>,
    %c0_54 = arith.constant 0 : index
    %c0_55 = arith.constant 0 : index
    %212 = vector.load %arg10[%c0_54, %c0_55] : memref<64x32xf32, #tpu.memory_space<vmem>>, vector<64x32xf32>
    %c0_56 = arith.constant 0 : index
    %c0_57 = arith.constant 0 : index
    %213 = vector.load %arg3[%c0_56, %c0_57] : memref<32x128xf32, #tpu.memory_space<vmem>>, vector<32x128xf32>
    %cst_58 = arith.constant dense<0.000000e+00> : vector<64x128xf32>
    %214 = tpu.matmul %212, %213, %cst_58 {dimension_numbers = #tpu.dot_dimension_numbers<[1], [0], [0], [1], [0, 0, 1, 1], [], []>} : vector<64x32xf32>, vector<32x128xf32>, vector<64x128xf32> -> vector<64x128xf32>
    %c0_59 = arith.constant 0 : index
    %c0_60 = arith.constant 0 : index
    %215 = vector.load %arg5[%c0_59, %c0_60] : memref<1x128xf32, #tpu.memory_space<vmem>>, vector<1x128xf32>
    %216 = vector.broadcast %215 : vector<1x128xf32> to vector<64x128xf32>
    %217 = arith.addf %214, %216 : vector<64x128xf32>
    %c0_61 = arith.constant 0 : index
    %c0_62 = arith.constant 0 : index
    %218 = vector.load %arg9[%c0_61, %c0_62] : memref<64x128xf32, #tpu.memory_space<vmem>>, vector<64x128xf32>
    tpu.vector_store %arg9[%c0_61, %c0_62], %217 {strides = array<i32>} : memref<64x128xf32, #tpu.memory_space<vmem>>, vector<64x128xf32>,
    %c0_63 = arith.constant 0 : index
    %c0_64 = arith.constant 0 : index
    %219 = vector.load %arg4[%c0_63, %c0_64] : memref<32x128xf32, #tpu.memory_space<vmem>>, vector<32x128xf32>
    %c1 = arith.constant 1 : index
    %c0_65 = arith.constant 0 : index
    %c0_66 = arith.constant 0 : index
    %220 = vector.load %arg11[%c1, %c0_65, %c0_66] : memref<2x8x32xf32, #tpu.memory_space<vmem>>, vector<1x8x32xf32>
    %221 = vector.shape_cast %220 : vector<1x8x32xf32> to vector<8x32xf32>
    %c1_67 = arith.constant 1 : index
    %c0_68 = arith.constant 0 : index
    %c0_69 = arith.constant 0 : index
    %222 = vector.load %arg12[%c1_67, %c0_68, %c0_69] : memref<2x8x32xf32, #tpu.memory_space<vmem>>, vector<1x8x32xf32>
    %223 = vector.shape_cast %222 : vector<1x8x32xf32> to vector<8x32xf32>
    %c0_i32_70 = arith.constant 0 : i32
    %c8_i32_71 = arith.constant 8 : i32
    %224 = arith.muli %c0_i32_70, %c8_i32_71 : i32
    %225 = tpu.assume_multiple %224, 8 : i32
    %226 = arith.index_cast %225 : i32 to index
    %c0_72 = arith.constant 0 : index
    %227 = vector.load %arg9[%226, %c0_72] : memref<64x128xf32, #tpu.memory_space<vmem>>, vector<8x128xf32>
    %cst_73 = arith.constant dense<0.000000e+00> : vector<8x128xf32>
    %228 = tpu.matmul %221, %219, %cst_73 {dimension_numbers = #tpu.dot_dimension_numbers<[1], [0], [0], [1], [0, 0, 1, 1], [], []>} : vector<8x32xf32>, vector<32x128xf32>, vector<8x128xf32> -> vector<8x128xf32>
    %229 = arith.addf %227, %228 : vector<8x128xf32>
    %230 = math.tanh %229 : vector<8x128xf32>
    %231 = arith.negf %229 : vector<8x128xf32>
    %232 = math.exp %231 : vector<8x128xf32>
    %cst_74 = arith.constant 1.000000e+00 : f32
    %233 = vector.broadcast %cst_74 : f32 to vector<8x128xf32>
    %234 = arith.addf %233, %232 : vector<8x128xf32>
    %235 = arith.divf %233, %234 : vector<8x128xf32>
    %236 = arith.select %8, %230, %235 : vector<8x128xi1>, vector<8x128xf32>
    %237 = vector.extract_strided_slice %236 {offsets = [0, 0], sizes = [8, 32], strides = [1, 1]} : vector<8x128xf32> to vector<8x32xf32>
    %238 = vector.extract_strided_slice %236 {offsets = [0, 32], sizes = [8, 32], strides = [1, 1]} : vector<8x128xf32> to vector<8x32xf32>
    %239 = vector.extract_strided_slice %236 {offsets = [0, 64], sizes = [8, 32], strides = [1, 1]} : vector<8x128xf32> to vector<8x32xf32>
    %240 = vector.extract_strided_slice %236 {offsets = [0, 96], sizes = [8, 32], strides = [1, 1]} : vector<8x128xf32> to vector<8x32xf32>
    %241 = arith.mulf %238, %223 : vector<8x32xf32>
    %242 = arith.mulf %237, %239 : vector<8x32xf32>
    %243 = arith.addf %241, %242 : vector<8x32xf32>
    %244 = math.tanh %243 : vector<8x32xf32>
    %245 = arith.mulf %240, %244 : vector<8x32xf32>
    %c1_i32_75 = arith.constant 1 : i32
    %c8_i32_76 = arith.constant 8 : i32
    %246 = arith.muli %c1_i32_75, %c8_i32_76 : i32
    %247 = tpu.assume_multiple %246, 8 : i32
    %248 = arith.index_cast %247 : i32 to index
    %c0_77 = arith.constant 0 : index
    %249 = vector.load %arg9[%248, %c0_77] : memref<64x128xf32, #tpu.memory_space<vmem>>, vector<8x128xf32>
    %cst_78 = arith.constant dense<0.000000e+00> : vector<8x128xf32>
    %250 = tpu.matmul %245, %219, %cst_78 {dimension_numbers = #tpu.dot_dimension_numbers<[1], [0], [0], [1], [0, 0, 1, 1], [], []>} : vector<8x32xf32>, vector<32x128xf32>, vector<8x128xf32> -> vector<8x128xf32>
    %251 = arith.addf %249, %250 : vector<8x128xf32>
    %252 = math.tanh %251 : vector<8x128xf32>
    %253 = arith.negf %251 : vector<8x128xf32>
    %254 = math.exp %253 : vector<8x128xf32>
    %cst_79 = arith.constant 1.000000e+00 : f32
    %255 = vector.broadcast %cst_79 : f32 to vector<8x128xf32>
    %256 = arith.addf %255, %254 : vector<8x128xf32>
    %257 = arith.divf %255, %256 : vector<8x128xf32>
    %258 = arith.select %8, %252, %257 : vector<8x128xi1>, vector<8x128xf32>
    %259 = vector.extract_strided_slice %258 {offsets = [0, 0], sizes = [8, 32], strides = [1, 1]} : vector<8x128xf32> to vector<8x32xf32>
    %260 = vector.extract_strided_slice %258 {offsets = [0, 32], sizes = [8, 32], strides = [1, 1]} : vector<8x128xf32> to vector<8x32xf32>
    %261 = vector.extract_strided_slice %258 {offsets = [0, 64], sizes = [8, 32], strides = [1, 1]} : vector<8x128xf32> to vector<8x32xf32>
    %262 = vector.extract_strided_slice %258 {offsets = [0, 96], sizes = [8, 32], strides = [1, 1]} : vector<8x128xf32> to vector<8x32xf32>
    %263 = arith.mulf %260, %243 : vector<8x32xf32>
    %264 = arith.mulf %259, %261 : vector<8x32xf32>
    %265 = arith.addf %263, %264 : vector<8x32xf32>
    %266 = math.tanh %265 : vector<8x32xf32>
    %267 = arith.mulf %262, %266 : vector<8x32xf32>
    %c2_i32_80 = arith.constant 2 : i32
    %c8_i32_81 = arith.constant 8 : i32
    %268 = arith.muli %c2_i32_80, %c8_i32_81 : i32
    %269 = tpu.assume_multiple %268, 8 : i32
    %270 = arith.index_cast %269 : i32 to index
    %c0_82 = arith.constant 0 : index
    %271 = vector.load %arg9[%270, %c0_82] : memref<64x128xf32, #tpu.memory_space<vmem>>, vector<8x128xf32>
    %cst_83 = arith.constant dense<0.000000e+00> : vector<8x128xf32>
    %272 = tpu.matmul %267, %219, %cst_83 {dimension_numbers = #tpu.dot_dimension_numbers<[1], [0], [0], [1], [0, 0, 1, 1], [], []>} : vector<8x32xf32>, vector<32x128xf32>, vector<8x128xf32> -> vector<8x128xf32>
    %273 = arith.addf %271, %272 : vector<8x128xf32>
    %274 = math.tanh %273 : vector<8x128xf32>
    %275 = arith.negf %273 : vector<8x128xf32>
    %276 = math.exp %275 : vector<8x128xf32>
    %cst_84 = arith.constant 1.000000e+00 : f32
    %277 = vector.broadcast %cst_84 : f32 to vector<8x128xf32>
    %278 = arith.addf %277, %276 : vector<8x128xf32>
    %279 = arith.divf %277, %278 : vector<8x128xf32>
    %280 = arith.select %8, %274, %279 : vector<8x128xi1>, vector<8x128xf32>
    %281 = vector.extract_strided_slice %280 {offsets = [0, 0], sizes = [8, 32], strides = [1, 1]} : vector<8x128xf32> to vector<8x32xf32>
    %282 = vector.extract_strided_slice %280 {offsets = [0, 32], sizes = [8, 32], strides = [1, 1]} : vector<8x128xf32> to vector<8x32xf32>
    %283 = vector.extract_strided_slice %280 {offsets = [0, 64], sizes = [8, 32], strides = [1, 1]} : vector<8x128xf32> to vector<8x32xf32>
    %284 = vector.extract_strided_slice %280 {offsets = [0, 96], sizes = [8, 32], strides = [1, 1]} : vector<8x128xf32> to vector<8x32xf32>
    %285 = arith.mulf %282, %265 : vector<8x32xf32>
    %286 = arith.mulf %281, %283 : vector<8x32xf32>
    %287 = arith.addf %285, %286 : vector<8x32xf32>
    %288 = math.tanh %287 : vector<8x32xf32>
    %289 = arith.mulf %284, %288 : vector<8x32xf32>
    %c3_i32_85 = arith.constant 3 : i32
    %c8_i32_86 = arith.constant 8 : i32
    %290 = arith.muli %c3_i32_85, %c8_i32_86 : i32
    %291 = tpu.assume_multiple %290, 8 : i32
    %292 = arith.index_cast %291 : i32 to index
    %c0_87 = arith.constant 0 : index
    %293 = vector.load %arg9[%292, %c0_87] : memref<64x128xf32, #tpu.memory_space<vmem>>, vector<8x128xf32>
    %cst_88 = arith.constant dense<0.000000e+00> : vector<8x128xf32>
    %294 = tpu.matmul %289, %219, %cst_88 {dimension_numbers = #tpu.dot_dimension_numbers<[1], [0], [0], [1], [0, 0, 1, 1], [], []>} : vector<8x32xf32>, vector<32x128xf32>, vector<8x128xf32> -> vector<8x128xf32>
    %295 = arith.addf %293, %294 : vector<8x128xf32>
    %296 = math.tanh %295 : vector<8x128xf32>
    %297 = arith.negf %295 : vector<8x128xf32>
    %298 = math.exp %297 : vector<8x128xf32>
    %cst_89 = arith.constant 1.000000e+00 : f32
    %299 = vector.broadcast %cst_89 : f32 to vector<8x128xf32>
    %300 = arith.addf %299, %298 : vector<8x128xf32>
    %301 = arith.divf %299, %300 : vector<8x128xf32>
    %302 = arith.select %8, %296, %301 : vector<8x128xi1>, vector<8x128xf32>
    %303 = vector.extract_strided_slice %302 {offsets = [0, 0], sizes = [8, 32], strides = [1, 1]} : vector<8x128xf32> to vector<8x32xf32>
    %304 = vector.extract_strided_slice %302 {offsets = [0, 32], sizes = [8, 32], strides = [1, 1]} : vector<8x128xf32> to vector<8x32xf32>
    %305 = vector.extract_strided_slice %302 {offsets = [0, 64], sizes = [8, 32], strides = [1, 1]} : vector<8x128xf32> to vector<8x32xf32>
    %306 = vector.extract_strided_slice %302 {offsets = [0, 96], sizes = [8, 32], strides = [1, 1]} : vector<8x128xf32> to vector<8x32xf32>
    %307 = arith.mulf %304, %287 : vector<8x32xf32>
    %308 = arith.mulf %303, %305 : vector<8x32xf32>
    %309 = arith.addf %307, %308 : vector<8x32xf32>
    %310 = math.tanh %309 : vector<8x32xf32>
    %311 = arith.mulf %306, %310 : vector<8x32xf32>
    %c4_i32_90 = arith.constant 4 : i32
    %c8_i32_91 = arith.constant 8 : i32
    %312 = arith.muli %c4_i32_90, %c8_i32_91 : i32
    %313 = tpu.assume_multiple %312, 8 : i32
    %314 = arith.index_cast %313 : i32 to index
    %c0_92 = arith.constant 0 : index
    %315 = vector.load %arg9[%314, %c0_92] : memref<64x128xf32, #tpu.memory_space<vmem>>, vector<8x128xf32>
    %cst_93 = arith.constant dense<0.000000e+00> : vector<8x128xf32>
    %316 = tpu.matmul %311, %219, %cst_93 {dimension_numbers = #tpu.dot_dimension_numbers<[1], [0], [0], [1], [0, 0, 1, 1], [], []>} : vector<8x32xf32>, vector<32x128xf32>, vector<8x128xf32> -> vector<8x128xf32>
    %317 = arith.addf %315, %316 : vector<8x128xf32>
    %318 = math.tanh %317 : vector<8x128xf32>
    %319 = arith.negf %317 : vector<8x128xf32>
    %320 = math.exp %319 : vector<8x128xf32>
    %cst_94 = arith.constant 1.000000e+00 : f32
    %321 = vector.broadcast %cst_94 : f32 to vector<8x128xf32>
    %322 = arith.addf %321, %320 : vector<8x128xf32>
    %323 = arith.divf %321, %322 : vector<8x128xf32>
    %324 = arith.select %8, %318, %323 : vector<8x128xi1>, vector<8x128xf32>
    %325 = vector.extract_strided_slice %324 {offsets = [0, 0], sizes = [8, 32], strides = [1, 1]} : vector<8x128xf32> to vector<8x32xf32>
    %326 = vector.extract_strided_slice %324 {offsets = [0, 32], sizes = [8, 32], strides = [1, 1]} : vector<8x128xf32> to vector<8x32xf32>
    %327 = vector.extract_strided_slice %324 {offsets = [0, 64], sizes = [8, 32], strides = [1, 1]} : vector<8x128xf32> to vector<8x32xf32>
    %328 = vector.extract_strided_slice %324 {offsets = [0, 96], sizes = [8, 32], strides = [1, 1]} : vector<8x128xf32> to vector<8x32xf32>
    %329 = arith.mulf %326, %309 : vector<8x32xf32>
    %330 = arith.mulf %325, %327 : vector<8x32xf32>
    %331 = arith.addf %329, %330 : vector<8x32xf32>
    %332 = math.tanh %331 : vector<8x32xf32>
    %333 = arith.mulf %328, %332 : vector<8x32xf32>
    %c5_i32_95 = arith.constant 5 : i32
    %c8_i32_96 = arith.constant 8 : i32
    %334 = arith.muli %c5_i32_95, %c8_i32_96 : i32
    %335 = tpu.assume_multiple %334, 8 : i32
    %336 = arith.index_cast %335 : i32 to index
    %c0_97 = arith.constant 0 : index
    %337 = vector.load %arg9[%336, %c0_97] : memref<64x128xf32, #tpu.memory_space<vmem>>, vector<8x128xf32>
    %cst_98 = arith.constant dense<0.000000e+00> : vector<8x128xf32>
    %338 = tpu.matmul %333, %219, %cst_98 {dimension_numbers = #tpu.dot_dimension_numbers<[1], [0], [0], [1], [0, 0, 1, 1], [], []>} : vector<8x32xf32>, vector<32x128xf32>, vector<8x128xf32> -> vector<8x128xf32>
    %339 = arith.addf %337, %338 : vector<8x128xf32>
    %340 = math.tanh %339 : vector<8x128xf32>
    %341 = arith.negf %339 : vector<8x128xf32>
    %342 = math.exp %341 : vector<8x128xf32>
    %cst_99 = arith.constant 1.000000e+00 : f32
    %343 = vector.broadcast %cst_99 : f32 to vector<8x128xf32>
    %344 = arith.addf %343, %342 : vector<8x128xf32>
    %345 = arith.divf %343, %344 : vector<8x128xf32>
    %346 = arith.select %8, %340, %345 : vector<8x128xi1>, vector<8x128xf32>
    %347 = vector.extract_strided_slice %346 {offsets = [0, 0], sizes = [8, 32], strides = [1, 1]} : vector<8x128xf32> to vector<8x32xf32>
    %348 = vector.extract_strided_slice %346 {offsets = [0, 32], sizes = [8, 32], strides = [1, 1]} : vector<8x128xf32> to vector<8x32xf32>
    %349 = vector.extract_strided_slice %346 {offsets = [0, 64], sizes = [8, 32], strides = [1, 1]} : vector<8x128xf32> to vector<8x32xf32>
    %350 = vector.extract_strided_slice %346 {offsets = [0, 96], sizes = [8, 32], strides = [1, 1]} : vector<8x128xf32> to vector<8x32xf32>
    %351 = arith.mulf %348, %331 : vector<8x32xf32>
    %352 = arith.mulf %347, %349 : vector<8x32xf32>
    %353 = arith.addf %351, %352 : vector<8x32xf32>
    %354 = math.tanh %353 : vector<8x32xf32>
    %355 = arith.mulf %350, %354 : vector<8x32xf32>
    %c6_i32_100 = arith.constant 6 : i32
    %c8_i32_101 = arith.constant 8 : i32
    %356 = arith.muli %c6_i32_100, %c8_i32_101 : i32
    %357 = tpu.assume_multiple %356, 8 : i32
    %358 = arith.index_cast %357 : i32 to index
    %c0_102 = arith.constant 0 : index
    %359 = vector.load %arg9[%358, %c0_102] : memref<64x128xf32, #tpu.memory_space<vmem>>, vector<8x128xf32>
    %cst_103 = arith.constant dense<0.000000e+00> : vector<8x128xf32>
    %360 = tpu.matmul %355, %219, %cst_103 {dimension_numbers = #tpu.dot_dimension_numbers<[1], [0], [0], [1], [0, 0, 1, 1], [], []>} : vector<8x32xf32>, vector<32x128xf32>, vector<8x128xf32> -> vector<8x128xf32>
    %361 = arith.addf %359, %360 : vector<8x128xf32>
    %362 = math.tanh %361 : vector<8x128xf32>
    %363 = arith.negf %361 : vector<8x128xf32>
    %364 = math.exp %363 : vector<8x128xf32>
    %cst_104 = arith.constant 1.000000e+00 : f32
    %365 = vector.broadcast %cst_104 : f32 to vector<8x128xf32>
    %366 = arith.addf %365, %364 : vector<8x128xf32>
    %367 = arith.divf %365, %366 : vector<8x128xf32>
    %368 = arith.select %8, %362, %367 : vector<8x128xi1>, vector<8x128xf32>
    %369 = vector.extract_strided_slice %368 {offsets = [0, 0], sizes = [8, 32], strides = [1, 1]} : vector<8x128xf32> to vector<8x32xf32>
    %370 = vector.extract_strided_slice %368 {offsets = [0, 32], sizes = [8, 32], strides = [1, 1]} : vector<8x128xf32> to vector<8x32xf32>
    %371 = vector.extract_strided_slice %368 {offsets = [0, 64], sizes = [8, 32], strides = [1, 1]} : vector<8x128xf32> to vector<8x32xf32>
    %372 = vector.extract_strided_slice %368 {offsets = [0, 96], sizes = [8, 32], strides = [1, 1]} : vector<8x128xf32> to vector<8x32xf32>
    %373 = arith.mulf %370, %353 : vector<8x32xf32>
    %374 = arith.mulf %369, %371 : vector<8x32xf32>
    %375 = arith.addf %373, %374 : vector<8x32xf32>
    %376 = math.tanh %375 : vector<8x32xf32>
    %377 = arith.mulf %372, %376 : vector<8x32xf32>
    %c7_i32_105 = arith.constant 7 : i32
    %c8_i32_106 = arith.constant 8 : i32
    %378 = arith.muli %c7_i32_105, %c8_i32_106 : i32
    %379 = tpu.assume_multiple %378, 8 : i32
    %380 = arith.index_cast %379 : i32 to index
    %c0_107 = arith.constant 0 : index
    %381 = vector.load %arg9[%380, %c0_107] : memref<64x128xf32, #tpu.memory_space<vmem>>, vector<8x128xf32>
    %cst_108 = arith.constant dense<0.000000e+00> : vector<8x128xf32>
    %382 = tpu.matmul %377, %219, %cst_108 {dimension_numbers = #tpu.dot_dimension_numbers<[1], [0], [0], [1], [0, 0, 1, 1], [], []>} : vector<8x32xf32>, vector<32x128xf32>, vector<8x128xf32> -> vector<8x128xf32>
    %383 = arith.addf %381, %382 : vector<8x128xf32>
    %384 = math.tanh %383 : vector<8x128xf32>
    %385 = arith.negf %383 : vector<8x128xf32>
    %386 = math.exp %385 : vector<8x128xf32>
    %cst_109 = arith.constant 1.000000e+00 : f32
    %387 = vector.broadcast %cst_109 : f32 to vector<8x128xf32>
    %388 = arith.addf %387, %386 : vector<8x128xf32>
    %389 = arith.divf %387, %388 : vector<8x128xf32>
    %390 = arith.select %8, %384, %389 : vector<8x128xi1>, vector<8x128xf32>
    %391 = vector.extract_strided_slice %390 {offsets = [0, 0], sizes = [8, 32], strides = [1, 1]} : vector<8x128xf32> to vector<8x32xf32>
    %392 = vector.extract_strided_slice %390 {offsets = [0, 32], sizes = [8, 32], strides = [1, 1]} : vector<8x128xf32> to vector<8x32xf32>
    %393 = vector.extract_strided_slice %390 {offsets = [0, 64], sizes = [8, 32], strides = [1, 1]} : vector<8x128xf32> to vector<8x32xf32>
    %394 = vector.extract_strided_slice %390 {offsets = [0, 96], sizes = [8, 32], strides = [1, 1]} : vector<8x128xf32> to vector<8x32xf32>
    %395 = arith.mulf %392, %375 : vector<8x32xf32>
    %396 = arith.mulf %391, %393 : vector<8x32xf32>
    %397 = arith.addf %395, %396 : vector<8x32xf32>
    %398 = math.tanh %397 : vector<8x32xf32>
    %399 = arith.mulf %394, %398 : vector<8x32xf32>
    %c8_i32_110 = arith.constant 8 : i32
    %c1_111 = arith.constant 1 : index
    %c0_112 = arith.constant 0 : index
    %c0_113 = arith.constant 0 : index
    %400 = vector.load %arg11[%c1_111, %c0_112, %c0_113] : memref<2x8x32xf32, #tpu.memory_space<vmem>>, vector<1x8x32xf32>
    %401 = vector.shape_cast %400 : vector<1x8x32xf32> to vector<8x32xf32>
    %402 = vector.shape_cast %399 : vector<8x32xf32> to vector<1x8x32xf32>
    tpu.vector_store %arg11[%c1_111, %c0_112, %c0_113], %402 {strides = array<i32>} : memref<2x8x32xf32, #tpu.memory_space<vmem>>, vector<1x8x32xf32>,
    %c1_114 = arith.constant 1 : index
    %c0_115 = arith.constant 0 : index
    %c0_116 = arith.constant 0 : index
    %403 = vector.load %arg12[%c1_114, %c0_115, %c0_116] : memref<2x8x32xf32, #tpu.memory_space<vmem>>, vector<1x8x32xf32>
    %404 = vector.shape_cast %403 : vector<1x8x32xf32> to vector<8x32xf32>
    %405 = vector.shape_cast %397 : vector<8x32xf32> to vector<1x8x32xf32>
    tpu.vector_store %arg12[%c1_114, %c0_115, %c0_116], %405 {strides = array<i32>} : memref<2x8x32xf32, #tpu.memory_space<vmem>>, vector<1x8x32xf32>,
    %c0_i32_117 = arith.constant 0 : i32
    %406 = arith.cmpi eq, %arg0, %c0_i32_117 : i32
    %407 = arith.extui %406 : i1 to i32
    %c0_i32_118 = arith.constant 0 : i32
    %408 = arith.cmpi ne, %407, %c0_i32_118 : i32
    scf.if %408 {
      %c1_119 = arith.constant 1 : index
      %c0_120 = arith.constant 0 : index
      %c0_121 = arith.constant 0 : index
      %409 = vector.load %arg11[%c1_119, %c0_120, %c0_121] : memref<2x8x32xf32, #tpu.memory_space<vmem>>, vector<1x8x32xf32>
      %410 = vector.shape_cast %409 : vector<1x8x32xf32> to vector<8x32xf32>
      %c0_122 = arith.constant 0 : index
      %c0_123 = arith.constant 0 : index
      %411 = vector.load %arg6[%c0_122, %c0_123] : memref<32x1xf32, #tpu.memory_space<vmem>>, vector<32x1xf32>
      %cst_124 = arith.constant dense<0.000000e+00> : vector<8x1xf32>
      %412 = tpu.matmul %410, %411, %cst_124 {dimension_numbers = #tpu.dot_dimension_numbers<[1], [0], [0], [1], [0, 0, 1, 1], [], []>} : vector<8x32xf32>, vector<32x1xf32>, vector<8x1xf32> -> vector<8x1xf32>
      %c0_125 = arith.constant 0 : index
      %c0_126 = arith.constant 0 : index
      %413 = vector.load %arg7[%c0_125, %c0_126] : memref<1x1xf32, #tpu.memory_space<vmem>>, vector<1x1xf32>
      %414 = vector.broadcast %413 : vector<1x1xf32> to vector<8x1xf32>
      %415 = arith.addf %412, %414 : vector<8x1xf32>
      %c0_127 = arith.constant 0 : index
      %c0_128 = arith.constant 0 : index
      %416 = vector.load %arg8[%c0_127, %c0_128] : memref<8x1xf32, #tpu.memory_space<vmem>>, vector<8x1xf32>
      tpu.vector_store %arg8[%c0_127, %c0_128], %415 {strides = array<i32>} : memref<8x1xf32, #tpu.memory_space<vmem>>, vector<8x1xf32>,
    } else {
    }
    return
  }
  func.func @transform_0(%arg0: i32) -> (i32, i32) {
    %c0_i32 = arith.constant 0 : i32
    %c0_i32_0 = arith.constant 0 : i32
    return %arg0, %c0_i32 : i32, i32
  }
  func.func @transform_1(%arg0: i32) -> (i32, i32) {
    %c0_i32 = arith.constant 0 : i32
    %c0_i32_0 = arith.constant 0 : i32
    %c0_i32_1 = arith.constant 0 : i32
    return %c0_i32, %c0_i32_0 : i32, i32
  }
  func.func @transform_2(%arg0: i32) -> (i32, i32) {
    %c0_i32 = arith.constant 0 : i32
    %c0_i32_0 = arith.constant 0 : i32
    %c0_i32_1 = arith.constant 0 : i32
    return %c0_i32, %c0_i32_0 : i32, i32
  }
  func.func @transform_3(%arg0: i32) -> (i32, i32) {
    %c0_i32 = arith.constant 0 : i32
    %c0_i32_0 = arith.constant 0 : i32
    %c0_i32_1 = arith.constant 0 : i32
    return %c0_i32, %c0_i32_0 : i32, i32
  }
  func.func @transform_4(%arg0: i32) -> (i32, i32) {
    %c0_i32 = arith.constant 0 : i32
    %c0_i32_0 = arith.constant 0 : i32
    %c0_i32_1 = arith.constant 0 : i32
    return %c0_i32, %c0_i32_0 : i32, i32
  }
  func.func @transform_5(%arg0: i32) -> (i32, i32) {
    %c0_i32 = arith.constant 0 : i32
    %c0_i32_0 = arith.constant 0 : i32
    %c0_i32_1 = arith.constant 0 : i32
    return %c0_i32, %c0_i32_0 : i32, i32
  }
  func.func @transform_6(%arg0: i32) -> (i32, i32) {
    %c0_i32 = arith.constant 0 : i32
    %c0_i32_0 = arith.constant 0 : i32
    %c0_i32_1 = arith.constant 0 : i32
    return %c0_i32, %c0_i32_0 : i32, i32
  }
  func.func @transform_7(%arg0: i32) -> (i32, i32) {
    %c0_i32 = arith.constant 0 : i32
    %c0_i32_0 = arith.constant 0 : i32
    %c0_i32_1 = arith.constant 0 : i32
    return %c0_i32, %c0_i32_0 : i32, i32
  }
}

module attributes {stable_mosaic.version = 11 : i64} {
  func.func @_stock_lstm_kernel(%arg0: i32, %arg1: memref<64x128xf32, #tpu.memory_space<vmem>>, %arg2: memref<32x128xf32, #tpu.memory_space<vmem>>, %arg3: memref<32x128xf32, #tpu.memory_space<vmem>>, %arg4: memref<32x128xf32, #tpu.memory_space<vmem>>, %arg5: memref<1x128xf32, #tpu.memory_space<vmem>>, %arg6: memref<32x1xf32, #tpu.memory_space<vmem>>, %arg7: memref<1x1xf32, #tpu.memory_space<vmem>>, %arg8: memref<8x1xf32, #tpu.memory_space<vmem>>, %arg9: memref<64x128xf32, #tpu.memory_space<vmem>>, %arg10: memref<64x32xf32, #tpu.memory_space<vmem>>, %arg11: memref<2x8x32xf32, #tpu.memory_space<vmem>>, %arg12: memref<2x8x32xf32, #tpu.memory_space<vmem>>) attributes {dimension_semantics = [#tpu.dimension_semantics<arbitrary>], iteration_bounds = array<i64: 1>, scalar_prefetch = 0 : i64, scratch_operands = 4 : i64, tpu.core_type = #tpu.core_type<tc>, window_params = [{transform_indices = @transform_0, window_bounds = array<i64: 64, 128>}, {pipeline_mode = #tpu.pipeline_mode<synchronous>, transform_indices = @transform_1, window_bounds = array<i64: 32, 128>}, {pipeline_mode = #tpu.pipeline_mode<synchronous>, transform_indices = @transform_2, window_bounds = array<i64: 32, 128>}, {pipeline_mode = #tpu.pipeline_mode<synchronous>, transform_indices = @transform_3, window_bounds = array<i64: 32, 128>}, {pipeline_mode = #tpu.pipeline_mode<synchronous>, transform_indices = @transform_4, window_bounds = array<i64: 1, 128>}, {pipeline_mode = #tpu.pipeline_mode<synchronous>, transform_indices = @transform_5, window_bounds = array<i64: 32, 1>}, {pipeline_mode = #tpu.pipeline_mode<synchronous>, transform_indices = @transform_6, window_bounds = array<i64: 1, 1>}, {pipeline_mode = #tpu.pipeline_mode<synchronous>, transform_indices = @transform_7, window_bounds = array<i64: 8, 1>}]} {
    %c0_i32 = arith.constant 0 : i32
    %0 = arith.cmpi eq, %arg0, %c0_i32 : i32
    %1 = arith.extui %0 : i1 to i32
    %c0_i32_0 = arith.constant 0 : i32
    %2 = arith.cmpi ne, %1, %c0_i32_0 : i32
    scf.if %2 {
      %cst_119 = arith.constant 0.000000e+00 : f32
      %409 = vector.broadcast %cst_119 : f32 to vector<2x8x32xf32>
      %c0_120 = arith.constant 0 : index
      %c0_121 = arith.constant 0 : index
      %c0_122 = arith.constant 0 : index
      %410 = vector.load %arg11[%c0_120, %c0_121, %c0_122] : memref<2x8x32xf32, #tpu.memory_space<vmem>>, vector<2x8x32xf32>
      tpu.vector_store %arg11[%c0_120, %c0_121, %c0_122], %409 {strides = array<i32>} : memref<2x8x32xf32, #tpu.memory_space<vmem>>, vector<2x8x32xf32>,
      %cst_123 = arith.constant 0.000000e+00 : f32
      %411 = vector.broadcast %cst_123 : f32 to vector<2x8x32xf32>
      %c0_124 = arith.constant 0 : index
      %c0_125 = arith.constant 0 : index
      %c0_126 = arith.constant 0 : index
      %412 = vector.load %arg12[%c0_124, %c0_125, %c0_126] : memref<2x8x32xf32, #tpu.memory_space<vmem>>, vector<2x8x32xf32>
      tpu.vector_store %arg12[%c0_124, %c0_125, %c0_126], %411 {strides = array<i32>} : memref<2x8x32xf32, #tpu.memory_space<vmem>>, vector<2x8x32xf32>,
    } else {
    }
    %3 = tpu.iota {dimensions = array<i32: 1>} : vector<8x128xi32>
    %c64_i32 = arith.constant 64 : i32
    %4 = vector.broadcast %c64_i32 : i32 to vector<8x128xi32>
    %5 = arith.cmpi sge, %3, %4 : vector<8x128xi32>
    %c96_i32 = arith.constant 96 : i32
    %6 = vector.broadcast %c96_i32 : i32 to vector<8x128xi32>
    %7 = arith.cmpi slt, %3, %6 : vector<8x128xi32>
    %8 = arith.andi %5, %7 : vector<8x128xi1>
    %c0 = arith.constant 0 : index
    %c0_1 = arith.constant 0 : index
    %9 = vector.load %arg2[%c0, %c0_1] : memref<32x128xf32, #tpu.memory_space<vmem>>, vector<32x128xf32>
    %c0_2 = arith.constant 0 : index
    %c0_3 = arith.constant 0 : index
    %c0_4 = arith.constant 0 : index
    %10 = vector.load %arg11[%c0_2, %c0_3, %c0_4] : memref<2x8x32xf32, #tpu.memory_space<vmem>>, vector<1x8x32xf32>
    %11 = vector.shape_cast %10 : vector<1x8x32xf32> to vector<8x32xf32>
    %c0_5 = arith.constant 0 : index
    %c0_6 = arith.constant 0 : index
    %c0_7 = arith.constant 0 : index
    %12 = vector.load %arg12[%c0_5, %c0_6, %c0_7] : memref<2x8x32xf32, #tpu.memory_space<vmem>>, vector<1x8x32xf32>
    %13 = vector.shape_cast %12 : vector<1x8x32xf32> to vector<8x32xf32>
    %c0_i32_8 = arith.constant 0 : i32
    %c8_i32 = arith.constant 8 : i32
    %14 = arith.muli %c0_i32_8, %c8_i32 : i32
    %15 = tpu.assume_multiple %14, 8 : i32
    %16 = arith.index_cast %15 : i32 to index
    %c0_9 = arith.constant 0 : index
    %17 = vector.load %arg1[%16, %c0_9] : memref<64x128xf32, #tpu.memory_space<vmem>>, vector<8x128xf32>
    %cst = arith.constant dense<0.000000e+00> : vector<8x128xf32>
    %18 = tpu.matmul %11, %9, %cst {dimension_numbers = #tpu.dot_dimension_numbers<[1], [0], [0], [1], [0, 0, 1, 1], [], []>} : vector<8x32xf32>, vector<32x128xf32>, vector<8x128xf32> -> vector<8x128xf32>
    %19 = arith.addf %17, %18 : vector<8x128xf32>
    %20 = math.tanh %19 : vector<8x128xf32>
    %21 = arith.negf %19 : vector<8x128xf32>
    %22 = math.exp %21 : vector<8x128xf32>
    %cst_10 = arith.constant 1.000000e+00 : f32
    %23 = vector.broadcast %cst_10 : f32 to vector<8x128xf32>
    %24 = arith.addf %23, %22 : vector<8x128xf32>
    %25 = arith.divf %23, %24 : vector<8x128xf32>
    %26 = arith.select %8, %20, %25 : vector<8x128xi1>, vector<8x128xf32>
    %27 = vector.extract_strided_slice %26 {offsets = [0, 0], sizes = [8, 32], strides = [1, 1]} : vector<8x128xf32> to vector<8x32xf32>
    %28 = vector.extract_strided_slice %26 {offsets = [0, 32], sizes = [8, 32], strides = [1, 1]} : vector<8x128xf32> to vector<8x32xf32>
    %29 = vector.extract_strided_slice %26 {offsets = [0, 64], sizes = [8, 32], strides = [1, 1]} : vector<8x128xf32> to vector<8x32xf32>
    %30 = vector.extract_strided_slice %26 {offsets = [0, 96], sizes = [8, 32], strides = [1, 1]} : vector<8x128xf32> to vector<8x32xf32>
    %31 = arith.mulf %28, %13 : vector<8x32xf32>
    %32 = arith.mulf %27, %29 : vector<8x32xf32>
    %33 = arith.addf %31, %32 : vector<8x32xf32>
    %34 = math.tanh %33 : vector<8x32xf32>
    %35 = arith.mulf %30, %34 : vector<8x32xf32>
    %36 = arith.index_cast %15 : i32 to index
    %c0_11 = arith.constant 0 : index
    %37 = vector.load %arg10[%36, %c0_11] : memref<64x32xf32, #tpu.memory_space<vmem>>, vector<8x32xf32>
    tpu.vector_store %arg10[%36, %c0_11], %35 {strides = array<i32>} : memref<64x32xf32, #tpu.memory_space<vmem>>, vector<8x32xf32>,
    %c1_i32 = arith.constant 1 : i32
    %c8_i32_12 = arith.constant 8 : i32
    %38 = arith.muli %c1_i32, %c8_i32_12 : i32
    %39 = tpu.assume_multiple %38, 8 : i32
    %40 = arith.index_cast %39 : i32 to index
    %c0_13 = arith.constant 0 : index
    %41 = vector.load %arg1[%40, %c0_13] : memref<64x128xf32, #tpu.memory_space<vmem>>, vector<8x128xf32>
    %cst_14 = arith.constant dense<0.000000e+00> : vector<8x128xf32>
    %42 = tpu.matmul %35, %9, %cst_14 {dimension_numbers = #tpu.dot_dimension_numbers<[1], [0], [0], [1], [0, 0, 1, 1], [], []>} : vector<8x32xf32>, vector<32x128xf32>, vector<8x128xf32> -> vector<8x128xf32>
    %43 = arith.addf %41, %42 : vector<8x128xf32>
    %44 = math.tanh %43 : vector<8x128xf32>
    %45 = arith.negf %43 : vector<8x128xf32>
    %46 = math.exp %45 : vector<8x128xf32>
    %cst_15 = arith.constant 1.000000e+00 : f32
    %47 = vector.broadcast %cst_15 : f32 to vector<8x128xf32>
    %48 = arith.addf %47, %46 : vector<8x128xf32>
    %49 = arith.divf %47, %48 : vector<8x128xf32>
    %50 = arith.select %8, %44, %49 : vector<8x128xi1>, vector<8x128xf32>
    %51 = vector.extract_strided_slice %50 {offsets = [0, 0], sizes = [8, 32], strides = [1, 1]} : vector<8x128xf32> to vector<8x32xf32>
    %52 = vector.extract_strided_slice %50 {offsets = [0, 32], sizes = [8, 32], strides = [1, 1]} : vector<8x128xf32> to vector<8x32xf32>
    %53 = vector.extract_strided_slice %50 {offsets = [0, 64], sizes = [8, 32], strides = [1, 1]} : vector<8x128xf32> to vector<8x32xf32>
    %54 = vector.extract_strided_slice %50 {offsets = [0, 96], sizes = [8, 32], strides = [1, 1]} : vector<8x128xf32> to vector<8x32xf32>
    %55 = arith.mulf %52, %33 : vector<8x32xf32>
    %56 = arith.mulf %51, %53 : vector<8x32xf32>
    %57 = arith.addf %55, %56 : vector<8x32xf32>
    %58 = math.tanh %57 : vector<8x32xf32>
    %59 = arith.mulf %54, %58 : vector<8x32xf32>
    %60 = arith.index_cast %39 : i32 to index
    %c0_16 = arith.constant 0 : index
    %61 = vector.load %arg10[%60, %c0_16] : memref<64x32xf32, #tpu.memory_space<vmem>>, vector<8x32xf32>
    tpu.vector_store %arg10[%60, %c0_16], %59 {strides = array<i32>} : memref<64x32xf32, #tpu.memory_space<vmem>>, vector<8x32xf32>,
    %c2_i32 = arith.constant 2 : i32
    %c8_i32_17 = arith.constant 8 : i32
    %62 = arith.muli %c2_i32, %c8_i32_17 : i32
    %63 = tpu.assume_multiple %62, 8 : i32
    %64 = arith.index_cast %63 : i32 to index
    %c0_18 = arith.constant 0 : index
    %65 = vector.load %arg1[%64, %c0_18] : memref<64x128xf32, #tpu.memory_space<vmem>>, vector<8x128xf32>
    %cst_19 = arith.constant dense<0.000000e+00> : vector<8x128xf32>
    %66 = tpu.matmul %59, %9, %cst_19 {dimension_numbers = #tpu.dot_dimension_numbers<[1], [0], [0], [1], [0, 0, 1, 1], [], []>} : vector<8x32xf32>, vector<32x128xf32>, vector<8x128xf32> -> vector<8x128xf32>
    %67 = arith.addf %65, %66 : vector<8x128xf32>
    %68 = math.tanh %67 : vector<8x128xf32>
    %69 = arith.negf %67 : vector<8x128xf32>
    %70 = math.exp %69 : vector<8x128xf32>
    %cst_20 = arith.constant 1.000000e+00 : f32
    %71 = vector.broadcast %cst_20 : f32 to vector<8x128xf32>
    %72 = arith.addf %71, %70 : vector<8x128xf32>
    %73 = arith.divf %71, %72 : vector<8x128xf32>
    %74 = arith.select %8, %68, %73 : vector<8x128xi1>, vector<8x128xf32>
    %75 = vector.extract_strided_slice %74 {offsets = [0, 0], sizes = [8, 32], strides = [1, 1]} : vector<8x128xf32> to vector<8x32xf32>
    %76 = vector.extract_strided_slice %74 {offsets = [0, 32], sizes = [8, 32], strides = [1, 1]} : vector<8x128xf32> to vector<8x32xf32>
    %77 = vector.extract_strided_slice %74 {offsets = [0, 64], sizes = [8, 32], strides = [1, 1]} : vector<8x128xf32> to vector<8x32xf32>
    %78 = vector.extract_strided_slice %74 {offsets = [0, 96], sizes = [8, 32], strides = [1, 1]} : vector<8x128xf32> to vector<8x32xf32>
    %79 = arith.mulf %76, %57 : vector<8x32xf32>
    %80 = arith.mulf %75, %77 : vector<8x32xf32>
    %81 = arith.addf %79, %80 : vector<8x32xf32>
    %82 = math.tanh %81 : vector<8x32xf32>
    %83 = arith.mulf %78, %82 : vector<8x32xf32>
    %84 = arith.index_cast %63 : i32 to index
    %c0_21 = arith.constant 0 : index
    %85 = vector.load %arg10[%84, %c0_21] : memref<64x32xf32, #tpu.memory_space<vmem>>, vector<8x32xf32>
    tpu.vector_store %arg10[%84, %c0_21], %83 {strides = array<i32>} : memref<64x32xf32, #tpu.memory_space<vmem>>, vector<8x32xf32>,
    %c3_i32 = arith.constant 3 : i32
    %c8_i32_22 = arith.constant 8 : i32
    %86 = arith.muli %c3_i32, %c8_i32_22 : i32
    %87 = tpu.assume_multiple %86, 8 : i32
    %88 = arith.index_cast %87 : i32 to index
    %c0_23 = arith.constant 0 : index
    %89 = vector.load %arg1[%88, %c0_23] : memref<64x128xf32, #tpu.memory_space<vmem>>, vector<8x128xf32>
    %cst_24 = arith.constant dense<0.000000e+00> : vector<8x128xf32>
    %90 = tpu.matmul %83, %9, %cst_24 {dimension_numbers = #tpu.dot_dimension_numbers<[1], [0], [0], [1], [0, 0, 1, 1], [], []>} : vector<8x32xf32>, vector<32x128xf32>, vector<8x128xf32> -> vector<8x128xf32>
    %91 = arith.addf %89, %90 : vector<8x128xf32>
    %92 = math.tanh %91 : vector<8x128xf32>
    %93 = arith.negf %91 : vector<8x128xf32>
    %94 = math.exp %93 : vector<8x128xf32>
    %cst_25 = arith.constant 1.000000e+00 : f32
    %95 = vector.broadcast %cst_25 : f32 to vector<8x128xf32>
    %96 = arith.addf %95, %94 : vector<8x128xf32>
    %97 = arith.divf %95, %96 : vector<8x128xf32>
    %98 = arith.select %8, %92, %97 : vector<8x128xi1>, vector<8x128xf32>
    %99 = vector.extract_strided_slice %98 {offsets = [0, 0], sizes = [8, 32], strides = [1, 1]} : vector<8x128xf32> to vector<8x32xf32>
    %100 = vector.extract_strided_slice %98 {offsets = [0, 32], sizes = [8, 32], strides = [1, 1]} : vector<8x128xf32> to vector<8x32xf32>
    %101 = vector.extract_strided_slice %98 {offsets = [0, 64], sizes = [8, 32], strides = [1, 1]} : vector<8x128xf32> to vector<8x32xf32>
    %102 = vector.extract_strided_slice %98 {offsets = [0, 96], sizes = [8, 32], strides = [1, 1]} : vector<8x128xf32> to vector<8x32xf32>
    %103 = arith.mulf %100, %81 : vector<8x32xf32>
    %104 = arith.mulf %99, %101 : vector<8x32xf32>
    %105 = arith.addf %103, %104 : vector<8x32xf32>
    %106 = math.tanh %105 : vector<8x32xf32>
    %107 = arith.mulf %102, %106 : vector<8x32xf32>
    %108 = arith.index_cast %87 : i32 to index
    %c0_26 = arith.constant 0 : index
    %109 = vector.load %arg10[%108, %c0_26] : memref<64x32xf32, #tpu.memory_space<vmem>>, vector<8x32xf32>
    tpu.vector_store %arg10[%108, %c0_26], %107 {strides = array<i32>} : memref<64x32xf32, #tpu.memory_space<vmem>>, vector<8x32xf32>,
    %c4_i32 = arith.constant 4 : i32
    %c8_i32_27 = arith.constant 8 : i32
    %110 = arith.muli %c4_i32, %c8_i32_27 : i32
    %111 = tpu.assume_multiple %110, 8 : i32
    %112 = arith.index_cast %111 : i32 to index
    %c0_28 = arith.constant 0 : index
    %113 = vector.load %arg1[%112, %c0_28] : memref<64x128xf32, #tpu.memory_space<vmem>>, vector<8x128xf32>
    %cst_29 = arith.constant dense<0.000000e+00> : vector<8x128xf32>
    %114 = tpu.matmul %107, %9, %cst_29 {dimension_numbers = #tpu.dot_dimension_numbers<[1], [0], [0], [1], [0, 0, 1, 1], [], []>} : vector<8x32xf32>, vector<32x128xf32>, vector<8x128xf32> -> vector<8x128xf32>
    %115 = arith.addf %113, %114 : vector<8x128xf32>
    %116 = math.tanh %115 : vector<8x128xf32>
    %117 = arith.negf %115 : vector<8x128xf32>
    %118 = math.exp %117 : vector<8x128xf32>
    %cst_30 = arith.constant 1.000000e+00 : f32
    %119 = vector.broadcast %cst_30 : f32 to vector<8x128xf32>
    %120 = arith.addf %119, %118 : vector<8x128xf32>
    %121 = arith.divf %119, %120 : vector<8x128xf32>
    %122 = arith.select %8, %116, %121 : vector<8x128xi1>, vector<8x128xf32>
    %123 = vector.extract_strided_slice %122 {offsets = [0, 0], sizes = [8, 32], strides = [1, 1]} : vector<8x128xf32> to vector<8x32xf32>
    %124 = vector.extract_strided_slice %122 {offsets = [0, 32], sizes = [8, 32], strides = [1, 1]} : vector<8x128xf32> to vector<8x32xf32>
    %125 = vector.extract_strided_slice %122 {offsets = [0, 64], sizes = [8, 32], strides = [1, 1]} : vector<8x128xf32> to vector<8x32xf32>
    %126 = vector.extract_strided_slice %122 {offsets = [0, 96], sizes = [8, 32], strides = [1, 1]} : vector<8x128xf32> to vector<8x32xf32>
    %127 = arith.mulf %124, %105 : vector<8x32xf32>
    %128 = arith.mulf %123, %125 : vector<8x32xf32>
    %129 = arith.addf %127, %128 : vector<8x32xf32>
    %130 = math.tanh %129 : vector<8x32xf32>
    %131 = arith.mulf %126, %130 : vector<8x32xf32>
    %132 = arith.index_cast %111 : i32 to index
    %c0_31 = arith.constant 0 : index
    %133 = vector.load %arg10[%132, %c0_31] : memref<64x32xf32, #tpu.memory_space<vmem>>, vector<8x32xf32>
    tpu.vector_store %arg10[%132, %c0_31], %131 {strides = array<i32>} : memref<64x32xf32, #tpu.memory_space<vmem>>, vector<8x32xf32>,
    %c5_i32 = arith.constant 5 : i32
    %c8_i32_32 = arith.constant 8 : i32
    %134 = arith.muli %c5_i32, %c8_i32_32 : i32
    %135 = tpu.assume_multiple %134, 8 : i32
    %136 = arith.index_cast %135 : i32 to index
    %c0_33 = arith.constant 0 : index
    %137 = vector.load %arg1[%136, %c0_33] : memref<64x128xf32, #tpu.memory_space<vmem>>, vector<8x128xf32>
    %cst_34 = arith.constant dense<0.000000e+00> : vector<8x128xf32>
    %138 = tpu.matmul %131, %9, %cst_34 {dimension_numbers = #tpu.dot_dimension_numbers<[1], [0], [0], [1], [0, 0, 1, 1], [], []>} : vector<8x32xf32>, vector<32x128xf32>, vector<8x128xf32> -> vector<8x128xf32>
    %139 = arith.addf %137, %138 : vector<8x128xf32>
    %140 = math.tanh %139 : vector<8x128xf32>
    %141 = arith.negf %139 : vector<8x128xf32>
    %142 = math.exp %141 : vector<8x128xf32>
    %cst_35 = arith.constant 1.000000e+00 : f32
    %143 = vector.broadcast %cst_35 : f32 to vector<8x128xf32>
    %144 = arith.addf %143, %142 : vector<8x128xf32>
    %145 = arith.divf %143, %144 : vector<8x128xf32>
    %146 = arith.select %8, %140, %145 : vector<8x128xi1>, vector<8x128xf32>
    %147 = vector.extract_strided_slice %146 {offsets = [0, 0], sizes = [8, 32], strides = [1, 1]} : vector<8x128xf32> to vector<8x32xf32>
    %148 = vector.extract_strided_slice %146 {offsets = [0, 32], sizes = [8, 32], strides = [1, 1]} : vector<8x128xf32> to vector<8x32xf32>
    %149 = vector.extract_strided_slice %146 {offsets = [0, 64], sizes = [8, 32], strides = [1, 1]} : vector<8x128xf32> to vector<8x32xf32>
    %150 = vector.extract_strided_slice %146 {offsets = [0, 96], sizes = [8, 32], strides = [1, 1]} : vector<8x128xf32> to vector<8x32xf32>
    %151 = arith.mulf %148, %129 : vector<8x32xf32>
    %152 = arith.mulf %147, %149 : vector<8x32xf32>
    %153 = arith.addf %151, %152 : vector<8x32xf32>
    %154 = math.tanh %153 : vector<8x32xf32>
    %155 = arith.mulf %150, %154 : vector<8x32xf32>
    %156 = arith.index_cast %135 : i32 to index
    %c0_36 = arith.constant 0 : index
    %157 = vector.load %arg10[%156, %c0_36] : memref<64x32xf32, #tpu.memory_space<vmem>>, vector<8x32xf32>
    tpu.vector_store %arg10[%156, %c0_36], %155 {strides = array<i32>} : memref<64x32xf32, #tpu.memory_space<vmem>>, vector<8x32xf32>,
    %c6_i32 = arith.constant 6 : i32
    %c8_i32_37 = arith.constant 8 : i32
    %158 = arith.muli %c6_i32, %c8_i32_37 : i32
    %159 = tpu.assume_multiple %158, 8 : i32
    %160 = arith.index_cast %159 : i32 to index
    %c0_38 = arith.constant 0 : index
    %161 = vector.load %arg1[%160, %c0_38] : memref<64x128xf32, #tpu.memory_space<vmem>>, vector<8x128xf32>
    %cst_39 = arith.constant dense<0.000000e+00> : vector<8x128xf32>
    %162 = tpu.matmul %155, %9, %cst_39 {dimension_numbers = #tpu.dot_dimension_numbers<[1], [0], [0], [1], [0, 0, 1, 1], [], []>} : vector<8x32xf32>, vector<32x128xf32>, vector<8x128xf32> -> vector<8x128xf32>
    %163 = arith.addf %161, %162 : vector<8x128xf32>
    %164 = math.tanh %163 : vector<8x128xf32>
    %165 = arith.negf %163 : vector<8x128xf32>
    %166 = math.exp %165 : vector<8x128xf32>
    %cst_40 = arith.constant 1.000000e+00 : f32
    %167 = vector.broadcast %cst_40 : f32 to vector<8x128xf32>
    %168 = arith.addf %167, %166 : vector<8x128xf32>
    %169 = arith.divf %167, %168 : vector<8x128xf32>
    %170 = arith.select %8, %164, %169 : vector<8x128xi1>, vector<8x128xf32>
    %171 = vector.extract_strided_slice %170 {offsets = [0, 0], sizes = [8, 32], strides = [1, 1]} : vector<8x128xf32> to vector<8x32xf32>
    %172 = vector.extract_strided_slice %170 {offsets = [0, 32], sizes = [8, 32], strides = [1, 1]} : vector<8x128xf32> to vector<8x32xf32>
    %173 = vector.extract_strided_slice %170 {offsets = [0, 64], sizes = [8, 32], strides = [1, 1]} : vector<8x128xf32> to vector<8x32xf32>
    %174 = vector.extract_strided_slice %170 {offsets = [0, 96], sizes = [8, 32], strides = [1, 1]} : vector<8x128xf32> to vector<8x32xf32>
    %175 = arith.mulf %172, %153 : vector<8x32xf32>
    %176 = arith.mulf %171, %173 : vector<8x32xf32>
    %177 = arith.addf %175, %176 : vector<8x32xf32>
    %178 = math.tanh %177 : vector<8x32xf32>
    %179 = arith.mulf %174, %178 : vector<8x32xf32>
    %180 = arith.index_cast %159 : i32 to index
    %c0_41 = arith.constant 0 : index
    %181 = vector.load %arg10[%180, %c0_41] : memref<64x32xf32, #tpu.memory_space<vmem>>, vector<8x32xf32>
    tpu.vector_store %arg10[%180, %c0_41], %179 {strides = array<i32>} : memref<64x32xf32, #tpu.memory_space<vmem>>, vector<8x32xf32>,
    %c7_i32 = arith.constant 7 : i32
    %c8_i32_42 = arith.constant 8 : i32
    %182 = arith.muli %c7_i32, %c8_i32_42 : i32
    %183 = tpu.assume_multiple %182, 8 : i32
    %184 = arith.index_cast %183 : i32 to index
    %c0_43 = arith.constant 0 : index
    %185 = vector.load %arg1[%184, %c0_43] : memref<64x128xf32, #tpu.memory_space<vmem>>, vector<8x128xf32>
    %cst_44 = arith.constant dense<0.000000e+00> : vector<8x128xf32>
    %186 = tpu.matmul %179, %9, %cst_44 {dimension_numbers = #tpu.dot_dimension_numbers<[1], [0], [0], [1], [0, 0, 1, 1], [], []>} : vector<8x32xf32>, vector<32x128xf32>, vector<8x128xf32> -> vector<8x128xf32>
    %187 = arith.addf %185, %186 : vector<8x128xf32>
    %188 = math.tanh %187 : vector<8x128xf32>
    %189 = arith.negf %187 : vector<8x128xf32>
    %190 = math.exp %189 : vector<8x128xf32>
    %cst_45 = arith.constant 1.000000e+00 : f32
    %191 = vector.broadcast %cst_45 : f32 to vector<8x128xf32>
    %192 = arith.addf %191, %190 : vector<8x128xf32>
    %193 = arith.divf %191, %192 : vector<8x128xf32>
    %194 = arith.select %8, %188, %193 : vector<8x128xi1>, vector<8x128xf32>
    %195 = vector.extract_strided_slice %194 {offsets = [0, 0], sizes = [8, 32], strides = [1, 1]} : vector<8x128xf32> to vector<8x32xf32>
    %196 = vector.extract_strided_slice %194 {offsets = [0, 32], sizes = [8, 32], strides = [1, 1]} : vector<8x128xf32> to vector<8x32xf32>
    %197 = vector.extract_strided_slice %194 {offsets = [0, 64], sizes = [8, 32], strides = [1, 1]} : vector<8x128xf32> to vector<8x32xf32>
    %198 = vector.extract_strided_slice %194 {offsets = [0, 96], sizes = [8, 32], strides = [1, 1]} : vector<8x128xf32> to vector<8x32xf32>
    %199 = arith.mulf %196, %177 : vector<8x32xf32>
    %200 = arith.mulf %195, %197 : vector<8x32xf32>
    %201 = arith.addf %199, %200 : vector<8x32xf32>
    %202 = math.tanh %201 : vector<8x32xf32>
    %203 = arith.mulf %198, %202 : vector<8x32xf32>
    %204 = arith.index_cast %183 : i32 to index
    %c0_46 = arith.constant 0 : index
    %205 = vector.load %arg10[%204, %c0_46] : memref<64x32xf32, #tpu.memory_space<vmem>>, vector<8x32xf32>
    tpu.vector_store %arg10[%204, %c0_46], %203 {strides = array<i32>} : memref<64x32xf32, #tpu.memory_space<vmem>>, vector<8x32xf32>,
    %c8_i32_47 = arith.constant 8 : i32
    %c0_48 = arith.constant 0 : index
    %c0_49 = arith.constant 0 : index
    %c0_50 = arith.constant 0 : index
    %206 = vector.load %arg11[%c0_48, %c0_49, %c0_50] : memref<2x8x32xf32, #tpu.memory_space<vmem>>, vector<1x8x32xf32>
    %207 = vector.shape_cast %206 : vector<1x8x32xf32> to vector<8x32xf32>
    %208 = vector.shape_cast %203 : vector<8x32xf32> to vector<1x8x32xf32>
    tpu.vector_store %arg11[%c0_48, %c0_49, %c0_50], %208 {strides = array<i32>} : memref<2x8x32xf32, #tpu.memory_space<vmem>>, vector<1x8x32xf32>,
    %c0_51 = arith.constant 0 : index
    %c0_52 = arith.constant 0 : index
    %c0_53 = arith.constant 0 : index
    %209 = vector.load %arg12[%c0_51, %c0_52, %c0_53] : memref<2x8x32xf32, #tpu.memory_space<vmem>>, vector<1x8x32xf32>
    %210 = vector.shape_cast %209 : vector<1x8x32xf32> to vector<8x32xf32>
    %211 = vector.shape_cast %201 : vector<8x32xf32> to vector<1x8x32xf32>
    tpu.vector_store %arg12[%c0_51, %c0_52, %c0_53], %211 {strides = array<i32>} : memref<2x8x32xf32, #tpu.memory_space<vmem>>, vector<1x8x32xf32>,
    %c0_54 = arith.constant 0 : index
    %c0_55 = arith.constant 0 : index
    %212 = vector.load %arg10[%c0_54, %c0_55] : memref<64x32xf32, #tpu.memory_space<vmem>>, vector<64x32xf32>
    %c0_56 = arith.constant 0 : index
    %c0_57 = arith.constant 0 : index
    %213 = vector.load %arg3[%c0_56, %c0_57] : memref<32x128xf32, #tpu.memory_space<vmem>>, vector<32x128xf32>
    %cst_58 = arith.constant dense<0.000000e+00> : vector<64x128xf32>
    %214 = tpu.matmul %212, %213, %cst_58 {dimension_numbers = #tpu.dot_dimension_numbers<[1], [0], [0], [1], [0, 0, 1, 1], [], []>} : vector<64x32xf32>, vector<32x128xf32>, vector<64x128xf32> -> vector<64x128xf32>
    %c0_59 = arith.constant 0 : index
    %c0_60 = arith.constant 0 : index
    %215 = vector.load %arg5[%c0_59, %c0_60] : memref<1x128xf32, #tpu.memory_space<vmem>>, vector<1x128xf32>
    %216 = vector.broadcast %215 : vector<1x128xf32> to vector<64x128xf32>
    %217 = arith.addf %214, %216 : vector<64x128xf32>
    %c0_61 = arith.constant 0 : index
    %c0_62 = arith.constant 0 : index
    %218 = vector.load %arg9[%c0_61, %c0_62] : memref<64x128xf32, #tpu.memory_space<vmem>>, vector<64x128xf32>
    tpu.vector_store %arg9[%c0_61, %c0_62], %217 {strides = array<i32>} : memref<64x128xf32, #tpu.memory_space<vmem>>, vector<64x128xf32>,
    %c0_63 = arith.constant 0 : index
    %c0_64 = arith.constant 0 : index
    %219 = vector.load %arg4[%c0_63, %c0_64] : memref<32x128xf32, #tpu.memory_space<vmem>>, vector<32x128xf32>
    %c1 = arith.constant 1 : index
    %c0_65 = arith.constant 0 : index
    %c0_66 = arith.constant 0 : index
    %220 = vector.load %arg11[%c1, %c0_65, %c0_66] : memref<2x8x32xf32, #tpu.memory_space<vmem>>, vector<1x8x32xf32>
    %221 = vector.shape_cast %220 : vector<1x8x32xf32> to vector<8x32xf32>
    %c1_67 = arith.constant 1 : index
    %c0_68 = arith.constant 0 : index
    %c0_69 = arith.constant 0 : index
    %222 = vector.load %arg12[%c1_67, %c0_68, %c0_69] : memref<2x8x32xf32, #tpu.memory_space<vmem>>, vector<1x8x32xf32>
    %223 = vector.shape_cast %222 : vector<1x8x32xf32> to vector<8x32xf32>
    %c0_i32_70 = arith.constant 0 : i32
    %c8_i32_71 = arith.constant 8 : i32
    %224 = arith.muli %c0_i32_70, %c8_i32_71 : i32
    %225 = tpu.assume_multiple %224, 8 : i32
    %226 = arith.index_cast %225 : i32 to index
    %c0_72 = arith.constant 0 : index
    %227 = vector.load %arg9[%226, %c0_72] : memref<64x128xf32, #tpu.memory_space<vmem>>, vector<8x128xf32>
    %cst_73 = arith.constant dense<0.000000e+00> : vector<8x128xf32>
    %228 = tpu.matmul %221, %219, %cst_73 {dimension_numbers = #tpu.dot_dimension_numbers<[1], [0], [0], [1], [0, 0, 1, 1], [], []>} : vector<8x32xf32>, vector<32x128xf32>, vector<8x128xf32> -> vector<8x128xf32>
    %229 = arith.addf %227, %228 : vector<8x128xf32>
    %230 = math.tanh %229 : vector<8x128xf32>
    %231 = arith.negf %229 : vector<8x128xf32>
    %232 = math.exp %231 : vector<8x128xf32>
    %cst_74 = arith.constant 1.000000e+00 : f32
    %233 = vector.broadcast %cst_74 : f32 to vector<8x128xf32>
    %234 = arith.addf %233, %232 : vector<8x128xf32>
    %235 = arith.divf %233, %234 : vector<8x128xf32>
    %236 = arith.select %8, %230, %235 : vector<8x128xi1>, vector<8x128xf32>
    %237 = vector.extract_strided_slice %236 {offsets = [0, 0], sizes = [8, 32], strides = [1, 1]} : vector<8x128xf32> to vector<8x32xf32>
    %238 = vector.extract_strided_slice %236 {offsets = [0, 32], sizes = [8, 32], strides = [1, 1]} : vector<8x128xf32> to vector<8x32xf32>
    %239 = vector.extract_strided_slice %236 {offsets = [0, 64], sizes = [8, 32], strides = [1, 1]} : vector<8x128xf32> to vector<8x32xf32>
    %240 = vector.extract_strided_slice %236 {offsets = [0, 96], sizes = [8, 32], strides = [1, 1]} : vector<8x128xf32> to vector<8x32xf32>
    %241 = arith.mulf %238, %223 : vector<8x32xf32>
    %242 = arith.mulf %237, %239 : vector<8x32xf32>
    %243 = arith.addf %241, %242 : vector<8x32xf32>
    %244 = math.tanh %243 : vector<8x32xf32>
    %245 = arith.mulf %240, %244 : vector<8x32xf32>
    %c1_i32_75 = arith.constant 1 : i32
    %c8_i32_76 = arith.constant 8 : i32
    %246 = arith.muli %c1_i32_75, %c8_i32_76 : i32
    %247 = tpu.assume_multiple %246, 8 : i32
    %248 = arith.index_cast %247 : i32 to index
    %c0_77 = arith.constant 0 : index
    %249 = vector.load %arg9[%248, %c0_77] : memref<64x128xf32, #tpu.memory_space<vmem>>, vector<8x128xf32>
    %cst_78 = arith.constant dense<0.000000e+00> : vector<8x128xf32>
    %250 = tpu.matmul %245, %219, %cst_78 {dimension_numbers = #tpu.dot_dimension_numbers<[1], [0], [0], [1], [0, 0, 1, 1], [], []>} : vector<8x32xf32>, vector<32x128xf32>, vector<8x128xf32> -> vector<8x128xf32>
    %251 = arith.addf %249, %250 : vector<8x128xf32>
    %252 = math.tanh %251 : vector<8x128xf32>
    %253 = arith.negf %251 : vector<8x128xf32>
    %254 = math.exp %253 : vector<8x128xf32>
    %cst_79 = arith.constant 1.000000e+00 : f32
    %255 = vector.broadcast %cst_79 : f32 to vector<8x128xf32>
    %256 = arith.addf %255, %254 : vector<8x128xf32>
    %257 = arith.divf %255, %256 : vector<8x128xf32>
    %258 = arith.select %8, %252, %257 : vector<8x128xi1>, vector<8x128xf32>
    %259 = vector.extract_strided_slice %258 {offsets = [0, 0], sizes = [8, 32], strides = [1, 1]} : vector<8x128xf32> to vector<8x32xf32>
    %260 = vector.extract_strided_slice %258 {offsets = [0, 32], sizes = [8, 32], strides = [1, 1]} : vector<8x128xf32> to vector<8x32xf32>
    %261 = vector.extract_strided_slice %258 {offsets = [0, 64], sizes = [8, 32], strides = [1, 1]} : vector<8x128xf32> to vector<8x32xf32>
    %262 = vector.extract_strided_slice %258 {offsets = [0, 96], sizes = [8, 32], strides = [1, 1]} : vector<8x128xf32> to vector<8x32xf32>
    %263 = arith.mulf %260, %243 : vector<8x32xf32>
    %264 = arith.mulf %259, %261 : vector<8x32xf32>
    %265 = arith.addf %263, %264 : vector<8x32xf32>
    %266 = math.tanh %265 : vector<8x32xf32>
    %267 = arith.mulf %262, %266 : vector<8x32xf32>
    %c2_i32_80 = arith.constant 2 : i32
    %c8_i32_81 = arith.constant 8 : i32
    %268 = arith.muli %c2_i32_80, %c8_i32_81 : i32
    %269 = tpu.assume_multiple %268, 8 : i32
    %270 = arith.index_cast %269 : i32 to index
    %c0_82 = arith.constant 0 : index
    %271 = vector.load %arg9[%270, %c0_82] : memref<64x128xf32, #tpu.memory_space<vmem>>, vector<8x128xf32>
    %cst_83 = arith.constant dense<0.000000e+00> : vector<8x128xf32>
    %272 = tpu.matmul %267, %219, %cst_83 {dimension_numbers = #tpu.dot_dimension_numbers<[1], [0], [0], [1], [0, 0, 1, 1], [], []>} : vector<8x32xf32>, vector<32x128xf32>, vector<8x128xf32> -> vector<8x128xf32>
    %273 = arith.addf %271, %272 : vector<8x128xf32>
    %274 = math.tanh %273 : vector<8x128xf32>
    %275 = arith.negf %273 : vector<8x128xf32>
    %276 = math.exp %275 : vector<8x128xf32>
    %cst_84 = arith.constant 1.000000e+00 : f32
    %277 = vector.broadcast %cst_84 : f32 to vector<8x128xf32>
    %278 = arith.addf %277, %276 : vector<8x128xf32>
    %279 = arith.divf %277, %278 : vector<8x128xf32>
    %280 = arith.select %8, %274, %279 : vector<8x128xi1>, vector<8x128xf32>
    %281 = vector.extract_strided_slice %280 {offsets = [0, 0], sizes = [8, 32], strides = [1, 1]} : vector<8x128xf32> to vector<8x32xf32>
    %282 = vector.extract_strided_slice %280 {offsets = [0, 32], sizes = [8, 32], strides = [1, 1]} : vector<8x128xf32> to vector<8x32xf32>
    %283 = vector.extract_strided_slice %280 {offsets = [0, 64], sizes = [8, 32], strides = [1, 1]} : vector<8x128xf32> to vector<8x32xf32>
    %284 = vector.extract_strided_slice %280 {offsets = [0, 96], sizes = [8, 32], strides = [1, 1]} : vector<8x128xf32> to vector<8x32xf32>
    %285 = arith.mulf %282, %265 : vector<8x32xf32>
    %286 = arith.mulf %281, %283 : vector<8x32xf32>
    %287 = arith.addf %285, %286 : vector<8x32xf32>
    %288 = math.tanh %287 : vector<8x32xf32>
    %289 = arith.mulf %284, %288 : vector<8x32xf32>
    %c3_i32_85 = arith.constant 3 : i32
    %c8_i32_86 = arith.constant 8 : i32
    %290 = arith.muli %c3_i32_85, %c8_i32_86 : i32
    %291 = tpu.assume_multiple %290, 8 : i32
    %292 = arith.index_cast %291 : i32 to index
    %c0_87 = arith.constant 0 : index
    %293 = vector.load %arg9[%292, %c0_87] : memref<64x128xf32, #tpu.memory_space<vmem>>, vector<8x128xf32>
    %cst_88 = arith.constant dense<0.000000e+00> : vector<8x128xf32>
    %294 = tpu.matmul %289, %219, %cst_88 {dimension_numbers = #tpu.dot_dimension_numbers<[1], [0], [0], [1], [0, 0, 1, 1], [], []>} : vector<8x32xf32>, vector<32x128xf32>, vector<8x128xf32> -> vector<8x128xf32>
    %295 = arith.addf %293, %294 : vector<8x128xf32>
    %296 = math.tanh %295 : vector<8x128xf32>
    %297 = arith.negf %295 : vector<8x128xf32>
    %298 = math.exp %297 : vector<8x128xf32>
    %cst_89 = arith.constant 1.000000e+00 : f32
    %299 = vector.broadcast %cst_89 : f32 to vector<8x128xf32>
    %300 = arith.addf %299, %298 : vector<8x128xf32>
    %301 = arith.divf %299, %300 : vector<8x128xf32>
    %302 = arith.select %8, %296, %301 : vector<8x128xi1>, vector<8x128xf32>
    %303 = vector.extract_strided_slice %302 {offsets = [0, 0], sizes = [8, 32], strides = [1, 1]} : vector<8x128xf32> to vector<8x32xf32>
    %304 = vector.extract_strided_slice %302 {offsets = [0, 32], sizes = [8, 32], strides = [1, 1]} : vector<8x128xf32> to vector<8x32xf32>
    %305 = vector.extract_strided_slice %302 {offsets = [0, 64], sizes = [8, 32], strides = [1, 1]} : vector<8x128xf32> to vector<8x32xf32>
    %306 = vector.extract_strided_slice %302 {offsets = [0, 96], sizes = [8, 32], strides = [1, 1]} : vector<8x128xf32> to vector<8x32xf32>
    %307 = arith.mulf %304, %287 : vector<8x32xf32>
    %308 = arith.mulf %303, %305 : vector<8x32xf32>
    %309 = arith.addf %307, %308 : vector<8x32xf32>
    %310 = math.tanh %309 : vector<8x32xf32>
    %311 = arith.mulf %306, %310 : vector<8x32xf32>
    %c4_i32_90 = arith.constant 4 : i32
    %c8_i32_91 = arith.constant 8 : i32
    %312 = arith.muli %c4_i32_90, %c8_i32_91 : i32
    %313 = tpu.assume_multiple %312, 8 : i32
    %314 = arith.index_cast %313 : i32 to index
    %c0_92 = arith.constant 0 : index
    %315 = vector.load %arg9[%314, %c0_92] : memref<64x128xf32, #tpu.memory_space<vmem>>, vector<8x128xf32>
    %cst_93 = arith.constant dense<0.000000e+00> : vector<8x128xf32>
    %316 = tpu.matmul %311, %219, %cst_93 {dimension_numbers = #tpu.dot_dimension_numbers<[1], [0], [0], [1], [0, 0, 1, 1], [], []>} : vector<8x32xf32>, vector<32x128xf32>, vector<8x128xf32> -> vector<8x128xf32>
    %317 = arith.addf %315, %316 : vector<8x128xf32>
    %318 = math.tanh %317 : vector<8x128xf32>
    %319 = arith.negf %317 : vector<8x128xf32>
    %320 = math.exp %319 : vector<8x128xf32>
    %cst_94 = arith.constant 1.000000e+00 : f32
    %321 = vector.broadcast %cst_94 : f32 to vector<8x128xf32>
    %322 = arith.addf %321, %320 : vector<8x128xf32>
    %323 = arith.divf %321, %322 : vector<8x128xf32>
    %324 = arith.select %8, %318, %323 : vector<8x128xi1>, vector<8x128xf32>
    %325 = vector.extract_strided_slice %324 {offsets = [0, 0], sizes = [8, 32], strides = [1, 1]} : vector<8x128xf32> to vector<8x32xf32>
    %326 = vector.extract_strided_slice %324 {offsets = [0, 32], sizes = [8, 32], strides = [1, 1]} : vector<8x128xf32> to vector<8x32xf32>
    %327 = vector.extract_strided_slice %324 {offsets = [0, 64], sizes = [8, 32], strides = [1, 1]} : vector<8x128xf32> to vector<8x32xf32>
    %328 = vector.extract_strided_slice %324 {offsets = [0, 96], sizes = [8, 32], strides = [1, 1]} : vector<8x128xf32> to vector<8x32xf32>
    %329 = arith.mulf %326, %309 : vector<8x32xf32>
    %330 = arith.mulf %325, %327 : vector<8x32xf32>
    %331 = arith.addf %329, %330 : vector<8x32xf32>
    %332 = math.tanh %331 : vector<8x32xf32>
    %333 = arith.mulf %328, %332 : vector<8x32xf32>
    %c5_i32_95 = arith.constant 5 : i32
    %c8_i32_96 = arith.constant 8 : i32
    %334 = arith.muli %c5_i32_95, %c8_i32_96 : i32
    %335 = tpu.assume_multiple %334, 8 : i32
    %336 = arith.index_cast %335 : i32 to index
    %c0_97 = arith.constant 0 : index
    %337 = vector.load %arg9[%336, %c0_97] : memref<64x128xf32, #tpu.memory_space<vmem>>, vector<8x128xf32>
    %cst_98 = arith.constant dense<0.000000e+00> : vector<8x128xf32>
    %338 = tpu.matmul %333, %219, %cst_98 {dimension_numbers = #tpu.dot_dimension_numbers<[1], [0], [0], [1], [0, 0, 1, 1], [], []>} : vector<8x32xf32>, vector<32x128xf32>, vector<8x128xf32> -> vector<8x128xf32>
    %339 = arith.addf %337, %338 : vector<8x128xf32>
    %340 = math.tanh %339 : vector<8x128xf32>
    %341 = arith.negf %339 : vector<8x128xf32>
    %342 = math.exp %341 : vector<8x128xf32>
    %cst_99 = arith.constant 1.000000e+00 : f32
    %343 = vector.broadcast %cst_99 : f32 to vector<8x128xf32>
    %344 = arith.addf %343, %342 : vector<8x128xf32>
    %345 = arith.divf %343, %344 : vector<8x128xf32>
    %346 = arith.select %8, %340, %345 : vector<8x128xi1>, vector<8x128xf32>
    %347 = vector.extract_strided_slice %346 {offsets = [0, 0], sizes = [8, 32], strides = [1, 1]} : vector<8x128xf32> to vector<8x32xf32>
    %348 = vector.extract_strided_slice %346 {offsets = [0, 32], sizes = [8, 32], strides = [1, 1]} : vector<8x128xf32> to vector<8x32xf32>
    %349 = vector.extract_strided_slice %346 {offsets = [0, 64], sizes = [8, 32], strides = [1, 1]} : vector<8x128xf32> to vector<8x32xf32>
    %350 = vector.extract_strided_slice %346 {offsets = [0, 96], sizes = [8, 32], strides = [1, 1]} : vector<8x128xf32> to vector<8x32xf32>
    %351 = arith.mulf %348, %331 : vector<8x32xf32>
    %352 = arith.mulf %347, %349 : vector<8x32xf32>
    %353 = arith.addf %351, %352 : vector<8x32xf32>
    %354 = math.tanh %353 : vector<8x32xf32>
    %355 = arith.mulf %350, %354 : vector<8x32xf32>
    %c6_i32_100 = arith.constant 6 : i32
    %c8_i32_101 = arith.constant 8 : i32
    %356 = arith.muli %c6_i32_100, %c8_i32_101 : i32
    %357 = tpu.assume_multiple %356, 8 : i32
    %358 = arith.index_cast %357 : i32 to index
    %c0_102 = arith.constant 0 : index
    %359 = vector.load %arg9[%358, %c0_102] : memref<64x128xf32, #tpu.memory_space<vmem>>, vector<8x128xf32>
    %cst_103 = arith.constant dense<0.000000e+00> : vector<8x128xf32>
    %360 = tpu.matmul %355, %219, %cst_103 {dimension_numbers = #tpu.dot_dimension_numbers<[1], [0], [0], [1], [0, 0, 1, 1], [], []>} : vector<8x32xf32>, vector<32x128xf32>, vector<8x128xf32> -> vector<8x128xf32>
    %361 = arith.addf %359, %360 : vector<8x128xf32>
    %362 = math.tanh %361 : vector<8x128xf32>
    %363 = arith.negf %361 : vector<8x128xf32>
    %364 = math.exp %363 : vector<8x128xf32>
    %cst_104 = arith.constant 1.000000e+00 : f32
    %365 = vector.broadcast %cst_104 : f32 to vector<8x128xf32>
    %366 = arith.addf %365, %364 : vector<8x128xf32>
    %367 = arith.divf %365, %366 : vector<8x128xf32>
    %368 = arith.select %8, %362, %367 : vector<8x128xi1>, vector<8x128xf32>
    %369 = vector.extract_strided_slice %368 {offsets = [0, 0], sizes = [8, 32], strides = [1, 1]} : vector<8x128xf32> to vector<8x32xf32>
    %370 = vector.extract_strided_slice %368 {offsets = [0, 32], sizes = [8, 32], strides = [1, 1]} : vector<8x128xf32> to vector<8x32xf32>
    %371 = vector.extract_strided_slice %368 {offsets = [0, 64], sizes = [8, 32], strides = [1, 1]} : vector<8x128xf32> to vector<8x32xf32>
    %372 = vector.extract_strided_slice %368 {offsets = [0, 96], sizes = [8, 32], strides = [1, 1]} : vector<8x128xf32> to vector<8x32xf32>
    %373 = arith.mulf %370, %353 : vector<8x32xf32>
    %374 = arith.mulf %369, %371 : vector<8x32xf32>
    %375 = arith.addf %373, %374 : vector<8x32xf32>
    %376 = math.tanh %375 : vector<8x32xf32>
    %377 = arith.mulf %372, %376 : vector<8x32xf32>
    %c7_i32_105 = arith.constant 7 : i32
    %c8_i32_106 = arith.constant 8 : i32
    %378 = arith.muli %c7_i32_105, %c8_i32_106 : i32
    %379 = tpu.assume_multiple %378, 8 : i32
    %380 = arith.index_cast %379 : i32 to index
    %c0_107 = arith.constant 0 : index
    %381 = vector.load %arg9[%380, %c0_107] : memref<64x128xf32, #tpu.memory_space<vmem>>, vector<8x128xf32>
    %cst_108 = arith.constant dense<0.000000e+00> : vector<8x128xf32>
    %382 = tpu.matmul %377, %219, %cst_108 {dimension_numbers = #tpu.dot_dimension_numbers<[1], [0], [0], [1], [0, 0, 1, 1], [], []>} : vector<8x32xf32>, vector<32x128xf32>, vector<8x128xf32> -> vector<8x128xf32>
    %383 = arith.addf %381, %382 : vector<8x128xf32>
    %384 = math.tanh %383 : vector<8x128xf32>
    %385 = arith.negf %383 : vector<8x128xf32>
    %386 = math.exp %385 : vector<8x128xf32>
    %cst_109 = arith.constant 1.000000e+00 : f32
    %387 = vector.broadcast %cst_109 : f32 to vector<8x128xf32>
    %388 = arith.addf %387, %386 : vector<8x128xf32>
    %389 = arith.divf %387, %388 : vector<8x128xf32>
    %390 = arith.select %8, %384, %389 : vector<8x128xi1>, vector<8x128xf32>
    %391 = vector.extract_strided_slice %390 {offsets = [0, 0], sizes = [8, 32], strides = [1, 1]} : vector<8x128xf32> to vector<8x32xf32>
    %392 = vector.extract_strided_slice %390 {offsets = [0, 32], sizes = [8, 32], strides = [1, 1]} : vector<8x128xf32> to vector<8x32xf32>
    %393 = vector.extract_strided_slice %390 {offsets = [0, 64], sizes = [8, 32], strides = [1, 1]} : vector<8x128xf32> to vector<8x32xf32>
    %394 = vector.extract_strided_slice %390 {offsets = [0, 96], sizes = [8, 32], strides = [1, 1]} : vector<8x128xf32> to vector<8x32xf32>
    %395 = arith.mulf %392, %375 : vector<8x32xf32>
    %396 = arith.mulf %391, %393 : vector<8x32xf32>
    %397 = arith.addf %395, %396 : vector<8x32xf32>
    %398 = math.tanh %397 : vector<8x32xf32>
    %399 = arith.mulf %394, %398 : vector<8x32xf32>
    %c8_i32_110 = arith.constant 8 : i32
    %c1_111 = arith.constant 1 : index
    %c0_112 = arith.constant 0 : index
    %c0_113 = arith.constant 0 : index
    %400 = vector.load %arg11[%c1_111, %c0_112, %c0_113] : memref<2x8x32xf32, #tpu.memory_space<vmem>>, vector<1x8x32xf32>
    %401 = vector.shape_cast %400 : vector<1x8x32xf32> to vector<8x32xf32>
    %402 = vector.shape_cast %399 : vector<8x32xf32> to vector<1x8x32xf32>
    tpu.vector_store %arg11[%c1_111, %c0_112, %c0_113], %402 {strides = array<i32>} : memref<2x8x32xf32, #tpu.memory_space<vmem>>, vector<1x8x32xf32>,
    %c1_114 = arith.constant 1 : index
    %c0_115 = arith.constant 0 : index
    %c0_116 = arith.constant 0 : index
    %403 = vector.load %arg12[%c1_114, %c0_115, %c0_116] : memref<2x8x32xf32, #tpu.memory_space<vmem>>, vector<1x8x32xf32>
    %404 = vector.shape_cast %403 : vector<1x8x32xf32> to vector<8x32xf32>
    %405 = vector.shape_cast %397 : vector<8x32xf32> to vector<1x8x32xf32>
    tpu.vector_store %arg12[%c1_114, %c0_115, %c0_116], %405 {strides = array<i32>} : memref<2x8x32xf32, #tpu.memory_space<vmem>>, vector<1x8x32xf32>,
    %c0_i32_117 = arith.constant 0 : i32
    %406 = arith.cmpi eq, %arg0, %c0_i32_117 : i32
    %407 = arith.extui %406 : i1 to i32
    %c0_i32_118 = arith.constant 0 : i32
    %408 = arith.cmpi ne, %407, %c0_i32_118 : i32
    scf.if %408 {
      %c1_119 = arith.constant 1 : index
      %c0_120 = arith.constant 0 : index
      %c0_121 = arith.constant 0 : index
      %409 = vector.load %arg11[%c1_119, %c0_120, %c0_121] : memref<2x8x32xf32, #tpu.memory_space<vmem>>, vector<1x8x32xf32>
      %410 = vector.shape_cast %409 : vector<1x8x32xf32> to vector<8x32xf32>
      %c0_122 = arith.constant 0 : index
      %c0_123 = arith.constant 0 : index
      %411 = vector.load %arg6[%c0_122, %c0_123] : memref<32x1xf32, #tpu.memory_space<vmem>>, vector<32x1xf32>
      %cst_124 = arith.constant dense<0.000000e+00> : vector<8x1xf32>
      %412 = tpu.matmul %410, %411, %cst_124 {dimension_numbers = #tpu.dot_dimension_numbers<[1], [0], [0], [1], [0, 0, 1, 1], [], []>} : vector<8x32xf32>, vector<32x1xf32>, vector<8x1xf32> -> vector<8x1xf32>
      %c0_125 = arith.constant 0 : index
      %c0_126 = arith.constant 0 : index
      %413 = vector.load %arg7[%c0_125, %c0_126] : memref<1x1xf32, #tpu.memory_space<vmem>>, vector<1x1xf32>
      %414 = vector.broadcast %413 : vector<1x1xf32> to vector<8x1xf32>
      %415 = arith.addf %412, %414 : vector<8x1xf32>
      %c0_127 = arith.constant 0 : index
      %c0_128 = arith.constant 0 : index
      %416 = vector.load %arg8[%c0_127, %c0_128] : memref<8x1xf32, #tpu.memory_space<vmem>>, vector<8x1xf32>
      tpu.vector_store %arg8[%c0_127, %c0_128], %415 {strides = array<i32>} : memref<8x1xf32, #tpu.memory_space<vmem>>, vector<8x1xf32>,
    } else {
    }
    return
  }
  func.func @transform_0(%arg0: i32) -> (i32, i32) {
    %c0_i32 = arith.constant 0 : i32
    %c0_i32_0 = arith.constant 0 : i32
    return %arg0, %c0_i32 : i32, i32
  }
  func.func @transform_1(%arg0: i32) -> (i32, i32) {
    %c0_i32 = arith.constant 0 : i32
    %c0_i32_0 = arith.constant 0 : i32
    %c0_i32_1 = arith.constant 0 : i32
    return %c0_i32, %c0_i32_0 : i32, i32
  }
  func.func @transform_2(%arg0: i32) -> (i32, i32) {
    %c0_i32 = arith.constant 0 : i32
    %c0_i32_0 = arith.constant 0 : i32
    %c0_i32_1 = arith.constant 0 : i32
    return %c0_i32, %c0_i32_0 : i32, i32
  }
  func.func @transform_3(%arg0: i32) -> (i32, i32) {
    %c0_i32 = arith.constant 0 : i32
    %c0_i32_0 = arith.constant 0 : i32
    %c0_i32_1 = arith.constant 0 : i32
    return %c0_i32, %c0_i32_0 : i32, i32
  }
  func.func @transform_4(%arg0: i32) -> (i32, i32) {
    %c0_i32 = arith.constant 0 : i32
    %c0_i32_0 = arith.constant 0 : i32
    %c0_i32_1 = arith.constant 0 : i32
    return %c0_i32, %c0_i32_0 : i32, i32
  }
  func.func @transform_5(%arg0: i32) -> (i32, i32) {
    %c0_i32 = arith.constant 0 : i32
    %c0_i32_0 = arith.constant 0 : i32
    %c0_i32_1 = arith.constant 0 : i32
    return %c0_i32, %c0_i32_0 : i32, i32
  }
  func.func @transform_6(%arg0: i32) -> (i32, i32) {
    %c0_i32 = arith.constant 0 : i32
    %c0_i32_0 = arith.constant 0 : i32
    %c0_i32_1 = arith.constant 0 : i32
    return %c0_i32, %c0_i32_0 : i32, i32
  }
  func.func @transform_7(%arg0: i32) -> (i32, i32) {
    %c0_i32 = arith.constant 0 : i32
    %c0_i32_0 = arith.constant 0 : i32
    %c0_i32_1 = arith.constant 0 : i32
    return %c0_i32, %c0_i32_0 : i32, i32
  }
}

</mosaic_0001>

<llo_original>
// kernel: tpu_custom_call.1
$region0: #{tpu_custom_call.1}
  #allocation0 [shape = 'u32[]', space=smem, size = 0x4, offset = 0x4, fixed_abs, tag = 'smem constant byte address 0x4 - core index']
  #allocation1 [shape = 'u32[144,128]{1,0:T(1,128)}', space=vmem, size = 0x12000, scoped, tag = 'internal scratch']
  #allocation2 [shape = 'f32[64,128]{1,0:T(8,128)}', space=vmem, size = 0x8000, scoped, tag = 'scratch operand']
  #allocation3 [shape = 'f32[64,32]{1,0:T(8,128)}', space=vmem, size = 0x8000, scoped, tag = 'scratch operand']
  #allocation4 [shape = 'f32[2,8,32]{2,1,0:T(8,128)}', space=vmem, size = 0x2000, scoped, tag = 'scratch operand']
  #allocation5 [shape = 'f32[2,8,32]{2,1,0:T(8,128)}', space=vmem, size = 0x2000, scoped, tag = 'scratch operand']
  #allocation6 [shape = 'f32[1,1]{1,0:T(1,128)S(1)}', space=vmem, size = 0x200, scoped, tag = 'scoped memory for tpu_custom_call.1']
  %s0 = inlined_call_operand.hbm [shape: f32[64,128], index: 0, kind: input, shape index: {}]
  %s1 = inlined_call_operand.vmem [shape: f32[32,128], index: 1, kind: input, shape index: {}]
  %s2 = inlined_call_operand.hbm [shape: f32[32,128], index: 2, kind: input, shape index: {}]
  %s3 = inlined_call_operand.hbm [shape: f32[32,128], index: 3, kind: input, shape index: {}]
  %s4 = inlined_call_operand.vmem [shape: f32[1,128], index: 4, kind: input, shape index: {}]
  %s5 = inlined_call_operand.vmem [shape: f32[32,1], index: 5, kind: input, shape index: {}]
  %s6 = inlined_call_operand.<no memory space> [shape: f32[1,1], index: 6, kind: input, shape index: {}]
  %s7 = inlined_call_operand.vmem [shape: f32[8,1], index: 7, kind: output, shape index: {}]
  %s8 = sld [smem:[#allocation0]]
  $region58: #{tpu_custom_call.1} parent=0
    _
  %s10 = ssub.s32 1, %s8
  %s11 = scalar_select 0, %s10, %s8
  %v12 = vstv %s6
  %13 = vst [vmem:[#allocation6] sm:$0x1] %v12
  $region1: #{tpu_custom_call.1} parent=0
    #allocation7 [shape = 'u8[32768]{0}', space=vmem, size = 0x8000, scoped, tag = 'input window, operand 0, single buffered']
    #allocation8 [shape = 's32[1]{0}', space=sflag, size = 0x4, scoped, tag = 'scoped memory for tpu_custom_call.1']
    #allocation9 [shape = 'u8[16384]{0}', space=vmem, size = 0x4000, scoped, tag = 'input window, operand 2, single buffered']
    #allocation10 [shape = 's32[1]{0}', space=sflag, size = 0x4, scoped, tag = 'scoped memory for tpu_custom_call.1']
    #allocation11 [shape = 'u8[16384]{0}', space=vmem, size = 0x4000, scoped, tag = 'input window, operand 3, single buffered']
    %14 = vsyncpa [#allocation8], 0
    %15 = vsyncpa [#allocation10], 0
    // Predicated region
    $region2: #{tpu_custom_call.1} parent=1 // pred_check
      _
    $region3: #{tpu_custom_call.1} parent=1 // pred_check_branch
      %17 = sbr.rel (0) target = $region5
    $region4: #{tpu_custom_call.1} parent=1 // pred_region
      %s19 = ssub.s32 1024, 1024
      %20 = vsyncadd [#allocation8], %s19
      %s21 = sshll.u32 [#allocation7], 4
      %s22 = int_to_ptr.vmem [resolvable:$true] %s21
      %27 = dma.hbm_to_vmem [thread:$0]  %s0, 1024, %s22, [#allocation8], 128, 128, 8
    $region5: #{tpu_custom_call.1} parent=1 // pred_fallthru
      _
    // Predicated region
    $region6: #{tpu_custom_call.1} parent=1 // pred_check
      _
    $region7: #{tpu_custom_call.1} parent=1 // pred_check_branch
      %29 = sbr.rel (0) target = $region9
    $region8: #{tpu_custom_call.1} parent=1 // pred_region
      _
    $region9: #{tpu_custom_call.1} parent=1 // pred_fallthru
      _
    // Predicated region
    $region10: #{tpu_custom_call.1} parent=1 // pred_check
      _
    $region11: #{tpu_custom_call.1} parent=1 // pred_check_branch
      %31 = sbr.rel (0) target = $region13
    $region12: #{tpu_custom_call.1} parent=1 // pred_region
      %s33 = ssub.s32 512, 512
      %34 = vsyncadd [#allocation10], %s33
      %s35 = sshll.u32 [#allocation9], 4
      %s36 = int_to_ptr.vmem [resolvable:$true] %s35
      %41 = dma.hbm_to_vmem [thread:$0]  %s2, 512, %s36, [#allocation10], 128, 128, 8
    $region13: #{tpu_custom_call.1} parent=1 // pred_fallthru
      _
    // Predicated region
    $region14: #{tpu_custom_call.1} parent=1 // pred_check
      _
    $region15: #{tpu_custom_call.1} parent=1 // pred_check_branch
      %43 = sbr.rel (0) target = $region17
    $region16: #{tpu_custom_call.1} parent=1 // pred_region
      %s45 = ssub.s32 512, 512
      %46 = vsyncadd [#allocation10], %s45
      %s47 = sshll.u32 [#allocation11], 4
      %s48 = int_to_ptr.vmem [resolvable:$true] %s47
      %53 = dma.hbm_to_vmem [thread:$0]  %s3, 512, %s48, [#allocation10], 128, 128, 8
    $region17: #{tpu_custom_call.1} parent=1 // pred_fallthru
      _
    // Predicated region
    $region18: #{tpu_custom_call.1} parent=1 // pred_check
      _
    $region19: #{tpu_custom_call.1} parent=1 // pred_check_branch
      %55 = sbr.rel (0) target = $region21
    $region20: #{tpu_custom_call.1} parent=1 // pred_region
      _
    $region21: #{tpu_custom_call.1} parent=1 // pred_fallthru
      _
    // Predicated region
    $region22: #{tpu_custom_call.1} parent=1 // pred_check
      _
    $region23: #{tpu_custom_call.1} parent=1 // pred_check_branch
      %57 = sbr.rel (0) target = $region25
    $region24: #{tpu_custom_call.1} parent=1 // pred_region
      _
    $region25: #{tpu_custom_call.1} parent=1 // pred_fallthru
      _
    // Predicated region
    $region26: #{tpu_custom_call.1} parent=1 // pred_check
      _
    $region27: #{tpu_custom_call.1} parent=1 // pred_check_branch
      %59 = sbr.rel (0) target = $region29
    $region28: #{tpu_custom_call.1} parent=1 // pred_region
      _
    $region29: #{tpu_custom_call.1} parent=1 // pred_fallthru
      _
    // Predicated region
    $region30: #{tpu_custom_call.1} parent=1 // pred_check
      _
    $region31: #{tpu_custom_call.1} parent=1 // pred_check_branch
      %61 = sbr.rel (0) target = $region33
    $region32: #{tpu_custom_call.1} parent=1 // pred_region
      %62 = dma.done [#allocation8], 1024
    $region33: #{tpu_custom_call.1} parent=1 // pred_fallthru
      _
    // Predicated region
    $region34: #{tpu_custom_call.1} parent=1 // pred_check
      _
    $region35: #{tpu_custom_call.1} parent=1 // pred_check_branch
      %64 = sbr.rel (0) target = $region37
    $region36: #{tpu_custom_call.1} parent=1 // pred_region
      %65 = dma.done [#allocation10], 512
    $region37: #{tpu_custom_call.1} parent=1 // pred_fallthru
      _
    // Predicated region
    $region38: #{tpu_custom_call.1} parent=1 // pred_check
      _
    $region39: #{tpu_custom_call.1} parent=1 // pred_check_branch
      %67 = sbr.rel (0) target = $region41
    $region40: #{tpu_custom_call.1} parent=1 // pred_region
      %68 = dma.done [#allocation10], 512
    $region41: #{tpu_custom_call.1} parent=1 // pred_fallthru
      _
    %p69 = scmp.eq.s32.totalorder 0, 0
    // Predicated region
    $region42: #{tpu_custom_call.1} parent=1 // pred_check
      %p70 = pneg %p69
    $region43: #{tpu_custom_call.1} parent=1 // pred_check_branch
      %72 = sbr.rel (%p70) target = $region45
    $region44: #{tpu_custom_call.1} parent=1 // pred_region
      %vm73 = vcmask 261120
      %74 = vst.msk [vmem:[#allocation4] sm:$0xff] %vm73, 0.0
      %75 = vst.msk [vmem:[#allocation4 + $0x8] sm:$0xff] %vm73, 0.0
      %76 = vst.msk [vmem:[#allocation5] sm:$0xff] %vm73, 0.0
      %77 = vst.msk [vmem:[#allocation5 + $0x8] sm:$0xff] %vm73, 0.0
    $region45: #{tpu_custom_call.1} parent=1 // pred_fallthru
      _
    %v78 = vlaneseq
    %v79 = vand.u32 %v78, 127
    %vm80 = vcmp.ge.s32.totalorder %v79, 64
    %vm81 = vcmp.lt.s32.totalorder %v79, 96
    %vm82 = vmand %vm80, %vm81
    %v83 = vld [vmem:[%s1] sm:$0xff]
    %v84 = vld [vmem:[%s1 + $0x8] sm:$0xff]
    %v85 = vld [vmem:[%s1 + $0x10] sm:$0xff]
    %v86 = vld [vmem:[%s1 + $0x18] sm:$0xff]
    %v87 = vld [vmem:[#allocation4] sm:$0xff]
    %v88 = vld [vmem:[#allocation5] sm:$0xff]
    %v89 = vld [vmem:[#allocation7] sm:$0xff]
    %vm90 = vcmask 261120
    %v92 = vsel %vm90, %v87, 0
    %94 = vmatprep.subr.mxu0 0.0
    %95 = vmatpush1.msra.mxu0 %v83
    %96 = vmatprep.subr.mxu0 0.0
    %97 = vmatpush1.msra.mxu0 %v84
    %98 = vmatprep.subr.mxu0 0.0
    %99 = vmatpush1.msra.mxu0 %v85
    %100 = vmatprep.subr.mxu0 0.0
    %101 = vmatpush1.msra.mxu0 %v86
    %102 = vmatprep.subr.mxu0 0.0
    %103 = vmatpush1.msra.mxu0 0.0
    %104 = vmatprep.subr.mxu0 0.0
    %105 = vmatpush1.msra.mxu0 0.0
    %106 = vmatprep.subr.mxu0 0.0
    %107 = vmatpush1.msra.mxu0 0.0
    %108 = vmatprep.subr.mxu0 0.0
    %109 = vmatpush1.msra.mxu0 0.0
    %110 = vmatprep.subr.mxu0 0.0
    %111 = vmatpush1.msra.mxu0 0.0
    %112 = vmatprep.subr.mxu0 0.0
    %113 = vmatpush1.msra.mxu0 0.0
    %114 = vmatprep.subr.mxu0 0.0
    %115 = vmatpush1.msra.mxu0 0.0
    %116 = vmatprep.subr.mxu0 0.0
    %117 = vmatpush1.msra.mxu0 0.0
    %118 = vmatprep.subr.mxu0 0.0
    %119 = vmatpush1.msra.mxu0 0.0
    %120 = vmatprep.subr.mxu0 0.0
    %121 = vmatpush1.msra.mxu0 0.0
    %122 = vmatprep.subr.mxu0 0.0
    %123 = vmatpush1.msra.mxu0 0.0
    %124 = vmatprep.subr.mxu0 0.0
    %125 = vmatpush1.msra.mxu0 0.0
    %126 = vmatprep.subr.mxu0 0.0
    %127 = vmatpush1.msra.mxu0 0.0
    %128 = vmatprep.subr.mxu0 0.0
    %129 = vmatpush1.msra.mxu0 0.0
    %130 = vmatprep.subr.mxu0 0.0
    %131 = vmatpush1.msra.mxu0 0.0
    %132 = vmatprep.subr.mxu0 0.0
    %133 = vmatpush1.msra.mxu0 0.0
    %134 = vmatprep.subr.mxu0 0.0
    %135 = vmatpush1.msra.mxu0 0.0
    %136 = vmatprep.subr.mxu0 0.0
    %137 = vmatpush1.msra.mxu0 0.0
    %138 = vmatprep.subr.mxu0 0.0
    %139 = vmatpush1.msra.mxu0 0.0
    %140 = vmatprep.subr.mxu0 0.0
    %141 = vmatpush1.msra.mxu0 0.0
    %142 = vmatprep.subr.mxu0 0.0
    %143 = vmatpush1.msra.mxu0 0.0
    %144 = vmatprep.subr.mxu0 0.0
    %145 = vmatpush1.msra.mxu0 0.0
    %146 = vmatprep.subr.mxu0 0.0
    %147 = vmatpush1.msra.mxu0 0.0
    %148 = vmatprep.subr.mxu0 0.0
    %149 = vmatpush1.msra.mxu0 0.0
    %150 = vmatprep.subr.mxu0 0.0
    %151 = vmatpush1.msra.mxu0 0.0
    %152 = vmatprep.subr.mxu0 0.0
    %153 = vmatpush1.msra.mxu0 0.0
    %154 = vmatprep.subr.mxu0 0.0
    %155 = vmatpush1.msra.mxu0 0.0
    %156 = vmatprep.subr.mxu0 0.0
    %157 = vmatpush1.msra.mxu0 0.0
    %158 = vmatprep.mubr.f32.mxu0 0.0
    %159 = vmatmul.mubr.f32.gmra.mrb[0].mxu0 %v92
    %v160 = vpop.f32.mrb[0].mxu0
    %v161 = vadd.f32 0.0, %v160
    %v162 = vpop.f32.mrb[0].mxu0
    %163 = vdwg.mxu0
    %v164 = vadd.f32 %v89, %v161
    %v165 = vtanh.pop %v164
    %v166 = vxor.u32 %v164, 2147483648
    %v167 = vmul.f32 %v166, 1.442695
    %v168 = vpow.pop %v167
    %v169 = vadd.f32 %v168, 1.0
    %v170 = vrcp.pop %v169
    %v171 = vmul.f32 1.0, %v170
    %v172 = vsel %vm82, %v165, %v171
    %174 = vrot.lane.b32.xlu0 %v88, 32
    %v175 = vpop.permute.xlu0 %174
    %v177 = vmul.f32 %v172, %v175
    %179 = vrot.lane.b32.xlu0 %v172, 64
    %v180 = vpop.permute.xlu0 %179
    %v182 = vmul.f32 %v172, %v180
    %184 = vrot.lane.b32.xlu0 %v182, 32
    %v185 = vpop.permute.xlu0 %184
    %v187 = vadd.f32 %v177, %v185
    %v188 = vtanh.pop %v187
    %190 = vrot.lane.b32.xlu0 %v188, 64
    %v191 = vpop.permute.xlu0 %190
    %v193 = vmul.f32 %v172, %v191
    %195 = vrot.lane.b32.xlu0 %v193, 32
    %v196 = vpop.permute.xlu0 %195
    %198 = vst.msk [vmem:[#allocation3] sm:$0xff] %vm90, %v196
    %s199 = scalar_lea.vmem [#allocation7], 8
    %v200 = vld [vmem:[%s199] sm:$0xff]
    %v201 = vsel %vm90, %v196, 0
    %203 = vmatprep.subr.mxu0 0.0
    %204 = vmatpush1.msra.mxu0 %v83
    %205 = vmatprep.subr.mxu0 0.0
    %206 = vmatpush1.msra.mxu0 %v84
    %207 = vmatprep.subr.mxu0 0.0
    %208 = vmatpush1.msra.mxu0 %v85
    %209 = vmatprep.subr.mxu0 0.0
    %210 = vmatpush1.msra.mxu0 %v86
    %211 = vmatprep.subr.mxu0 0.0
    %212 = vmatpush1.msra.mxu0 0.0
    %213 = vmatprep.subr.mxu0 0.0
    %214 = vmatpush1.msra.mxu0 0.0
    %215 = vmatprep.subr.mxu0 0.0
    %216 = vmatpush1.msra.mxu0 0.0
    %217 = vmatprep.subr.mxu0 0.0
    %218 = vmatpush1.msra.mxu0 0.0
    %219 = vmatprep.subr.mxu0 0.0
    %220 = vmatpush1.msra.mxu0 0.0
    %221 = vmatprep.subr.mxu0 0.0
    %222 = vmatpush1.msra.mxu0 0.0
    %223 = vmatprep.subr.mxu0 0.0
    %224 = vmatpush1.msra.mxu0 0.0
    %225 = vmatprep.subr.mxu0 0.0
    %226 = vmatpush1.msra.mxu0 0.0
    %227 = vmatprep.subr.mxu0 0.0
    %228 = vmatpush1.msra.mxu0 0.0
    %229 = vmatprep.subr.mxu0 0.0
    %230 = vmatpush1.msra.mxu0 0.0
    %231 = vmatprep.subr.mxu0 0.0
    %232 = vmatpush1.msra.mxu0 0.0
    %233 = vmatprep.subr.mxu0 0.0
    %234 = vmatpush1.msra.mxu0 0.0
    %235 = vmatprep.subr.mxu0 0.0
    %236 = vmatpush1.msra.mxu0 0.0
    %237 = vmatprep.subr.mxu0 0.0
    %238 = vmatpush1.msra.mxu0 0.0
    %239 = vmatprep.subr.mxu0 0.0
    %240 = vmatpush1.msra.mxu0 0.0
    %241 = vmatprep.subr.mxu0 0.0
    %242 = vmatpush1.msra.mxu0 0.0
    %243 = vmatprep.subr.mxu0 0.0
    %244 = vmatpush1.msra.mxu0 0.0
    %245 = vmatprep.subr.mxu0 0.0
    %246 = vmatpush1.msra.mxu0 0.0
    %247 = vmatprep.subr.mxu0 0.0
    %248 = vmatpush1.msra.mxu0 0.0
    %249 = vmatprep.subr.mxu0 0.0
    %250 = vmatpush1.msra.mxu0 0.0
    %251 = vmatprep.subr.mxu0 0.0
    %252 = vmatpush1.msra.mxu0 0.0
    %253 = vmatprep.subr.mxu0 0.0
    %254 = vmatpush1.msra.mxu0 0.0
    %255 = vmatprep.subr.mxu0 0.0
    %256 = vmatpush1.msra.mxu0 0.0
    %257 = vmatprep.subr.mxu0 0.0
    %258 = vmatpush1.msra.mxu0 0.0
    %259 = vmatprep.subr.mxu0 0.0
    %260 = vmatpush1.msra.mxu0 0.0
    %261 = vmatprep.subr.mxu0 0.0
    %262 = vmatpush1.msra.mxu0 0.0
    %263 = vmatprep.subr.mxu0 0.0
    %264 = vmatpush1.msra.mxu0 0.0
    %265 = vmatprep.subr.mxu0 0.0
    %266 = vmatpush1.msra.mxu0 0.0
    %267 = vmatprep.mubr.f32.mxu0 0.0
    %268 = vmatmul.mubr.f32.gmra.mrb[0].mxu0 %v201
    %v269 = vpop.f32.mrb[0].mxu0
    %v270 = vadd.f32 0.0, %v269
    %v271 = vpop.f32.mrb[0].mxu0
    %272 = vdwg.mxu0
    %v273 = vadd.f32 %v200, %v270
    %v274 = vtanh.pop %v273
    %v275 = vxor.u32 %v273, 2147483648
    %v276 = vmul.f32 %v275, 1.442695
    %v277 = vpow.pop %v276
    %v278 = vadd.f32 %v277, 1.0
    %v279 = vrcp.pop %v278
    %v280 = vmul.f32 1.0, %v279
    %v281 = vsel %vm82, %v274, %v280
    %v282 = vmul.f32 %v281, %v187
    %284 = vrot.lane.b32.xlu0 %v281, 64
    %v285 = vpop.permute.xlu0 %284
    %v287 = vmul.f32 %v281, %v285
    %289 = vrot.lane.b32.xlu0 %v287, 32
    %v290 = vpop.permute.xlu0 %289
    %v292 = vadd.f32 %v282, %v290
    %v293 = vtanh.pop %v292
    %295 = vrot.lane.b32.xlu0 %v293, 64
    %v296 = vpop.permute.xlu0 %295
    %v298 = vmul.f32 %v281, %v296
    %300 = vrot.lane.b32.xlu0 %v298, 32
    %v301 = vpop.permute.xlu0 %300
    %s303 = scalar_lea.vmem [#allocation3], 8
    %304 = vst.msk [vmem:[%s303] sm:$0xff] %vm90, %v301
    %s305 = scalar_lea.vmem [#allocation7], 16
    %v306 = vld [vmem:[%s305] sm:$0xff]
    %v307 = vsel %vm90, %v301, 0
    %309 = vmatprep.subr.mxu0 0.0
    %310 = vmatpush1.msra.mxu0 %v83
    %311 = vmatprep.subr.mxu0 0.0
    %312 = vmatpush1.msra.mxu0 %v84
    %313 = vmatprep.subr.mxu0 0.0
    %314 = vmatpush1.msra.mxu0 %v85
    %315 = vmatprep.subr.mxu0 0.0
    %316 = vmatpush1.msra.mxu0 %v86
    %317 = vmatprep.subr.mxu0 0.0
    %318 = vmatpush1.msra.mxu0 0.0
    %319 = vmatprep.subr.mxu0 0.0
    %320 = vmatpush1.msra.mxu0 0.0
    %321 = vmatprep.subr.mxu0 0.0
    %322 = vmatpush1.msra.mxu0 0.0
    %323 = vmatprep.subr.mxu0 0.0
    %324 = vmatpush1.msra.mxu0 0.0
    %325 = vmatprep.subr.mxu0 0.0
    %326 = vmatpush1.msra.mxu0 0.0
    %327 = vmatprep.subr.mxu0 0.0
    %328 = vmatpush1.msra.mxu0 0.0
    %329 = vmatprep.subr.mxu0 0.0
    %330 = vmatpush1.msra.mxu0 0.0
    %331 = vmatprep.subr.mxu0 0.0
    %332 = vmatpush1.msra.mxu0 0.0
    %333 = vmatprep.subr.mxu0 0.0
    %334 = vmatpush1.msra.mxu0 0.0
    %335 = vmatprep.subr.mxu0 0.0
    %336 = vmatpush1.msra.mxu0 0.0
    %337 = vmatprep.subr.mxu0 0.0
    %338 = vmatpush1.msra.mxu0 0.0
    %339 = vmatprep.subr.mxu0 0.0
    %340 = vmatpush1.msra.mxu0 0.0
    %341 = vmatprep.subr.mxu0 0.0
    %342 = vmatpush1.msra.mxu0 0.0
    %343 = vmatprep.subr.mxu0 0.0
    %344 = vmatpush1.msra.mxu0 0.0
    %345 = vmatprep.subr.mxu0 0.0
    %346 = vmatpush1.msra.mxu0 0.0
    %347 = vmatprep.subr.mxu0 0.0
    %348 = vmatpush1.msra.mxu0 0.0
    %349 = vmatprep.subr.mxu0 0.0
    %350 = vmatpush1.msra.mxu0 0.0
    %351 = vmatprep.subr.mxu0 0.0
    %352 = vmatpush1.msra.mxu0 0.0
    %353 = vmatprep.subr.mxu0 0.0
    %354 = vmatpush1.msra.mxu0 0.0
    %355 = vmatprep.subr.mxu0 0.0
    %356 = vmatpush1.msra.mxu0 0.0
    %357 = vmatprep.subr.mxu0 0.0
    %358 = vmatpush1.msra.mxu0 0.0
    %359 = vmatprep.subr.mxu0 0.0
    %360 = vmatpush1.msra.mxu0 0.0
    %361 = vmatprep.subr.mxu0 0.0
    %362 = vmatpush1.msra.mxu0 0.0
    %363 = vmatprep.subr.mxu0 0.0
    %364 = vmatpush1.msra.mxu0 0.0
    %365 = vmatprep.subr.mxu0 0.0
    %366 = vmatpush1.msra.mxu0 0.0
    %367 = vmatprep.subr.mxu0 0.0
    %368 = vmatpush1.msra.mxu0 0.0
    %369 = vmatprep.subr.mxu0 0.0
    %370 = vmatpush1.msra.mxu0 0.0
    %371 = vmatprep.subr.mxu0 0.0
    %372 = vmatpush1.msra.mxu0 0.0
    %373 = vmatprep.mubr.f32.mxu0 0.0
    %374 = vmatmul.mubr.f32.gmra.mrb[0].mxu0 %v307
    %v375 = vpop.f32.mrb[0].mxu0
    %v376 = vadd.f32 0.0, %v375
    %v377 = vpop.f32.mrb[0].mxu0
    %378 = vdwg.mxu0
    %v379 = vadd.f32 %v306, %v376
    %v380 = vtanh.pop %v379
    %v381 = vxor.u32 %v379, 2147483648
    %v382 = vmul.f32 %v381, 1.442695
    %v383 = vpow.pop %v382
    %v384 = vadd.f32 %v383, 1.0
    %v385 = vrcp.pop %v384
    %v386 = vmul.f32 1.0, %v385
    %v387 = vsel %vm82, %v380, %v386
    %v388 = vmul.f32 %v387, %v292
    %390 = vrot.lane.b32.xlu0 %v387, 64
    %v391 = vpop.permute.xlu0 %390
    %v393 = vmul.f32 %v387, %v391
    %395 = vrot.lane.b32.xlu0 %v393, 32
    %v396 = vpop.permute.xlu0 %395
    %v398 = vadd.f32 %v388, %v396
    %v399 = vtanh.pop %v398
    %401 = vrot.lane.b32.xlu0 %v399, 64
    %v402 = vpop.permute.xlu0 %401
    %v404 = vmul.f32 %v387, %v402
    %406 = vrot.lane.b32.xlu0 %v404, 32
    %v407 = vpop.permute.xlu0 %406
    %s409 = scalar_lea.vmem [#allocation3], 16
    %410 = vst.msk [vmem:[%s409] sm:$0xff] %vm90, %v407
    %s411 = scalar_lea.vmem [#allocation7], 24
    %v412 = vld [vmem:[%s411] sm:$0xff]
    %v413 = vsel %vm90, %v407, 0
    %415 = vmatprep.subr.mxu0 0.0
    %416 = vmatpush1.msra.mxu0 %v83
    %417 = vmatprep.subr.mxu0 0.0
    %418 = vmatpush1.msra.mxu0 %v84
    %419 = vmatprep.subr.mxu0 0.0
    %420 = vmatpush1.msra.mxu0 %v85
    %421 = vmatprep.subr.mxu0 0.0
    %422 = vmatpush1.msra.mxu0 %v86
    %423 = vmatprep.subr.mxu0 0.0
    %424 = vmatpush1.msra.mxu0 0.0
    %425 = vmatprep.subr.mxu0 0.0
    %426 = vmatpush1.msra.mxu0 0.0
    %427 = vmatprep.subr.mxu0 0.0
    %428 = vmatpush1.msra.mxu0 0.0
    %429 = vmatprep.subr.mxu0 0.0
    %430 = vmatpush1.msra.mxu0 0.0
    %431 = vmatprep.subr.mxu0 0.0
    %432 = vmatpush1.msra.mxu0 0.0
    %433 = vmatprep.subr.mxu0 0.0
    %434 = vmatpush1.msra.mxu0 0.0
    %435 = vmatprep.subr.mxu0 0.0
    %436 = vmatpush1.msra.mxu0 0.0
    %437 = vmatprep.subr.mxu0 0.0
    %438 = vmatpush1.msra.mxu0 0.0
    %439 = vmatprep.subr.mxu0 0.0
    %440 = vmatpush1.msra.mxu0 0.0
    %441 = vmatprep.subr.mxu0 0.0
    %442 = vmatpush1.msra.mxu0 0.0
    %443 = vmatprep.subr.mxu0 0.0
    %444 = vmatpush1.msra.mxu0 0.0
    %445 = vmatprep.subr.mxu0 0.0
    %446 = vmatpush1.msra.mxu0 0.0
    %447 = vmatprep.subr.mxu0 0.0
    %448 = vmatpush1.msra.mxu0 0.0
    %449 = vmatprep.subr.mxu0 0.0
    %450 = vmatpush1.msra.mxu0 0.0
    %451 = vmatprep.subr.mxu0 0.0
    %452 = vmatpush1.msra.mxu0 0.0
    %453 = vmatprep.subr.mxu0 0.0
    %454 = vmatpush1.msra.mxu0 0.0
    %455 = vmatprep.subr.mxu0 0.0
    %456 = vmatpush1.msra.mxu0 0.0
    %457 = vmatprep.subr.mxu0 0.0
    %458 = vmatpush1.msra.mxu0 0.0
    %459 = vmatprep.subr.mxu0 0.0
    %460 = vmatpush1.msra.mxu0 0.0
    %461 = vmatprep.subr.mxu0 0.0
    %462 = vmatpush1.msra.mxu0 0.0
    %463 = vmatprep.subr.mxu0 0.0
    %464 = vmatpush1.msra.mxu0 0.0
    %465 = vmatprep.subr.mxu0 0.0
    %466 = vmatpush1.msra.mxu0 0.0
    %467 = vmatprep.subr.mxu0 0.0
    %468 = vmatpush1.msra.mxu0 0.0
    %469 = vmatprep.subr.mxu0 0.0
    %470 = vmatpush1.msra.mxu0 0.0
    %471 = vmatprep.subr.mxu0 0.0
    %472 = vmatpush1.msra.mxu0 0.0
    %473 = vmatprep.subr.mxu0 0.0
    %474 = vmatpush1.msra.mxu0 0.0
    %475 = vmatprep.subr.mxu0 0.0
    %476 = vmatpush1.msra.mxu0 0.0
    %477 = vmatprep.subr.mxu0 0.0
    %478 = vmatpush1.msra.mxu0 0.0
    %479 = vmatprep.mubr.f32.mxu0 0.0
    %480 = vmatmul.mubr.f32.gmra.mrb[0].mxu0 %v413
    %v481 = vpop.f32.mrb[0].mxu0
    %v482 = vadd.f32 0.0, %v481
    %v483 = vpop.f32.mrb[0].mxu0
    %484 = vdwg.mxu0
    %v485 = vadd.f32 %v412, %v482
    %v486 = vtanh.pop %v485
    %v487 = vxor.u32 %v485, 2147483648
    %v488 = vmul.f32 %v487, 1.442695
    %v489 = vpow.pop %v488
    %v490 = vadd.f32 %v489, 1.0
    %v491 = vrcp.pop %v490
    %v492 = vmul.f32 1.0, %v491
    %v493 = vsel %vm82, %v486, %v492
    %v494 = vmul.f32 %v493, %v398
    %496 = vrot.lane.b32.xlu0 %v493, 64
    %v497 = vpop.permute.xlu0 %496
    %v499 = vmul.f32 %v493, %v497
    %501 = vrot.lane.b32.xlu0 %v499, 32
    %v502 = vpop.permute.xlu0 %501
    %v504 = vadd.f32 %v494, %v502
    %v505 = vtanh.pop %v504
    %507 = vrot.lane.b32.xlu0 %v505, 64
    %v508 = vpop.permute.xlu0 %507
    %v510 = vmul.f32 %v493, %v508
    %512 = vrot.lane.b32.xlu0 %v510, 32
    %v513 = vpop.permute.xlu0 %512
    %s515 = scalar_lea.vmem [#allocation3], 24
    %516 = vst.msk [vmem:[%s515] sm:$0xff] %vm90, %v513
    %s517 = scalar_lea.vmem [#allocation7], 32
    %v518 = vld [vmem:[%s517] sm:$0xff]
    %v519 = vsel %vm90, %v513, 0
    %521 = vmatprep.subr.mxu0 0.0
    %522 = vmatpush1.msra.mxu0 %v83
    %523 = vmatprep.subr.mxu0 0.0
    %524 = vmatpush1.msra.mxu0 %v84
    %525 = vmatprep.subr.mxu0 0.0
    %526 = vmatpush1.msra.mxu0 %v85
    %527 = vmatprep.subr.mxu0 0.0
    %528 = vmatpush1.msra.mxu0 %v86
    %529 = vmatprep.subr.mxu0 0.0
    %530 = vmatpush1.msra.mxu0 0.0
    %531 = vmatprep.subr.mxu0 0.0
    %532 = vmatpush1.msra.mxu0 0.0
    %533 = vmatprep.subr.mxu0 0.0
    %534 = vmatpush1.msra.mxu0 0.0
    %535 = vmatprep.subr.mxu0 0.0
    %536 = vmatpush1.msra.mxu0 0.0
    %537 = vmatprep.subr.mxu0 0.0
    %538 = vmatpush1.msra.mxu0 0.0
    %539 = vmatprep.subr.mxu0 0.0
    %540 = vmatpush1.msra.mxu0 0.0
    %541 = vmatprep.subr.mxu0 0.0
    %542 = vmatpush1.msra.mxu0 0.0
    %543 = vmatprep.subr.mxu0 0.0
    %544 = vmatpush1.msra.mxu0 0.0
    %545 = vmatprep.subr.mxu0 0.0
    %546 = vmatpush1.msra.mxu0 0.0
    %547 = vmatprep.subr.mxu0 0.0
    %548 = vmatpush1.msra.mxu0 0.0
    %549 = vmatprep.subr.mxu0 0.0
    %550 = vmatpush1.msra.mxu0 0.0
    %551 = vmatprep.subr.mxu0 0.0
    %552 = vmatpush1.msra.mxu0 0.0
    %553 = vmatprep.subr.mxu0 0.0
    %554 = vmatpush1.msra.mxu0 0.0
    %555 = vmatprep.subr.mxu0 0.0
    %556 = vmatpush1.msra.mxu0 0.0
    %557 = vmatprep.subr.mxu0 0.0
    %558 = vmatpush1.msra.mxu0 0.0
    %559 = vmatprep.subr.mxu0 0.0
    %560 = vmatpush1.msra.mxu0 0.0
    %561 = vmatprep.subr.mxu0 0.0
    %562 = vmatpush1.msra.mxu0 0.0
    %563 = vmatprep.subr.mxu0 0.0
    %564 = vmatpush1.msra.mxu0 0.0
    %565 = vmatprep.subr.mxu0 0.0
    %566 = vmatpush1.msra.mxu0 0.0
    %567 = vmatprep.subr.mxu0 0.0
    %568 = vmatpush1.msra.mxu0 0.0
    %569 = vmatprep.subr.mxu0 0.0
    %570 = vmatpush1.msra.mxu0 0.0
    %571 = vmatprep.subr.mxu0 0.0
    %572 = vmatpush1.msra.mxu0 0.0
    %573 = vmatprep.subr.mxu0 0.0
    %574 = vmatpush1.msra.mxu0 0.0
    %575 = vmatprep.subr.mxu0 0.0
    %576 = vmatpush1.msra.mxu0 0.0
    %577 = vmatprep.subr.mxu0 0.0
    %578 = vmatpush1.msra.mxu0 0.0
    %579 = vmatprep.subr.mxu0 0.0
    %580 = vmatpush1.msra.mxu0 0.0
    %581 = vmatprep.subr.mxu0 0.0
    %582 = vmatpush1.msra.mxu0 0.0
    %583 = vmatprep.subr.mxu0 0.0
    %584 = vmatpush1.msra.mxu0 0.0
    %585 = vmatprep.mubr.f32.mxu0 0.0
    %586 = vmatmul.mubr.f32.gmra.mrb[0].mxu0 %v519
    %v587 = vpop.f32.mrb[0].mxu0
    %v588 = vadd.f32 0.0, %v587
    %v589 = vpop.f32.mrb[0].mxu0
    %590 = vdwg.mxu0
    %v591 = vadd.f32 %v518, %v588
    %v592 = vtanh.pop %v591
    %v593 = vxor.u32 %v591, 2147483648
    %v594 = vmul.f32 %v593, 1.442695
    %v595 = vpow.pop %v594
    %v596 = vadd.f32 %v595, 1.0
    %v597 = vrcp.pop %v596
    %v598 = vmul.f32 1.0, %v597
    %v599 = vsel %vm82, %v592, %v598
    %v600 = vmul.f32 %v599, %v504
    %602 = vrot.lane.b32.xlu0 %v599, 64
    %v603 = vpop.permute.xlu0 %602
    %v605 = vmul.f32 %v599, %v603
    %607 = vrot.lane.b32.xlu0 %v605, 32
    %v608 = vpop.permute.xlu0 %607
    %v610 = vadd.f32 %v600, %v608
    %v611 = vtanh.pop %v610
    %613 = vrot.lane.b32.xlu0 %v611, 64
    %v614 = vpop.permute.xlu0 %613
    %v616 = vmul.f32 %v599, %v614
    %618 = vrot.lane.b32.xlu0 %v616, 32
    %v619 = vpop.permute.xlu0 %618
    %s621 = scalar_lea.vmem [#allocation3], 32
    %622 = vst.msk [vmem:[%s621] sm:$0xff] %vm90, %v619
    %s623 = scalar_lea.vmem [#allocation7], 40
    %v624 = vld [vmem:[%s623] sm:$0xff]
    %v625 = vsel %vm90, %v619, 0
    %627 = vmatprep.subr.mxu0 0.0
    %628 = vmatpush1.msra.mxu0 %v83
    %629 = vmatprep.subr.mxu0 0.0
    %630 = vmatpush1.msra.mxu0 %v84
    %631 = vmatprep.subr.mxu0 0.0
    %632 = vmatpush1.msra.mxu0 %v85
    %633 = vmatprep.subr.mxu0 0.0
    %634 = vmatpush1.msra.mxu0 %v86
    %635 = vmatprep.subr.mxu0 0.0
    %636 = vmatpush1.msra.mxu0 0.0
    %637 = vmatprep.subr.mxu0 0.0
    %638 = vmatpush1.msra.mxu0 0.0
    %639 = vmatprep.subr.mxu0 0.0
    %640 = vmatpush1.msra.mxu0 0.0
    %641 = vmatprep.subr.mxu0 0.0
    %642 = vmatpush1.msra.mxu0 0.0
    %643 = vmatprep.subr.mxu0 0.0
    %644 = vmatpush1.msra.mxu0 0.0
    %645 = vmatprep.subr.mxu0 0.0
    %646 = vmatpush1.msra.mxu0 0.0
    %647 = vmatprep.subr.mxu0 0.0
    %648 = vmatpush1.msra.mxu0 0.0
    %649 = vmatprep.subr.mxu0 0.0
    %650 = vmatpush1.msra.mxu0 0.0
    %651 = vmatprep.subr.mxu0 0.0
    %652 = vmatpush1.msra.mxu0 0.0
    %653 = vmatprep.subr.mxu0 0.0
    %654 = vmatpush1.msra.mxu0 0.0
    %655 = vmatprep.subr.mxu0 0.0
    %656 = vmatpush1.msra.mxu0 0.0
    %657 = vmatprep.subr.mxu0 0.0
    %658 = vmatpush1.msra.mxu0 0.0
    %659 = vmatprep.subr.mxu0 0.0
    %660 = vmatpush1.msra.mxu0 0.0
    %661 = vmatprep.subr.mxu0 0.0
    %662 = vmatpush1.msra.mxu0 0.0
    %663 = vmatprep.subr.mxu0 0.0
    %664 = vmatpush1.msra.mxu0 0.0
    %665 = vmatprep.subr.mxu0 0.0
    %666 = vmatpush1.msra.mxu0 0.0
    %667 = vmatprep.subr.mxu0 0.0
    %668 = vmatpush1.msra.mxu0 0.0
    %669 = vmatprep.subr.mxu0 0.0
    %670 = vmatpush1.msra.mxu0 0.0
    %671 = vmatprep.subr.mxu0 0.0
    %672 = vmatpush1.msra.mxu0 0.0
    %673 = vmatprep.subr.mxu0 0.0
    %674 = vmatpush1.msra.mxu0 0.0
    %675 = vmatprep.subr.mxu0 0.0
    %676 = vmatpush1.msra.mxu0 0.0
    %677 = vmatprep.subr.mxu0 0.0
    %678 = vmatpush1.msra.mxu0 0.0
    %679 = vmatprep.subr.mxu0 0.0
    %680 = vmatpush1.msra.mxu0 0.0
    %681 = vmatprep.subr.mxu0 0.0
    %682 = vmatpush1.msra.mxu0 0.0
    %683 = vmatprep.subr.mxu0 0.0
    %684 = vmatpush1.msra.mxu0 0.0
    %685 = vmatprep.subr.mxu0 0.0
    %686 = vmatpush1.msra.mxu0 0.0
    %687 = vmatprep.subr.mxu0 0.0
    %688 = vmatpush1.msra.mxu0 0.0
    %689 = vmatprep.subr.mxu0 0.0
    %690 = vmatpush1.msra.mxu0 0.0
    %691 = vmatprep.mubr.f32.mxu0 0.0
    %692 = vmatmul.mubr.f32.gmra.mrb[0].mxu0 %v625
    %v693 = vpop.f32.mrb[0].mxu0
    %v694 = vadd.f32 0.0, %v693
    %v695 = vpop.f32.mrb[0].mxu0
    %696 = vdwg.mxu0
    %v697 = vadd.f32 %v624, %v694
    %v698 = vtanh.pop %v697
    %v699 = vxor.u32 %v697, 2147483648
    %v700 = vmul.f32 %v699, 1.442695
    %v701 = vpow.pop %v700
    %v702 = vadd.f32 %v701, 1.0
    %v703 = vrcp.pop %v702
    %v704 = vmul.f32 1.0, %v703
    %v705 = vsel %vm82, %v698, %v704
    %v706 = vmul.f32 %v705, %v610
    %708 = vrot.lane.b32.xlu0 %v705, 64
    %v709 = vpop.permute.xlu0 %708
    %v711 = vmul.f32 %v705, %v709
    %713 = vrot.lane.b32.xlu0 %v711, 32
    %v714 = vpop.permute.xlu0 %713
    %v716 = vadd.f32 %v706, %v714
    %v717 = vtanh.pop %v716
    %719 = vrot.lane.b32.xlu0 %v717, 64
    %v720 = vpop.permute.xlu0 %719
    %v722 = vmul.f32 %v705, %v720
    %724 = vrot.lane.b32.xlu0 %v722, 32
    %v725 = vpop.permute.xlu0 %724
    %s727 = scalar_lea.vmem [#allocation3], 40
    %728 = vst.msk [vmem:[%s727] sm:$0xff] %vm90, %v725
    %s729 = scalar_lea.vmem [#allocation7], 48
    %v730 = vld [vmem:[%s729] sm:$0xff]
    %v731 = vsel %vm90, %v725, 0
    %733 = vmatprep.subr.mxu0 0.0
    %734 = vmatpush1.msra.mxu0 %v83
    %735 = vmatprep.subr.mxu0 0.0
    %736 = vmatpush1.msra.mxu0 %v84
    %737 = vmatprep.subr.mxu0 0.0
    %738 = vmatpush1.msra.mxu0 %v85
    %739 = vmatprep.subr.mxu0 0.0
    %740 = vmatpush1.msra.mxu0 %v86
    %741 = vmatprep.subr.mxu0 0.0
    %742 = vmatpush1.msra.mxu0 0.0
    %743 = vmatprep.subr.mxu0 0.0
    %744 = vmatpush1.msra.mxu0 0.0
    %745 = vmatprep.subr.mxu0 0.0
    %746 = vmatpush1.msra.mxu0 0.0
    %747 = vmatprep.subr.mxu0 0.0
    %748 = vmatpush1.msra.mxu0 0.0
    %749 = vmatprep.subr.mxu0 0.0
    %750 = vmatpush1.msra.mxu0 0.0
    %751 = vmatprep.subr.mxu0 0.0
    %752 = vmatpush1.msra.mxu0 0.0
    %753 = vmatprep.subr.mxu0 0.0
    %754 = vmatpush1.msra.mxu0 0.0
    %755 = vmatprep.subr.mxu0 0.0
    %756 = vmatpush1.msra.mxu0 0.0
    %757 = vmatprep.subr.mxu0 0.0
    %758 = vmatpush1.msra.mxu0 0.0
    %759 = vmatprep.subr.mxu0 0.0
    %760 = vmatpush1.msra.mxu0 0.0
    %761 = vmatprep.subr.mxu0 0.0
    %762 = vmatpush1.msra.mxu0 0.0
    %763 = vmatprep.subr.mxu0 0.0
    %764 = vmatpush1.msra.mxu0 0.0
    %765 = vmatprep.subr.mxu0 0.0
    %766 = vmatpush1.msra.mxu0 0.0
    %767 = vmatprep.subr.mxu0 0.0
    %768 = vmatpush1.msra.mxu0 0.0
    %769 = vmatprep.subr.mxu0 0.0
    %770 = vmatpush1.msra.mxu0 0.0
    %771 = vmatprep.subr.mxu0 0.0
    %772 = vmatpush1.msra.mxu0 0.0
    %773 = vmatprep.subr.mxu0 0.0
    %774 = vmatpush1.msra.mxu0 0.0
    %775 = vmatprep.subr.mxu0 0.0
    %776 = vmatpush1.msra.mxu0 0.0
    %777 = vmatprep.subr.mxu0 0.0
    %778 = vmatpush1.msra.mxu0 0.0
    %779 = vmatprep.subr.mxu0 0.0
    %780 = vmatpush1.msra.mxu0 0.0
    %781 = vmatprep.subr.mxu0 0.0
    %782 = vmatpush1.msra.mxu0 0.0
    %783 = vmatprep.subr.mxu0 0.0
    %784 = vmatpush1.msra.mxu0 0.0
    %785 = vmatprep.subr.mxu0 0.0
    %786 = vmatpush1.msra.mxu0 0.0
    %787 = vmatprep.subr.mxu0 0.0
    %788 = vmatpush1.msra.mxu0 0.0
    %789 = vmatprep.subr.mxu0 0.0
    %790 = vmatpush1.msra.mxu0 0.0
    %791 = vmatprep.subr.mxu0 0.0
    %792 = vmatpush1.msra.mxu0 0.0
    %793 = vmatprep.subr.mxu0 0.0
    %794 = vmatpush1.msra.mxu0 0.0
    %795 = vmatprep.subr.mxu0 0.0
    %796 = vmatpush1.msra.mxu0 0.0
    %797 = vmatprep.mubr.f32.mxu0 0.0
    %798 = vmatmul.mubr.f32.gmra.mrb[0].mxu0 %v731
    %v799 = vpop.f32.mrb[0].mxu0
    %v800 = vadd.f32 0.0, %v799
    %v801 = vpop.f32.mrb[0].mxu0
    %802 = vdwg.mxu0
    %v803 = vadd.f32 %v730, %v800
    %v804 = vtanh.pop %v803
    %v805 = vxor.u32 %v803, 2147483648
    %v806 = vmul.f32 %v805, 1.442695
    %v807 = vpow.pop %v806
    %v808 = vadd.f32 %v807, 1.0
    %v809 = vrcp.pop %v808
    %v810 = vmul.f32 1.0, %v809
    %v811 = vsel %vm82, %v804, %v810
    %v812 = vmul.f32 %v811, %v716
    %814 = vrot.lane.b32.xlu0 %v811, 64
    %v815 = vpop.permute.xlu0 %814
    %v817 = vmul.f32 %v811, %v815
    %819 = vrot.lane.b32.xlu0 %v817, 32
    %v820 = vpop.permute.xlu0 %819
    %v822 = vadd.f32 %v812, %v820
    %v823 = vtanh.pop %v822
    %825 = vrot.lane.b32.xlu0 %v823, 64
    %v826 = vpop.permute.xlu0 %825
    %v828 = vmul.f32 %v811, %v826
    %830 = vrot.lane.b32.xlu0 %v828, 32
    %v831 = vpop.permute.xlu0 %830
    %s833 = scalar_lea.vmem [#allocation3], 48
    %834 = vst.msk [vmem:[%s833] sm:$0xff] %vm90, %v831
    %s835 = scalar_lea.vmem [#allocation7], 56
    %v836 = vld [vmem:[%s835] sm:$0xff]
    %v837 = vsel %vm90, %v831, 0
    %839 = vmatprep.subr.mxu0 0.0
    %840 = vmatpush1.msra.mxu0 %v83
    %841 = vmatprep.subr.mxu0 0.0
    %842 = vmatpush1.msra.mxu0 %v84
    %843 = vmatprep.subr.mxu0 0.0
    %844 = vmatpush1.msra.mxu0 %v85
    %845 = vmatprep.subr.mxu0 0.0
    %846 = vmatpush1.msra.mxu0 %v86
    %847 = vmatprep.subr.mxu0 0.0
    %848 = vmatpush1.msra.mxu0 0.0
    %849 = vmatprep.subr.mxu0 0.0
    %850 = vmatpush1.msra.mxu0 0.0
    %851 = vmatprep.subr.mxu0 0.0
    %852 = vmatpush1.msra.mxu0 0.0
    %853 = vmatprep.subr.mxu0 0.0
    %854 = vmatpush1.msra.mxu0 0.0
    %855 = vmatprep.subr.mxu0 0.0
    %856 = vmatpush1.msra.mxu0 0.0
    %857 = vmatprep.subr.mxu0 0.0
    %858 = vmatpush1.msra.mxu0 0.0
    %859 = vmatprep.subr.mxu0 0.0
    %860 = vmatpush1.msra.mxu0 0.0
    %861 = vmatprep.subr.mxu0 0.0
    %862 = vmatpush1.msra.mxu0 0.0
    %863 = vmatprep.subr.mxu0 0.0
    %864 = vmatpush1.msra.mxu0 0.0
    %865 = vmatprep.subr.mxu0 0.0
    %866 = vmatpush1.msra.mxu0 0.0
    %867 = vmatprep.subr.mxu0 0.0
    %868 = vmatpush1.msra.mxu0 0.0
    %869 = vmatprep.subr.mxu0 0.0
    %870 = vmatpush1.msra.mxu0 0.0
    %871 = vmatprep.subr.mxu0 0.0
    %872 = vmatpush1.msra.mxu0 0.0
    %873 = vmatprep.subr.mxu0 0.0
    %874 = vmatpush1.msra.mxu0 0.0
    %875 = vmatprep.subr.mxu0 0.0
    %876 = vmatpush1.msra.mxu0 0.0
    %877 = vmatprep.subr.mxu0 0.0
    %878 = vmatpush1.msra.mxu0 0.0
    %879 = vmatprep.subr.mxu0 0.0
    %880 = vmatpush1.msra.mxu0 0.0
    %881 = vmatprep.subr.mxu0 0.0
    %882 = vmatpush1.msra.mxu0 0.0
    %883 = vmatprep.subr.mxu0 0.0
    %884 = vmatpush1.msra.mxu0 0.0
    %885 = vmatprep.subr.mxu0 0.0
    %886 = vmatpush1.msra.mxu0 0.0
    %887 = vmatprep.subr.mxu0 0.0
    %888 = vmatpush1.msra.mxu0 0.0
    %889 = vmatprep.subr.mxu0 0.0
    %890 = vmatpush1.msra.mxu0 0.0
    %891 = vmatprep.subr.mxu0 0.0
    %892 = vmatpush1.msra.mxu0 0.0
    %893 = vmatprep.subr.mxu0 0.0
    %894 = vmatpush1.msra.mxu0 0.0
    %895 = vmatprep.subr.mxu0 0.0
    %896 = vmatpush1.msra.mxu0 0.0
    %897 = vmatprep.subr.mxu0 0.0
    %898 = vmatpush1.msra.mxu0 0.0
    %899 = vmatprep.subr.mxu0 0.0
    %900 = vmatpush1.msra.mxu0 0.0
    %901 = vmatprep.subr.mxu0 0.0
    %902 = vmatpush1.msra.mxu0 0.0
    %903 = vmatprep.mubr.f32.mxu0 0.0
    %904 = vmatmul.mubr.f32.gmra.mrb[0].mxu0 %v837
    %v905 = vpop.f32.mrb[0].mxu0
    %v906 = vadd.f32 0.0, %v905
    %v907 = vpop.f32.mrb[0].mxu0
    %908 = vdwg.mxu0
    %v909 = vadd.f32 %v836, %v906
    %v910 = vtanh.pop %v909
    %v911 = vxor.u32 %v909, 2147483648
    %v912 = vmul.f32 %v911, 1.442695
    %v913 = vpow.pop %v912
    %v914 = vadd.f32 %v913, 1.0
    %v915 = vrcp.pop %v914
    %v916 = vmul.f32 1.0, %v915
    %v917 = vsel %vm82, %v910, %v916
    %v918 = vmul.f32 %v917, %v822
    %920 = vrot.lane.b32.xlu0 %v917, 64
    %v921 = vpop.permute.xlu0 %920
    %v923 = vmul.f32 %v917, %v921
    %925 = vrot.lane.b32.xlu0 %v923, 32
    %v926 = vpop.permute.xlu0 %925
    %v928 = vadd.f32 %v918, %v926
    %v929 = vtanh.pop %v928
    %931 = vrot.lane.b32.xlu0 %v929, 64
    %v932 = vpop.permute.xlu0 %931
    %v934 = vmul.f32 %v917, %v932
    %936 = vrot.lane.b32.xlu0 %v934, 32
    %v937 = vpop.permute.xlu0 %936
    %s939 = scalar_lea.vmem [#allocation3], 56
    %940 = vst.msk [vmem:[%s939] sm:$0xff] %vm90, %v937
    %941 = vst.msk [vmem:[#allocation4] sm:$0xff] %vm90, %v937
    %943 = vrot.lane.b32.xlu0 %v928, 96
    %v944 = vpop.permute.xlu0 %943
    %946 = vst.msk [vmem:[#allocation5] sm:$0xff] %vm90, %v944
    %v947 = vld [vmem:[#allocation3] sm:$0xff]
    %v948 = vld [vmem:[#allocation3 + $0x8] sm:$0xff]
    %v949 = vld [vmem:[#allocation3 + $0x10] sm:$0xff]
    %v950 = vld [vmem:[#allocation3 + $0x18] sm:$0xff]
    %v951 = vld [vmem:[#allocation3 + $0x20] sm:$0xff]
    %v952 = vld [vmem:[#allocation3 + $0x28] sm:$0xff]
    %v953 = vld [vmem:[#allocation3 + $0x30] sm:$0xff]
    %v954 = vld [vmem:[#allocation3 + $0x38] sm:$0xff]
    %v955 = vld [vmem:[#allocation9] sm:$0xff]
    %v956 = vld [vmem:[#allocation9 + $0x8] sm:$0xff]
    %v957 = vld [vmem:[#allocation9 + $0x10] sm:$0xff]
    %v958 = vld [vmem:[#allocation9 + $0x18] sm:$0xff]
    %v959 = vld [vmem:[%s4] sm:$0x1]
    %v961 = vlaneseq
    %v962 = vshrl.u32 %v961, 7
    %v963 = vsub.s32 0, %v962
    %v964 = vrot.slane %v959, %v963
    %v967 = vsel %vm90, %v947, 0
    %v970 = vsel %vm90, %v948, 0
    %v973 = vsel %vm90, %v949, 0
    %v976 = vsel %vm90, %v950, 0
    %v979 = vsel %vm90, %v951, 0
    %v982 = vsel %vm90, %v952, 0
    %v985 = vsel %vm90, %v953, 0
    %v988 = vsel %vm90, %v954, 0
    %990 = vmatprep.subr.mxu0 0.0
    %991 = vmatpush1.msra.mxu0 %v955
    %992 = vmatprep.subr.mxu0 0.0
    %993 = vmatpush1.msra.mxu0 %v956
    %994 = vmatprep.subr.mxu0 0.0
    %995 = vmatpush1.msra.mxu0 %v957
    %996 = vmatprep.subr.mxu0 0.0
    %997 = vmatpush1.msra.mxu0 %v958
    %998 = vmatprep.subr.mxu0 0.0
    %999 = vmatpush1.msra.mxu0 0.0
    %1000 = vmatprep.subr.mxu0 0.0
    %1001 = vmatpush1.msra.mxu0 0.0
    %1002 = vmatprep.subr.mxu0 0.0
    %1003 = vmatpush1.msra.mxu0 0.0
    %1004 = vmatprep.subr.mxu0 0.0
    %1005 = vmatpush1.msra.mxu0 0.0
    %1006 = vmatprep.subr.mxu0 0.0
    %1007 = vmatpush1.msra.mxu0 0.0
    %1008 = vmatprep.subr.mxu0 0.0
    %1009 = vmatpush1.msra.mxu0 0.0
    %1010 = vmatprep.subr.mxu0 0.0
    %1011 = vmatpush1.msra.mxu0 0.0
    %1012 = vmatprep.subr.mxu0 0.0
    %1013 = vmatpush1.msra.mxu0 0.0
    %1014 = vmatprep.subr.mxu0 0.0
    %1015 = vmatpush1.msra.mxu0 0.0
    %1016 = vmatprep.subr.mxu0 0.0
    %1017 = vmatpush1.msra.mxu0 0.0
    %1018 = vmatprep.subr.mxu0 0.0
    %1019 = vmatpush1.msra.mxu0 0.0
    %1020 = vmatprep.subr.mxu0 0.0
    %1021 = vmatpush1.msra.mxu0 0.0
    %1022 = vmatprep.subr.mxu0 0.0
    %1023 = vmatpush1.msra.mxu0 0.0
    %1024 = vmatprep.subr.mxu0 0.0
    %1025 = vmatpush1.msra.mxu0 0.0
    %1026 = vmatprep.subr.mxu0 0.0
    %1027 = vmatpush1.msra.mxu0 0.0
    %1028 = vmatprep.subr.mxu0 0.0
    %1029 = vmatpush1.msra.mxu0 0.0
    %1030 = vmatprep.subr.mxu0 0.0
    %1031 = vmatpush1.msra.mxu0 0.0
    %1032 = vmatprep.subr.mxu0 0.0
    %1033 = vmatpush1.msra.mxu0 0.0
    %1034 = vmatprep.subr.mxu0 0.0
    %1035 = vmatpush1.msra.mxu0 0.0
    %1036 = vmatprep.subr.mxu0 0.0
    %1037 = vmatpush1.msra.mxu0 0.0
    %1038 = vmatprep.subr.mxu0 0.0
    %1039 = vmatpush1.msra.mxu0 0.0
    %1040 = vmatprep.subr.mxu0 0.0
    %1041 = vmatpush1.msra.mxu0 0.0
    %1042 = vmatprep.subr.mxu0 0.0
    %1043 = vmatpush1.msra.mxu0 0.0
    %1044 = vmatprep.subr.mxu0 0.0
    %1045 = vmatpush1.msra.mxu0 0.0
    %1046 = vmatprep.subr.mxu0 0.0
    %1047 = vmatpush1.msra.mxu0 0.0
    %1048 = vmatprep.subr.mxu0 0.0
    %1049 = vmatpush1.msra.mxu0 0.0
    %1050 = vmatprep.subr.mxu0 0.0
    %1051 = vmatpush1.msra.mxu0 0.0
    %1052 = vmatprep.subr.mxu0 0.0
    %1053 = vmatpush1.msra.mxu0 0.0
    %1054 = vmatprep.mubr.f32.mxu0 0.0
    %1055 = vmatmul.mubr.f32.gmra.mrb[0].mxu0 %v967
    %v1056 = vpop.f32.mrb[0].mxu0
    %v1057 = vadd.f32 %v964, %v1056
    %v1058 = vpop.f32.mrb[0].mxu0
    %1059 = vmatprep.mubr.f32.mxu0 0.0
    %1060 = vmatmul.mubr.f32.gmra.mrb[0].mxu0 %v970
    %v1061 = vpop.f32.mrb[0].mxu0
    %v1062 = vadd.f32 %v964, %v1061
    %v1063 = vpop.f32.mrb[0].mxu0
    %1064 = vmatprep.mubr.f32.mxu0 0.0
    %1065 = vmatmul.mubr.f32.gmra.mrb[0].mxu0 %v973
    %v1066 = vpop.f32.mrb[0].mxu0
    %v1067 = vadd.f32 %v964, %v1066
    %v1068 = vpop.f32.mrb[0].mxu0
    %1069 = vmatprep.mubr.f32.mxu0 0.0
    %1070 = vmatmul.mubr.f32.gmra.mrb[0].mxu0 %v976
    %v1071 = vpop.f32.mrb[0].mxu0
    %v1072 = vadd.f32 %v964, %v1071
    %v1073 = vpop.f32.mrb[0].mxu0
    %1074 = vmatprep.mubr.f32.mxu0 0.0
    %1075 = vmatmul.mubr.f32.gmra.mrb[0].mxu0 %v979
    %v1076 = vpop.f32.mrb[0].mxu0
    %v1077 = vadd.f32 %v964, %v1076
    %v1078 = vpop.f32.mrb[0].mxu0
    %1079 = vmatprep.mubr.f32.mxu0 0.0
    %1080 = vmatmul.mubr.f32.gmra.mrb[0].mxu0 %v982
    %v1081 = vpop.f32.mrb[0].mxu0
    %v1082 = vadd.f32 %v964, %v1081
    %v1083 = vpop.f32.mrb[0].mxu0
    %1084 = vmatprep.mubr.f32.mxu0 0.0
    %1085 = vmatmul.mubr.f32.gmra.mrb[0].mxu0 %v985
    %v1086 = vpop.f32.mrb[0].mxu0
    %v1087 = vadd.f32 %v964, %v1086
    %v1088 = vpop.f32.mrb[0].mxu0
    %1089 = vmatprep.mubr.f32.mxu0 0.0
    %1090 = vmatmul.mubr.f32.gmra.mrb[0].mxu0 %v988
    %v1091 = vpop.f32.mrb[0].mxu0
    %v1092 = vadd.f32 %v964, %v1091
    %v1093 = vpop.f32.mrb[0].mxu0
    %1094 = vdwg.mxu0
    %1095 = vst [vmem:[#allocation2] sm:$0xff] %v1057
    %1096 = vst [vmem:[#allocation2 + $0x8] sm:$0xff] %v1062
    %1097 = vst [vmem:[#allocation2 + $0x10] sm:$0xff] %v1067
    %1098 = vst [vmem:[#allocation2 + $0x18] sm:$0xff] %v1072
    %1099 = vst [vmem:[#allocation2 + $0x20] sm:$0xff] %v1077
    %1100 = vst [vmem:[#allocation2 + $0x28] sm:$0xff] %v1082
    %1101 = vst [vmem:[#allocation2 + $0x30] sm:$0xff] %v1087
    %1102 = vst [vmem:[#allocation2 + $0x38] sm:$0xff] %v1092
    %v1103 = vld [vmem:[#allocation11] sm:$0xff]
    %v1104 = vld [vmem:[#allocation11 + $0x8] sm:$0xff]
    %v1105 = vld [vmem:[#allocation11 + $0x10] sm:$0xff]
    %v1106 = vld [vmem:[#allocation11 + $0x18] sm:$0xff]
    %s1107 = scalar_lea.vmem [#allocation4], 8
    %v1108 = vld [vmem:[%s1107] sm:$0xff]
    %s1109 = scalar_lea.vmem [#allocation5], 8
    %v1110 = vld [vmem:[%s1109] sm:$0xff]
    %v1111 = vld [vmem:[#allocation2] sm:$0xff]
    %v1113 = vsel %vm90, %v1108, 0
    %1115 = vmatprep.subr.mxu0 0.0
    %1116 = vmatpush1.msra.mxu0 %v1103
    %1117 = vmatprep.subr.mxu0 0.0
    %1118 = vmatpush1.msra.mxu0 %v1104
    %1119 = vmatprep.subr.mxu0 0.0
    %1120 = vmatpush1.msra.mxu0 %v1105
    %1121 = vmatprep.subr.mxu0 0.0
    %1122 = vmatpush1.msra.mxu0 %v1106
    %1123 = vmatprep.subr.mxu0 0.0
    %1124 = vmatpush1.msra.mxu0 0.0
    %1125 = vmatprep.subr.mxu0 0.0
    %1126 = vmatpush1.msra.mxu0 0.0
    %1127 = vmatprep.subr.mxu0 0.0
    %1128 = vmatpush1.msra.mxu0 0.0
    %1129 = vmatprep.subr.mxu0 0.0
    %1130 = vmatpush1.msra.mxu0 0.0
    %1131 = vmatprep.subr.mxu0 0.0
    %1132 = vmatpush1.msra.mxu0 0.0
    %1133 = vmatprep.subr.mxu0 0.0
    %1134 = vmatpush1.msra.mxu0 0.0
    %1135 = vmatprep.subr.mxu0 0.0
    %1136 = vmatpush1.msra.mxu0 0.0
    %1137 = vmatprep.subr.mxu0 0.0
    %1138 = vmatpush1.msra.mxu0 0.0
    %1139 = vmatprep.subr.mxu0 0.0
    %1140 = vmatpush1.msra.mxu0 0.0
    %1141 = vmatprep.subr.mxu0 0.0
    %1142 = vmatpush1.msra.mxu0 0.0
    %1143 = vmatprep.subr.mxu0 0.0
    %1144 = vmatpush1.msra.mxu0 0.0
    %1145 = vmatprep.subr.mxu0 0.0
    %1146 = vmatpush1.msra.mxu0 0.0
    %1147 = vmatprep.subr.mxu0 0.0
    %1148 = vmatpush1.msra.mxu0 0.0
    %1149 = vmatprep.subr.mxu0 0.0
    %1150 = vmatpush1.msra.mxu0 0.0
    %1151 = vmatprep.subr.mxu0 0.0
    %1152 = vmatpush1.msra.mxu0 0.0
    %1153 = vmatprep.subr.mxu0 0.0
    %1154 = vmatpush1.msra.mxu0 0.0
    %1155 = vmatprep.subr.mxu0 0.0
    %1156 = vmatpush1.msra.mxu0 0.0
    %1157 = vmatprep.subr.mxu0 0.0
    %1158 = vmatpush1.msra.mxu0 0.0
    %1159 = vmatprep.subr.mxu0 0.0
    %1160 = vmatpush1.msra.mxu0 0.0
    %1161 = vmatprep.subr.mxu0 0.0
    %1162 = vmatpush1.msra.mxu0 0.0
    %1163 = vmatprep.subr.mxu0 0.0
    %1164 = vmatpush1.msra.mxu0 0.0
    %1165 = vmatprep.subr.mxu0 0.0
    %1166 = vmatpush1.msra.mxu0 0.0
    %1167 = vmatprep.subr.mxu0 0.0
    %1168 = vmatpush1.msra.mxu0 0.0
    %1169 = vmatprep.subr.mxu0 0.0
    %1170 = vmatpush1.msra.mxu0 0.0
    %1171 = vmatprep.subr.mxu0 0.0
    %1172 = vmatpush1.msra.mxu0 0.0
    %1173 = vmatprep.subr.mxu0 0.0
    %1174 = vmatpush1.msra.mxu0 0.0
    %1175 = vmatprep.subr.mxu0 0.0
    %1176 = vmatpush1.msra.mxu0 0.0
    %1177 = vmatprep.subr.mxu0 0.0
    %1178 = vmatpush1.msra.mxu0 0.0
    %1179 = vmatprep.mubr.f32.mxu0 0.0
    %1180 = vmatmul.mubr.f32.gmra.mrb[0].mxu0 %v1113
    %v1181 = vpop.f32.mrb[0].mxu0
    %v1182 = vadd.f32 0.0, %v1181
    %v1183 = vpop.f32.mrb[0].mxu0
    %1184 = vdwg.mxu0
    %v1185 = vadd.f32 %v1111, %v1182
    %v1186 = vtanh.pop %v1185
    %v1187 = vxor.u32 %v1185, 2147483648
    %v1188 = vmul.f32 %v1187, 1.442695
    %v1189 = vpow.pop %v1188
    %v1190 = vadd.f32 %v1189, 1.0
    %v1191 = vrcp.pop %v1190
    %v1192 = vmul.f32 1.0, %v1191
    %v1193 = vsel %vm82, %v1186, %v1192
    %1195 = vrot.lane.b32.xlu0 %v1110, 32
    %v1196 = vpop.permute.xlu0 %1195
    %v1198 = vmul.f32 %v1193, %v1196
    %1200 = vrot.lane.b32.xlu0 %v1193, 64
    %v1201 = vpop.permute.xlu0 %1200
    %v1203 = vmul.f32 %v1193, %v1201
    %1205 = vrot.lane.b32.xlu0 %v1203, 32
    %v1206 = vpop.permute.xlu0 %1205
    %v1208 = vadd.f32 %v1198, %v1206
    %v1209 = vtanh.pop %v1208
    %1211 = vrot.lane.b32.xlu0 %v1209, 64
    %v1212 = vpop.permute.xlu0 %1211
    %v1214 = vmul.f32 %v1193, %v1212
    %s1215 = scalar_lea.vmem [#allocation2], 8
    %v1216 = vld [vmem:[%s1215] sm:$0xff]
    %1218 = vrot.lane.b32.xlu0 %v1214, 32
    %v1219 = vpop.permute.xlu0 %1218
    %v1220 = vsel %vm90, %v1219, 0
    %1222 = vmatprep.subr.mxu0 0.0
    %1223 = vmatpush1.msra.mxu0 %v1103
    %1224 = vmatprep.subr.mxu0 0.0
    %1225 = vmatpush1.msra.mxu0 %v1104
    %1226 = vmatprep.subr.mxu0 0.0
    %1227 = vmatpush1.msra.mxu0 %v1105
    %1228 = vmatprep.subr.mxu0 0.0
    %1229 = vmatpush1.msra.mxu0 %v1106
    %1230 = vmatprep.subr.mxu0 0.0
    %1231 = vmatpush1.msra.mxu0 0.0
    %1232 = vmatprep.subr.mxu0 0.0
    %1233 = vmatpush1.msra.mxu0 0.0
    %1234 = vmatprep.subr.mxu0 0.0
    %1235 = vmatpush1.msra.mxu0 0.0
    %1236 = vmatprep.subr.mxu0 0.0
    %1237 = vmatpush1.msra.mxu0 0.0
    %1238 = vmatprep.subr.mxu0 0.0
    %1239 = vmatpush1.msra.mxu0 0.0
    %1240 = vmatprep.subr.mxu0 0.0
    %1241 = vmatpush1.msra.mxu0 0.0
    %1242 = vmatprep.subr.mxu0 0.0
    %1243 = vmatpush1.msra.mxu0 0.0
    %1244 = vmatprep.subr.mxu0 0.0
    %1245 = vmatpush1.msra.mxu0 0.0
    %1246 = vmatprep.subr.mxu0 0.0
    %1247 = vmatpush1.msra.mxu0 0.0
    %1248 = vmatprep.subr.mxu0 0.0
    %1249 = vmatpush1.msra.mxu0 0.0
    %1250 = vmatprep.subr.mxu0 0.0
    %1251 = vmatpush1.msra.mxu0 0.0
    %1252 = vmatprep.subr.mxu0 0.0
    %1253 = vmatpush1.msra.mxu0 0.0
    %1254 = vmatprep.subr.mxu0 0.0
    %1255 = vmatpush1.msra.mxu0 0.0
    %1256 = vmatprep.subr.mxu0 0.0
    %1257 = vmatpush1.msra.mxu0 0.0
    %1258 = vmatprep.subr.mxu0 0.0
    %1259 = vmatpush1.msra.mxu0 0.0
    %1260 = vmatprep.subr.mxu0 0.0
    %1261 = vmatpush1.msra.mxu0 0.0
    %1262 = vmatprep.subr.mxu0 0.0
    %1263 = vmatpush1.msra.mxu0 0.0
    %1264 = vmatprep.subr.mxu0 0.0
    %1265 = vmatpush1.msra.mxu0 0.0
    %1266 = vmatprep.subr.mxu0 0.0
    %1267 = vmatpush1.msra.mxu0 0.0
    %1268 = vmatprep.subr.mxu0 0.0
    %1269 = vmatpush1.msra.mxu0 0.0
    %1270 = vmatprep.subr.mxu0 0.0
    %1271 = vmatpush1.msra.mxu0 0.0
    %1272 = vmatprep.subr.mxu0 0.0
    %1273 = vmatpush1.msra.mxu0 0.0
    %1274 = vmatprep.subr.mxu0 0.0
    %1275 = vmatpush1.msra.mxu0 0.0
    %1276 = vmatprep.subr.mxu0 0.0
    %1277 = vmatpush1.msra.mxu0 0.0
    %1278 = vmatprep.subr.mxu0 0.0
    %1279 = vmatpush1.msra.mxu0 0.0
    %1280 = vmatprep.subr.mxu0 0.0
    %1281 = vmatpush1.msra.mxu0 0.0
    %1282 = vmatprep.subr.mxu0 0.0
    %1283 = vmatpush1.msra.mxu0 0.0
    %1284 = vmatprep.subr.mxu0 0.0
    %1285 = vmatpush1.msra.mxu0 0.0
    %1286 = vmatprep.mubr.f32.mxu0 0.0
    %1287 = vmatmul.mubr.f32.gmra.mrb[0].mxu0 %v1220
    %v1288 = vpop.f32.mrb[0].mxu0
    %v1289 = vadd.f32 0.0, %v1288
    %v1290 = vpop.f32.mrb[0].mxu0
    %1291 = vdwg.mxu0
    %v1292 = vadd.f32 %v1216, %v1289
    %v1293 = vtanh.pop %v1292
    %v1294 = vxor.u32 %v1292, 2147483648
    %v1295 = vmul.f32 %v1294, 1.442695
    %v1296 = vpow.pop %v1295
    %v1297 = vadd.f32 %v1296, 1.0
    %v1298 = vrcp.pop %v1297
    %v1299 = vmul.f32 1.0, %v1298
    %v1300 = vsel %vm82, %v1293, %v1299
    %v1301 = vmul.f32 %v1300, %v1208
    %1303 = vrot.lane.b32.xlu0 %v1300, 64
    %v1304 = vpop.permute.xlu0 %1303
    %v1306 = vmul.f32 %v1300, %v1304
    %1308 = vrot.lane.b32.xlu0 %v1306, 32
    %v1309 = vpop.permute.xlu0 %1308
    %v1311 = vadd.f32 %v1301, %v1309
    %v1312 = vtanh.pop %v1311
    %1314 = vrot.lane.b32.xlu0 %v1312, 64
    %v1315 = vpop.permute.xlu0 %1314
    %v1317 = vmul.f32 %v1300, %v1315
    %s1318 = scalar_lea.vmem [#allocation2], 16
    %v1319 = vld [vmem:[%s1318] sm:$0xff]
    %1321 = vrot.lane.b32.xlu0 %v1317, 32
    %v1322 = vpop.permute.xlu0 %1321
    %v1323 = vsel %vm90, %v1322, 0
    %1325 = vmatprep.subr.mxu0 0.0
    %1326 = vmatpush1.msra.mxu0 %v1103
    %1327 = vmatprep.subr.mxu0 0.0
    %1328 = vmatpush1.msra.mxu0 %v1104
    %1329 = vmatprep.subr.mxu0 0.0
    %1330 = vmatpush1.msra.mxu0 %v1105
    %1331 = vmatprep.subr.mxu0 0.0
    %1332 = vmatpush1.msra.mxu0 %v1106
    %1333 = vmatprep.subr.mxu0 0.0
    %1334 = vmatpush1.msra.mxu0 0.0
    %1335 = vmatprep.subr.mxu0 0.0
    %1336 = vmatpush1.msra.mxu0 0.0
    %1337 = vmatprep.subr.mxu0 0.0
    %1338 = vmatpush1.msra.mxu0 0.0
    %1339 = vmatprep.subr.mxu0 0.0
    %1340 = vmatpush1.msra.mxu0 0.0
    %1341 = vmatprep.subr.mxu0 0.0
    %1342 = vmatpush1.msra.mxu0 0.0
    %1343 = vmatprep.subr.mxu0 0.0
    %1344 = vmatpush1.msra.mxu0 0.0
    %1345 = vmatprep.subr.mxu0 0.0
    %1346 = vmatpush1.msra.mxu0 0.0
    %1347 = vmatprep.subr.mxu0 0.0
    %1348 = vmatpush1.msra.mxu0 0.0
    %1349 = vmatprep.subr.mxu0 0.0
    %1350 = vmatpush1.msra.mxu0 0.0
    %1351 = vmatprep.subr.mxu0 0.0
    %1352 = vmatpush1.msra.mxu0 0.0
    %1353 = vmatprep.subr.mxu0 0.0
    %1354 = vmatpush1.msra.mxu0 0.0
    %1355 = vmatprep.subr.mxu0 0.0
    %1356 = vmatpush1.msra.mxu0 0.0
    %1357 = vmatprep.subr.mxu0 0.0
    %1358 = vmatpush1.msra.mxu0 0.0
    %1359 = vmatprep.subr.mxu0 0.0
    %1360 = vmatpush1.msra.mxu0 0.0
    %1361 = vmatprep.subr.mxu0 0.0
    %1362 = vmatpush1.msra.mxu0 0.0
    %1363 = vmatprep.subr.mxu0 0.0
    %1364 = vmatpush1.msra.mxu0 0.0
    %1365 = vmatprep.subr.mxu0 0.0
    %1366 = vmatpush1.msra.mxu0 0.0
    %1367 = vmatprep.subr.mxu0 0.0
    %1368 = vmatpush1.msra.mxu0 0.0
    %1369 = vmatprep.subr.mxu0 0.0
    %1370 = vmatpush1.msra.mxu0 0.0
    %1371 = vmatprep.subr.mxu0 0.0
    %1372 = vmatpush1.msra.mxu0 0.0
    %1373 = vmatprep.subr.mxu0 0.0
    %1374 = vmatpush1.msra.mxu0 0.0
    %1375 = vmatprep.subr.mxu0 0.0
    %1376 = vmatpush1.msra.mxu0 0.0
    %1377 = vmatprep.subr.mxu0 0.0
    %1378 = vmatpush1.msra.mxu0 0.0
    %1379 = vmatprep.subr.mxu0 0.0
    %1380 = vmatpush1.msra.mxu0 0.0
    %1381 = vmatprep.subr.mxu0 0.0
    %1382 = vmatpush1.msra.mxu0 0.0
    %1383 = vmatprep.subr.mxu0 0.0
    %1384 = vmatpush1.msra.mxu0 0.0
    %1385 = vmatprep.subr.mxu0 0.0
    %1386 = vmatpush1.msra.mxu0 0.0
    %1387 = vmatprep.subr.mxu0 0.0
    %1388 = vmatpush1.msra.mxu0 0.0
    %1389 = vmatprep.mubr.f32.mxu0 0.0
    %1390 = vmatmul.mubr.f32.gmra.mrb[0].mxu0 %v1323
    %v1391 = vpop.f32.mrb[0].mxu0
    %v1392 = vadd.f32 0.0, %v1391
    %v1393 = vpop.f32.mrb[0].mxu0
    %1394 = vdwg.mxu0
    %v1395 = vadd.f32 %v1319, %v1392
    %v1396 = vtanh.pop %v1395
    %v1397 = vxor.u32 %v1395, 2147483648
    %v1398 = vmul.f32 %v1397, 1.442695
    %v1399 = vpow.pop %v1398
    %v1400 = vadd.f32 %v1399, 1.0
    %v1401 = vrcp.pop %v1400
    %v1402 = vmul.f32 1.0, %v1401
    %v1403 = vsel %vm82, %v1396, %v1402
    %v1404 = vmul.f32 %v1403, %v1311
    %1406 = vrot.lane.b32.xlu0 %v1403, 64
    %v1407 = vpop.permute.xlu0 %1406
    %v1409 = vmul.f32 %v1403, %v1407
    %1411 = vrot.lane.b32.xlu0 %v1409, 32
    %v1412 = vpop.permute.xlu0 %1411
    %v1414 = vadd.f32 %v1404, %v1412
    %v1415 = vtanh.pop %v1414
    %1417 = vrot.lane.b32.xlu0 %v1415, 64
    %v1418 = vpop.permute.xlu0 %1417
    %v1420 = vmul.f32 %v1403, %v1418
    %s1421 = scalar_lea.vmem [#allocation2], 24
    %v1422 = vld [vmem:[%s1421] sm:$0xff]
    %1424 = vrot.lane.b32.xlu0 %v1420, 32
    %v1425 = vpop.permute.xlu0 %1424
    %v1426 = vsel %vm90, %v1425, 0
    %1428 = vmatprep.subr.mxu0 0.0
    %1429 = vmatpush1.msra.mxu0 %v1103
    %1430 = vmatprep.subr.mxu0 0.0
    %1431 = vmatpush1.msra.mxu0 %v1104
    %1432 = vmatprep.subr.mxu0 0.0
    %1433 = vmatpush1.msra.mxu0 %v1105
    %1434 = vmatprep.subr.mxu0 0.0
    %1435 = vmatpush1.msra.mxu0 %v1106
    %1436 = vmatprep.subr.mxu0 0.0
    %1437 = vmatpush1.msra.mxu0 0.0
    %1438 = vmatprep.subr.mxu0 0.0
    %1439 = vmatpush1.msra.mxu0 0.0
    %1440 = vmatprep.subr.mxu0 0.0
    %1441 = vmatpush1.msra.mxu0 0.0
    %1442 = vmatprep.subr.mxu0 0.0
    %1443 = vmatpush1.msra.mxu0 0.0
    %1444 = vmatprep.subr.mxu0 0.0
    %1445 = vmatpush1.msra.mxu0 0.0
    %1446 = vmatprep.subr.mxu0 0.0
    %1447 = vmatpush1.msra.mxu0 0.0
    %1448 = vmatprep.subr.mxu0 0.0
    %1449 = vmatpush1.msra.mxu0 0.0
    %1450 = vmatprep.subr.mxu0 0.0
    %1451 = vmatpush1.msra.mxu0 0.0
    %1452 = vmatprep.subr.mxu0 0.0
    %1453 = vmatpush1.msra.mxu0 0.0
    %1454 = vmatprep.subr.mxu0 0.0
    %1455 = vmatpush1.msra.mxu0 0.0
    %1456 = vmatprep.subr.mxu0 0.0
    %1457 = vmatpush1.msra.mxu0 0.0
    %1458 = vmatprep.subr.mxu0 0.0
    %1459 = vmatpush1.msra.mxu0 0.0
    %1460 = vmatprep.subr.mxu0 0.0
    %1461 = vmatpush1.msra.mxu0 0.0
    %1462 = vmatprep.subr.mxu0 0.0
    %1463 = vmatpush1.msra.mxu0 0.0
    %1464 = vmatprep.subr.mxu0 0.0
    %1465 = vmatpush1.msra.mxu0 0.0
    %1466 = vmatprep.subr.mxu0 0.0
    %1467 = vmatpush1.msra.mxu0 0.0
    %1468 = vmatprep.subr.mxu0 0.0
    %1469 = vmatpush1.msra.mxu0 0.0
    %1470 = vmatprep.subr.mxu0 0.0
    %1471 = vmatpush1.msra.mxu0 0.0
    %1472 = vmatprep.subr.mxu0 0.0
    %1473 = vmatpush1.msra.mxu0 0.0
    %1474 = vmatprep.subr.mxu0 0.0
    %1475 = vmatpush1.msra.mxu0 0.0
    %1476 = vmatprep.subr.mxu0 0.0
    %1477 = vmatpush1.msra.mxu0 0.0
    %1478 = vmatprep.subr.mxu0 0.0
    %1479 = vmatpush1.msra.mxu0 0.0
    %1480 = vmatprep.subr.mxu0 0.0
    %1481 = vmatpush1.msra.mxu0 0.0
    %1482 = vmatprep.subr.mxu0 0.0
    %1483 = vmatpush1.msra.mxu0 0.0
    %1484 = vmatprep.subr.mxu0 0.0
    %1485 = vmatpush1.msra.mxu0 0.0
    %1486 = vmatprep.subr.mxu0 0.0
    %1487 = vmatpush1.msra.mxu0 0.0
    %1488 = vmatprep.subr.mxu0 0.0
    %1489 = vmatpush1.msra.mxu0 0.0
    %1490 = vmatprep.subr.mxu0 0.0
    %1491 = vmatpush1.msra.mxu0 0.0
    %1492 = vmatprep.mubr.f32.mxu0 0.0
    %1493 = vmatmul.mubr.f32.gmra.mrb[0].mxu0 %v1426
    %v1494 = vpop.f32.mrb[0].mxu0
    %v1495 = vadd.f32 0.0, %v1494
    %v1496 = vpop.f32.mrb[0].mxu0
    %1497 = vdwg.mxu0
    %v1498 = vadd.f32 %v1422, %v1495
    %v1499 = vtanh.pop %v1498
    %v1500 = vxor.u32 %v1498, 2147483648
    %v1501 = vmul.f32 %v1500, 1.442695
    %v1502 = vpow.pop %v1501
    %v1503 = vadd.f32 %v1502, 1.0
    %v1504 = vrcp.pop %v1503
    %v1505 = vmul.f32 1.0, %v1504
    %v1506 = vsel %vm82, %v1499, %v1505
    %v1507 = vmul.f32 %v1506, %v1414
    %1509 = vrot.lane.b32.xlu0 %v1506, 64
    %v1510 = vpop.permute.xlu0 %1509
    %v1512 = vmul.f32 %v1506, %v1510
    %1514 = vrot.lane.b32.xlu0 %v1512, 32
    %v1515 = vpop.permute.xlu0 %1514
    %v1517 = vadd.f32 %v1507, %v1515
    %v1518 = vtanh.pop %v1517
    %1520 = vrot.lane.b32.xlu0 %v1518, 64
    %v1521 = vpop.permute.xlu0 %1520
    %v1523 = vmul.f32 %v1506, %v1521
    %s1524 = scalar_lea.vmem [#allocation2], 32
    %v1525 = vld [vmem:[%s1524] sm:$0xff]
    %1527 = vrot.lane.b32.xlu0 %v1523, 32
    %v1528 = vpop.permute.xlu0 %1527
    %v1529 = vsel %vm90, %v1528, 0
    %1531 = vmatprep.subr.mxu0 0.0
    %1532 = vmatpush1.msra.mxu0 %v1103
    %1533 = vmatprep.subr.mxu0 0.0
    %1534 = vmatpush1.msra.mxu0 %v1104
    %1535 = vmatprep.subr.mxu0 0.0
    %1536 = vmatpush1.msra.mxu0 %v1105
    %1537 = vmatprep.subr.mxu0 0.0
    %1538 = vmatpush1.msra.mxu0 %v1106
    %1539 = vmatprep.subr.mxu0 0.0
    %1540 = vmatpush1.msra.mxu0 0.0
    %1541 = vmatprep.subr.mxu0 0.0
    %1542 = vmatpush1.msra.mxu0 0.0
    %1543 = vmatprep.subr.mxu0 0.0
    %1544 = vmatpush1.msra.mxu0 0.0
    %1545 = vmatprep.subr.mxu0 0.0
    %1546 = vmatpush1.msra.mxu0 0.0
    %1547 = vmatprep.subr.mxu0 0.0
    %1548 = vmatpush1.msra.mxu0 0.0
    %1549 = vmatprep.subr.mxu0 0.0
    %1550 = vmatpush1.msra.mxu0 0.0
    %1551 = vmatprep.subr.mxu0 0.0
    %1552 = vmatpush1.msra.mxu0 0.0
    %1553 = vmatprep.subr.mxu0 0.0
    %1554 = vmatpush1.msra.mxu0 0.0
    %1555 = vmatprep.subr.mxu0 0.0
    %1556 = vmatpush1.msra.mxu0 0.0
    %1557 = vmatprep.subr.mxu0 0.0
    %1558 = vmatpush1.msra.mxu0 0.0
    %1559 = vmatprep.subr.mxu0 0.0
    %1560 = vmatpush1.msra.mxu0 0.0
    %1561 = vmatprep.subr.mxu0 0.0
    %1562 = vmatpush1.msra.mxu0 0.0
    %1563 = vmatprep.subr.mxu0 0.0
    %1564 = vmatpush1.msra.mxu0 0.0
    %1565 = vmatprep.subr.mxu0 0.0
    %1566 = vmatpush1.msra.mxu0 0.0
    %1567 = vmatprep.subr.mxu0 0.0
    %1568 = vmatpush1.msra.mxu0 0.0
    %1569 = vmatprep.subr.mxu0 0.0
    %1570 = vmatpush1.msra.mxu0 0.0
    %1571 = vmatprep.subr.mxu0 0.0
    %1572 = vmatpush1.msra.mxu0 0.0
    %1573 = vmatprep.subr.mxu0 0.0
    %1574 = vmatpush1.msra.mxu0 0.0
    %1575 = vmatprep.subr.mxu0 0.0
    %1576 = vmatpush1.msra.mxu0 0.0
    %1577 = vmatprep.subr.mxu0 0.0
    %1578 = vmatpush1.msra.mxu0 0.0
    %1579 = vmatprep.subr.mxu0 0.0
    %1580 = vmatpush1.msra.mxu0 0.0
    %1581 = vmatprep.subr.mxu0 0.0
    %1582 = vmatpush1.msra.mxu0 0.0
    %1583 = vmatprep.subr.mxu0 0.0
    %1584 = vmatpush1.msra.mxu0 0.0
    %1585 = vmatprep.subr.mxu0 0.0
    %1586 = vmatpush1.msra.mxu0 0.0
    %1587 = vmatprep.subr.mxu0 0.0
    %1588 = vmatpush1.msra.mxu0 0.0
    %1589 = vmatprep.subr.mxu0 0.0
    %1590 = vmatpush1.msra.mxu0 0.0
    %1591 = vmatprep.subr.mxu0 0.0
    %1592 = vmatpush1.msra.mxu0 0.0
    %1593 = vmatprep.subr.mxu0 0.0
    %1594 = vmatpush1.msra.mxu0 0.0
    %1595 = vmatprep.mubr.f32.mxu0 0.0
    %1596 = vmatmul.mubr.f32.gmra.mrb[0].mxu0 %v1529
    %v1597 = vpop.f32.mrb[0].mxu0
    %v1598 = vadd.f32 0.0, %v1597
    %v1599 = vpop.f32.mrb[0].mxu0
    %1600 = vdwg.mxu0
    %v1601 = vadd.f32 %v1525, %v1598
    %v1602 = vtanh.pop %v1601
    %v1603 = vxor.u32 %v1601, 2147483648
    %v1604 = vmul.f32 %v1603, 1.442695
    %v1605 = vpow.pop %v1604
    %v1606 = vadd.f32 %v1605, 1.0
    %v1607 = vrcp.pop %v1606
    %v1608 = vmul.f32 1.0, %v1607
    %v1609 = vsel %vm82, %v1602, %v1608
    %v1610 = vmul.f32 %v1609, %v1517
    %1612 = vrot.lane.b32.xlu0 %v1609, 64
    %v1613 = vpop.permute.xlu0 %1612
    %v1615 = vmul.f32 %v1609, %v1613
    %1617 = vrot.lane.b32.xlu0 %v1615, 32
    %v1618 = vpop.permute.xlu0 %1617
    %v1620 = vadd.f32 %v1610, %v1618
    %v1621 = vtanh.pop %v1620
    %1623 = vrot.lane.b32.xlu0 %v1621, 64
    %v1624 = vpop.permute.xlu0 %1623
    %v1626 = vmul.f32 %v1609, %v1624
    %s1627 = scalar_lea.vmem [#allocation2], 40
    %v1628 = vld [vmem:[%s1627] sm:$0xff]
    %1630 = vrot.lane.b32.xlu0 %v1626, 32
    %v1631 = vpop.permute.xlu0 %1630
    %v1632 = vsel %vm90, %v1631, 0
    %1634 = vmatprep.subr.mxu0 0.0
    %1635 = vmatpush1.msra.mxu0 %v1103
    %1636 = vmatprep.subr.mxu0 0.0
    %1637 = vmatpush1.msra.mxu0 %v1104
    %1638 = vmatprep.subr.mxu0 0.0
    %1639 = vmatpush1.msra.mxu0 %v1105
    %1640 = vmatprep.subr.mxu0 0.0
    %1641 = vmatpush1.msra.mxu0 %v1106
    %1642 = vmatprep.subr.mxu0 0.0
    %1643 = vmatpush1.msra.mxu0 0.0
    %1644 = vmatprep.subr.mxu0 0.0
    %1645 = vmatpush1.msra.mxu0 0.0
    %1646 = vmatprep.subr.mxu0 0.0
    %1647 = vmatpush1.msra.mxu0 0.0
    %1648 = vmatprep.subr.mxu0 0.0
    %1649 = vmatpush1.msra.mxu0 0.0
    %1650 = vmatprep.subr.mxu0 0.0
    %1651 = vmatpush1.msra.mxu0 0.0
    %1652 = vmatprep.subr.mxu0 0.0
    %1653 = vmatpush1.msra.mxu0 0.0
    %1654 = vmatprep.subr.mxu0 0.0
    %1655 = vmatpush1.msra.mxu0 0.0
    %1656 = vmatprep.subr.mxu0 0.0
    %1657 = vmatpush1.msra.mxu0 0.0
    %1658 = vmatprep.subr.mxu0 0.0
    %1659 = vmatpush1.msra.mxu0 0.0
    %1660 = vmatprep.subr.mxu0 0.0
    %1661 = vmatpush1.msra.mxu0 0.0
    %1662 = vmatprep.subr.mxu0 0.0
    %1663 = vmatpush1.msra.mxu0 0.0
    %1664 = vmatprep.subr.mxu0 0.0
    %1665 = vmatpush1.msra.mxu0 0.0
    %1666 = vmatprep.subr.mxu0 0.0
    %1667 = vmatpush1.msra.mxu0 0.0
    %1668 = vmatprep.subr.mxu0 0.0
    %1669 = vmatpush1.msra.mxu0 0.0
    %1670 = vmatprep.subr.mxu0 0.0
    %1671 = vmatpush1.msra.mxu0 0.0
    %1672 = vmatprep.subr.mxu0 0.0
    %1673 = vmatpush1.msra.mxu0 0.0
    %1674 = vmatprep.subr.mxu0 0.0
    %1675 = vmatpush1.msra.mxu0 0.0
    %1676 = vmatprep.subr.mxu0 0.0
    %1677 = vmatpush1.msra.mxu0 0.0
    %1678 = vmatprep.subr.mxu0 0.0
    %1679 = vmatpush1.msra.mxu0 0.0
    %1680 = vmatprep.subr.mxu0 0.0
    %1681 = vmatpush1.msra.mxu0 0.0
    %1682 = vmatprep.subr.mxu0 0.0
    %1683 = vmatpush1.msra.mxu0 0.0
    %1684 = vmatprep.subr.mxu0 0.0
    %1685 = vmatpush1.msra.mxu0 0.0
    %1686 = vmatprep.subr.mxu0 0.0
    %1687 = vmatpush1.msra.mxu0 0.0
    %1688 = vmatprep.subr.mxu0 0.0
    %1689 = vmatpush1.msra.mxu0 0.0
    %1690 = vmatprep.subr.mxu0 0.0
    %1691 = vmatpush1.msra.mxu0 0.0
    %1692 = vmatprep.subr.mxu0 0.0
    %1693 = vmatpush1.msra.mxu0 0.0
    %1694 = vmatprep.subr.mxu0 0.0
    %1695 = vmatpush1.msra.mxu0 0.0
    %1696 = vmatprep.subr.mxu0 0.0
    %1697 = vmatpush1.msra.mxu0 0.0
    %1698 = vmatprep.mubr.f32.mxu0 0.0
    %1699 = vmatmul.mubr.f32.gmra.mrb[0].mxu0 %v1632
    %v1700 = vpop.f32.mrb[0].mxu0
    %v1701 = vadd.f32 0.0, %v1700
    %v1702 = vpop.f32.mrb[0].mxu0
    %1703 = vdwg.mxu0
    %v1704 = vadd.f32 %v1628, %v1701
    %v1705 = vtanh.pop %v1704
    %v1706 = vxor.u32 %v1704, 2147483648
    %v1707 = vmul.f32 %v1706, 1.442695
    %v1708 = vpow.pop %v1707
    %v1709 = vadd.f32 %v1708, 1.0
    %v1710 = vrcp.pop %v1709
    %v1711 = vmul.f32 1.0, %v1710
    %v1712 = vsel %vm82, %v1705, %v1711
    %v1713 = vmul.f32 %v1712, %v1620
    %1715 = vrot.lane.b32.xlu0 %v1712, 64
    %v1716 = vpop.permute.xlu0 %1715
    %v1718 = vmul.f32 %v1712, %v1716
    %1720 = vrot.lane.b32.xlu0 %v1718, 32
    %v1721 = vpop.permute.xlu0 %1720
    %v1723 = vadd.f32 %v1713, %v1721
    %v1724 = vtanh.pop %v1723
    %1726 = vrot.lane.b32.xlu0 %v1724, 64
    %v1727 = vpop.permute.xlu0 %1726
    %v1729 = vmul.f32 %v1712, %v1727
    %s1730 = scalar_lea.vmem [#allocation2], 48
    %v1731 = vld [vmem:[%s1730] sm:$0xff]
    %1733 = vrot.lane.b32.xlu0 %v1729, 32
    %v1734 = vpop.permute.xlu0 %1733
    %v1735 = vsel %vm90, %v1734, 0
    %1737 = vmatprep.subr.mxu0 0.0
    %1738 = vmatpush1.msra.mxu0 %v1103
    %1739 = vmatprep.subr.mxu0 0.0
    %1740 = vmatpush1.msra.mxu0 %v1104
    %1741 = vmatprep.subr.mxu0 0.0
    %1742 = vmatpush1.msra.mxu0 %v1105
    %1743 = vmatprep.subr.mxu0 0.0
    %1744 = vmatpush1.msra.mxu0 %v1106
    %1745 = vmatprep.subr.mxu0 0.0
    %1746 = vmatpush1.msra.mxu0 0.0
    %1747 = vmatprep.subr.mxu0 0.0
    %1748 = vmatpush1.msra.mxu0 0.0
    %1749 = vmatprep.subr.mxu0 0.0
    %1750 = vmatpush1.msra.mxu0 0.0
    %1751 = vmatprep.subr.mxu0 0.0
    %1752 = vmatpush1.msra.mxu0 0.0
    %1753 = vmatprep.subr.mxu0 0.0
    %1754 = vmatpush1.msra.mxu0 0.0
    %1755 = vmatprep.subr.mxu0 0.0
    %1756 = vmatpush1.msra.mxu0 0.0
    %1757 = vmatprep.subr.mxu0 0.0
    %1758 = vmatpush1.msra.mxu0 0.0
    %1759 = vmatprep.subr.mxu0 0.0
    %1760 = vmatpush1.msra.mxu0 0.0
    %1761 = vmatprep.subr.mxu0 0.0
    %1762 = vmatpush1.msra.mxu0 0.0
    %1763 = vmatprep.subr.mxu0 0.0
    %1764 = vmatpush1.msra.mxu0 0.0
    %1765 = vmatprep.subr.mxu0 0.0
    %1766 = vmatpush1.msra.mxu0 0.0
    %1767 = vmatprep.subr.mxu0 0.0
    %1768 = vmatpush1.msra.mxu0 0.0
    %1769 = vmatprep.subr.mxu0 0.0
    %1770 = vmatpush1.msra.mxu0 0.0
    %1771 = vmatprep.subr.mxu0 0.0
    %1772 = vmatpush1.msra.mxu0 0.0
    %1773 = vmatprep.subr.mxu0 0.0
    %1774 = vmatpush1.msra.mxu0 0.0
    %1775 = vmatprep.subr.mxu0 0.0
    %1776 = vmatpush1.msra.mxu0 0.0
    %1777 = vmatprep.subr.mxu0 0.0
    %1778 = vmatpush1.msra.mxu0 0.0
    %1779 = vmatprep.subr.mxu0 0.0
    %1780 = vmatpush1.msra.mxu0 0.0
    %1781 = vmatprep.subr.mxu0 0.0
    %1782 = vmatpush1.msra.mxu0 0.0
    %1783 = vmatprep.subr.mxu0 0.0
    %1784 = vmatpush1.msra.mxu0 0.0
    %1785 = vmatprep.subr.mxu0 0.0
    %1786 = vmatpush1.msra.mxu0 0.0
    %1787 = vmatprep.subr.mxu0 0.0
    %1788 = vmatpush1.msra.mxu0 0.0
    %1789 = vmatprep.subr.mxu0 0.0
    %1790 = vmatpush1.msra.mxu0 0.0
    %1791 = vmatprep.subr.mxu0 0.0
    %1792 = vmatpush1.msra.mxu0 0.0
    %1793 = vmatprep.subr.mxu0 0.0
    %1794 = vmatpush1.msra.mxu0 0.0
    %1795 = vmatprep.subr.mxu0 0.0
    %1796 = vmatpush1.msra.mxu0 0.0
    %1797 = vmatprep.subr.mxu0 0.0
    %1798 = vmatpush1.msra.mxu0 0.0
    %1799 = vmatprep.subr.mxu0 0.0
    %1800 = vmatpush1.msra.mxu0 0.0
    %1801 = vmatprep.mubr.f32.mxu0 0.0
    %1802 = vmatmul.mubr.f32.gmra.mrb[0].mxu0 %v1735
    %v1803 = vpop.f32.mrb[0].mxu0
    %v1804 = vadd.f32 0.0, %v1803
    %v1805 = vpop.f32.mrb[0].mxu0
    %1806 = vdwg.mxu0
    %v1807 = vadd.f32 %v1731, %v1804
    %v1808 = vtanh.pop %v1807
    %v1809 = vxor.u32 %v1807, 2147483648
    %v1810 = vmul.f32 %v1809, 1.442695
    %v1811 = vpow.pop %v1810
    %v1812 = vadd.f32 %v1811, 1.0
    %v1813 = vrcp.pop %v1812
    %v1814 = vmul.f32 1.0, %v1813
    %v1815 = vsel %vm82, %v1808, %v1814
    %v1816 = vmul.f32 %v1815, %v1723
    %1818 = vrot.lane.b32.xlu0 %v1815, 64
    %v1819 = vpop.permute.xlu0 %1818
    %v1821 = vmul.f32 %v1815, %v1819
    %1823 = vrot.lane.b32.xlu0 %v1821, 32
    %v1824 = vpop.permute.xlu0 %1823
    %v1826 = vadd.f32 %v1816, %v1824
    %v1827 = vtanh.pop %v1826
    %1829 = vrot.lane.b32.xlu0 %v1827, 64
    %v1830 = vpop.permute.xlu0 %1829
    %v1832 = vmul.f32 %v1815, %v1830
    %s1833 = scalar_lea.vmem [#allocation2], 56
    %v1834 = vld [vmem:[%s1833] sm:$0xff]
    %1836 = vrot.lane.b32.xlu0 %v1832, 32
    %v1837 = vpop.permute.xlu0 %1836
    %v1838 = vsel %vm90, %v1837, 0
    %1840 = vmatprep.subr.mxu0 0.0
    %1841 = vmatpush1.msra.mxu0 %v1103
    %1842 = vmatprep.subr.mxu0 0.0
    %1843 = vmatpush1.msra.mxu0 %v1104
    %1844 = vmatprep.subr.mxu0 0.0
    %1845 = vmatpush1.msra.mxu0 %v1105
    %1846 = vmatprep.subr.mxu0 0.0
    %1847 = vmatpush1.msra.mxu0 %v1106
    %1848 = vmatprep.subr.mxu0 0.0
    %1849 = vmatpush1.msra.mxu0 0.0
    %1850 = vmatprep.subr.mxu0 0.0
    %1851 = vmatpush1.msra.mxu0 0.0
    %1852 = vmatprep.subr.mxu0 0.0
    %1853 = vmatpush1.msra.mxu0 0.0
    %1854 = vmatprep.subr.mxu0 0.0
    %1855 = vmatpush1.msra.mxu0 0.0
    %1856 = vmatprep.subr.mxu0 0.0
    %1857 = vmatpush1.msra.mxu0 0.0
    %1858 = vmatprep.subr.mxu0 0.0
    %1859 = vmatpush1.msra.mxu0 0.0
    %1860 = vmatprep.subr.mxu0 0.0
    %1861 = vmatpush1.msra.mxu0 0.0
    %1862 = vmatprep.subr.mxu0 0.0
    %1863 = vmatpush1.msra.mxu0 0.0
    %1864 = vmatprep.subr.mxu0 0.0
    %1865 = vmatpush1.msra.mxu0 0.0
    %1866 = vmatprep.subr.mxu0 0.0
    %1867 = vmatpush1.msra.mxu0 0.0
    %1868 = vmatprep.subr.mxu0 0.0
    %1869 = vmatpush1.msra.mxu0 0.0
    %1870 = vmatprep.subr.mxu0 0.0
    %1871 = vmatpush1.msra.mxu0 0.0
    %1872 = vmatprep.subr.mxu0 0.0
    %1873 = vmatpush1.msra.mxu0 0.0
    %1874 = vmatprep.subr.mxu0 0.0
    %1875 = vmatpush1.msra.mxu0 0.0
    %1876 = vmatprep.subr.mxu0 0.0
    %1877 = vmatpush1.msra.mxu0 0.0
    %1878 = vmatprep.subr.mxu0 0.0
    %1879 = vmatpush1.msra.mxu0 0.0
    %1880 = vmatprep.subr.mxu0 0.0
    %1881 = vmatpush1.msra.mxu0 0.0
    %1882 = vmatprep.subr.mxu0 0.0
    %1883 = vmatpush1.msra.mxu0 0.0
    %1884 = vmatprep.subr.mxu0 0.0
    %1885 = vmatpush1.msra.mxu0 0.0
    %1886 = vmatprep.subr.mxu0 0.0
    %1887 = vmatpush1.msra.mxu0 0.0
    %1888 = vmatprep.subr.mxu0 0.0
    %1889 = vmatpush1.msra.mxu0 0.0
    %1890 = vmatprep.subr.mxu0 0.0
    %1891 = vmatpush1.msra.mxu0 0.0
    %1892 = vmatprep.subr.mxu0 0.0
    %1893 = vmatpush1.msra.mxu0 0.0
    %1894 = vmatprep.subr.mxu0 0.0
    %1895 = vmatpush1.msra.mxu0 0.0
    %1896 = vmatprep.subr.mxu0 0.0
    %1897 = vmatpush1.msra.mxu0 0.0
    %1898 = vmatprep.subr.mxu0 0.0
    %1899 = vmatpush1.msra.mxu0 0.0
    %1900 = vmatprep.subr.mxu0 0.0
    %1901 = vmatpush1.msra.mxu0 0.0
    %1902 = vmatprep.subr.mxu0 0.0
    %1903 = vmatpush1.msra.mxu0 0.0
    %1904 = vmatprep.mubr.f32.mxu0 0.0
    %1905 = vmatmul.mubr.f32.gmra.mrb[0].mxu0 %v1838
    %v1906 = vpop.f32.mrb[0].mxu0
    %v1907 = vadd.f32 0.0, %v1906
    %v1908 = vpop.f32.mrb[0].mxu0
    %1909 = vdwg.mxu0
    %v1910 = vadd.f32 %v1834, %v1907
    %v1911 = vtanh.pop %v1910
    %v1912 = vxor.u32 %v1910, 2147483648
    %v1913 = vmul.f32 %v1912, 1.442695
    %v1914 = vpow.pop %v1913
    %v1915 = vadd.f32 %v1914, 1.0
    %v1916 = vrcp.pop %v1915
    %v1917 = vmul.f32 1.0, %v1916
    %v1918 = vsel %vm82, %v1911, %v1917
    %v1919 = vmul.f32 %v1918, %v1826
    %1921 = vrot.lane.b32.xlu0 %v1918, 64
    %v1922 = vpop.permute.xlu0 %1921
    %v1924 = vmul.f32 %v1918, %v1922
    %1926 = vrot.lane.b32.xlu0 %v1924, 32
    %v1927 = vpop.permute.xlu0 %1926
    %v1929 = vadd.f32 %v1919, %v1927
    %v1930 = vtanh.pop %v1929
    %1932 = vrot.lane.b32.xlu0 %v1930, 64
    %v1933 = vpop.permute.xlu0 %1932
    %v1935 = vmul.f32 %v1918, %v1933
    %1937 = vrot.lane.b32.xlu0 %v1935, 32
    %v1938 = vpop.permute.xlu0 %1937
    %1940 = vst.msk [vmem:[%s1107] sm:$0xff] %vm90, %v1938
    %1942 = vrot.lane.b32.xlu0 %v1929, 96
    %v1943 = vpop.permute.xlu0 %1942
    %1945 = vst.msk [vmem:[%s1109] sm:$0xff] %vm90, %v1943
    // Predicated region
    $region46: #{tpu_custom_call.1} parent=1 // pred_check
      %p1946 = pneg %p69
    $region47: #{tpu_custom_call.1} parent=1 // pred_check_branch
      %1948 = sbr.rel (%p1946) target = $region49
    $region48: #{tpu_custom_call.1} parent=1 // pred_region
      %v1949 = vld [vmem:[%s1107] sm:$0xff]
      %v1950 = vld [vmem:[%s5] sm:$0xff]
      %v1951 = vld [vmem:[%s5 + $0x8] sm:$0xff]
      %v1952 = vld [vmem:[%s5 + $0x10] sm:$0xff]
      %v1953 = vld [vmem:[%s5 + $0x18] sm:$0xff]
      %v1954 = vld [vmem:[#allocation6] sm:$0x1]
      %v1956 = vlaneseq
      %v1957 = vshrl.u32 %v1956, 7
      %v1958 = vsub.s32 0, %v1957
      %v1959 = vrot.slane %v1954, %v1958
      %v1962 = vsel %vm90, %v1949, 0
      %1964 = vmatprep.subr.mxu0 0.0
      %1965 = vmatpush1.msra.mxu0 %v1950
      %1966 = vmatprep.subr.mxu0 0.0
      %1967 = vmatpush1.msra.mxu0 %v1951
      %1968 = vmatprep.subr.mxu0 0.0
      %1969 = vmatpush1.msra.mxu0 %v1952
      %1970 = vmatprep.subr.mxu0 0.0
      %1971 = vmatpush1.msra.mxu0 %v1953
      %1972 = vmatprep.subr.mxu0 0.0
      %1973 = vmatpush1.msra.mxu0 0.0
      %1974 = vmatprep.subr.mxu0 0.0
      %1975 = vmatpush1.msra.mxu0 0.0
      %1976 = vmatprep.subr.mxu0 0.0
      %1977 = vmatpush1.msra.mxu0 0.0
      %1978 = vmatprep.subr.mxu0 0.0
      %1979 = vmatpush1.msra.mxu0 0.0
      %1980 = vmatprep.subr.mxu0 0.0
      %1981 = vmatpush1.msra.mxu0 0.0
      %1982 = vmatprep.subr.mxu0 0.0
      %1983 = vmatpush1.msra.mxu0 0.0
      %1984 = vmatprep.subr.mxu0 0.0
      %1985 = vmatpush1.msra.mxu0 0.0
      %1986 = vmatprep.subr.mxu0 0.0
      %1987 = vmatpush1.msra.mxu0 0.0
      %1988 = vmatprep.subr.mxu0 0.0
      %1989 = vmatpush1.msra.mxu0 0.0
      %1990 = vmatprep.subr.mxu0 0.0
      %1991 = vmatpush1.msra.mxu0 0.0
      %1992 = vmatprep.subr.mxu0 0.0
      %1993 = vmatpush1.msra.mxu0 0.0
      %1994 = vmatprep.subr.mxu0 0.0
      %1995 = vmatpush1.msra.mxu0 0.0
      %1996 = vmatprep.subr.mxu0 0.0
      %1997 = vmatpush1.msra.mxu0 0.0
      %1998 = vmatprep.subr.mxu0 0.0
      %1999 = vmatpush1.msra.mxu0 0.0
      %2000 = vmatprep.subr.mxu0 0.0
      %2001 = vmatpush1.msra.mxu0 0.0
      %2002 = vmatprep.subr.mxu0 0.0
      %2003 = vmatpush1.msra.mxu0 0.0
      %2004 = vmatprep.subr.mxu0 0.0
      %2005 = vmatpush1.msra.mxu0 0.0
      %2006 = vmatprep.subr.mxu0 0.0
      %2007 = vmatpush1.msra.mxu0 0.0
      %2008 = vmatprep.subr.mxu0 0.0
      %2009 = vmatpush1.msra.mxu0 0.0
      %2010 = vmatprep.subr.mxu0 0.0
      %2011 = vmatpush1.msra.mxu0 0.0
      %2012 = vmatprep.subr.mxu0 0.0
      %2013 = vmatpush1.msra.mxu0 0.0
      %2014 = vmatprep.subr.mxu0 0.0
      %2015 = vmatpush1.msra.mxu0 0.0
      %2016 = vmatprep.subr.mxu0 0.0
      %2017 = vmatpush1.msra.mxu0 0.0
      %2018 = vmatprep.subr.mxu0 0.0
      %2019 = vmatpush1.msra.mxu0 0.0
      %2020 = vmatprep.subr.mxu0 0.0
      %2021 = vmatpush1.msra.mxu0 0.0
      %2022 = vmatprep.subr.mxu0 0.0
      %2023 = vmatpush1.msra.mxu0 0.0
      %2024 = vmatprep.subr.mxu0 0.0
      %2025 = vmatpush1.msra.mxu0 0.0
      %2026 = vmatprep.subr.mxu0 0.0
      %2027 = vmatpush1.msra.mxu0 0.0
      %2028 = vmatprep.mubr.f32.mxu0 0.0
      %2029 = vmatmul.mubr.f32.gmra.mrb[0].mxu0 %v1962
      %v2030 = vpop.f32.mrb[0].mxu0
      %v2031 = vadd.f32 %v1959, %v2030
      %v2032 = vpop.f32.mrb[0].mxu0
      %2033 = vdwg.mxu0
      %vm2034 = vcmask 7168
      %2035 = vst.msk [vmem:[%s7] sm:$0xff] %vm2034, %v2031
    $region49: #{tpu_custom_call.1} parent=1 // pred_fallthru
      _
    // Predicated region
    $region50: #{tpu_custom_call.1} parent=1 // pred_check
      _
    $region51: #{tpu_custom_call.1} parent=1 // pred_check_branch
      %2037 = sbr.rel (0) target = $region53
    $region52: #{tpu_custom_call.1} parent=1 // pred_region
      _
    $region53: #{tpu_custom_call.1} parent=1 // pred_fallthru
      _
    // Predicated region
    $region54: #{tpu_custom_call.1} parent=1 // pred_check
      _
    $region55: #{tpu_custom_call.1} parent=1 // pred_check_branch
      %2039 = sbr.rel (0) target = $region57
    $region56: #{tpu_custom_call.1} parent=1 // pred_region
      _
    $region57: #{tpu_custom_call.1} parent=1 // pred_fallthru
      _
    %2040 = vsyncpa [#allocation8], 1
    %2041 = vsyncpa [#allocation10], 1

// kernel: tpu_custom_call.1
$region0: #{tpu_custom_call.1}
  #allocation0 [shape = 'u32[]', space=smem, size = 0x4, offset = 0x4, fixed_abs, tag = 'smem constant byte address 0x4 - core index']
  #allocation1 [shape = 'u32[144,128]{1,0:T(1,128)}', space=vmem, size = 0x12000, scoped, tag = 'internal scratch']
  #allocation2 [shape = 'f32[64,128]{1,0:T(8,128)}', space=vmem, size = 0x8000, scoped, tag = 'scratch operand']
  #allocation3 [shape = 'f32[64,32]{1,0:T(8,128)}', space=vmem, size = 0x8000, scoped, tag = 'scratch operand']
  #allocation4 [shape = 'f32[2,8,32]{2,1,0:T(8,128)}', space=vmem, size = 0x2000, scoped, tag = 'scratch operand']
  #allocation5 [shape = 'f32[2,8,32]{2,1,0:T(8,128)}', space=vmem, size = 0x2000, scoped, tag = 'scratch operand']
  #allocation6 [shape = 'f32[1,1]{1,0:T(1,128)S(1)}', space=vmem, size = 0x200, scoped, tag = 'scoped memory for tpu_custom_call.1']
  %s0 = inlined_call_operand.hbm [shape: f32[64,128], index: 0, kind: input, shape index: {}]
  %s1 = inlined_call_operand.vmem [shape: f32[32,128], index: 1, kind: input, shape index: {}]
  %s2 = inlined_call_operand.hbm [shape: f32[32,128], index: 2, kind: input, shape index: {}]
  %s3 = inlined_call_operand.hbm [shape: f32[32,128], index: 3, kind: input, shape index: {}]
  %s4 = inlined_call_operand.vmem [shape: f32[1,128], index: 4, kind: input, shape index: {}]
  %s5 = inlined_call_operand.vmem [shape: f32[32,1], index: 5, kind: input, shape index: {}]
  %s6 = inlined_call_operand.<no memory space> [shape: f32[1,1], index: 6, kind: input, shape index: {}]
  %s7 = inlined_call_operand.vmem [shape: f32[8,1], index: 7, kind: output, shape index: {}]
  %s8 = sld [smem:[#allocation0]]
  $region58: #{tpu_custom_call.1} parent=0
    _
  %s10 = ssub.s32 1, %s8
  %s11 = scalar_select 0, %s10, %s8
  %v12 = vstv %s6
  %13 = vst [vmem:[#allocation6] sm:$0x1] %v12
  $region1: #{tpu_custom_call.1} parent=0
    #allocation7 [shape = 'u8[32768]{0}', space=vmem, size = 0x8000, scoped, tag = 'input window, operand 0, single buffered']
    #allocation8 [shape = 's32[1]{0}', space=sflag, size = 0x4, scoped, tag = 'scoped memory for tpu_custom_call.1']
    #allocation9 [shape = 'u8[16384]{0}', space=vmem, size = 0x4000, scoped, tag = 'input window, operand 2, single buffered']
    #allocation10 [shape = 's32[1]{0}', space=sflag, size = 0x4, scoped, tag = 'scoped memory for tpu_custom_call.1']
    #allocation11 [shape = 'u8[16384]{0}', space=vmem, size = 0x4000, scoped, tag = 'input window, operand 3, single buffered']
    %14 = vsyncpa [#allocation8], 0
    %15 = vsyncpa [#allocation10], 0
    // Predicated region
    $region2: #{tpu_custom_call.1} parent=1 // pred_check
      _
    $region3: #{tpu_custom_call.1} parent=1 // pred_check_branch
      %17 = sbr.rel (0) target = $region5
    $region4: #{tpu_custom_call.1} parent=1 // pred_region
      %s19 = ssub.s32 1024, 1024
      %20 = vsyncadd [#allocation8], %s19
      %s21 = sshll.u32 [#allocation7], 4
      %s22 = int_to_ptr.vmem [resolvable:$true] %s21
      %27 = dma.hbm_to_vmem [thread:$0]  %s0, 1024, %s22, [#allocation8], 128, 128, 8
    $region5: #{tpu_custom_call.1} parent=1 // pred_fallthru
      _
    // Predicated region
    $region6: #{tpu_custom_call.1} parent=1 // pred_check
      _
    $region7: #{tpu_custom_call.1} parent=1 // pred_check_branch
      %29 = sbr.rel (0) target = $region9
    $region8: #{tpu_custom_call.1} parent=1 // pred_region
      _
    $region9: #{tpu_custom_call.1} parent=1 // pred_fallthru
      _
    // Predicated region
    $region10: #{tpu_custom_call.1} parent=1 // pred_check
      _
    $region11: #{tpu_custom_call.1} parent=1 // pred_check_branch
      %31 = sbr.rel (0) target = $region13
    $region12: #{tpu_custom_call.1} parent=1 // pred_region
      %s33 = ssub.s32 512, 512
      %34 = vsyncadd [#allocation10], %s33
      %s35 = sshll.u32 [#allocation9], 4
      %s36 = int_to_ptr.vmem [resolvable:$true] %s35
      %41 = dma.hbm_to_vmem [thread:$0]  %s2, 512, %s36, [#allocation10], 128, 128, 8
    $region13: #{tpu_custom_call.1} parent=1 // pred_fallthru
      _
    // Predicated region
    $region14: #{tpu_custom_call.1} parent=1 // pred_check
      _
    $region15: #{tpu_custom_call.1} parent=1 // pred_check_branch
      %43 = sbr.rel (0) target = $region17
    $region16: #{tpu_custom_call.1} parent=1 // pred_region
      %s45 = ssub.s32 512, 512
      %46 = vsyncadd [#allocation10], %s45
      %s47 = sshll.u32 [#allocation11], 4
      %s48 = int_to_ptr.vmem [resolvable:$true] %s47
      %53 = dma.hbm_to_vmem [thread:$0]  %s3, 512, %s48, [#allocation10], 128, 128, 8
    $region17: #{tpu_custom_call.1} parent=1 // pred_fallthru
      _
    // Predicated region
    $region18: #{tpu_custom_call.1} parent=1 // pred_check
      _
    $region19: #{tpu_custom_call.1} parent=1 // pred_check_branch
      %55 = sbr.rel (0) target = $region21
    $region20: #{tpu_custom_call.1} parent=1 // pred_region
      _
    $region21: #{tpu_custom_call.1} parent=1 // pred_fallthru
      _
    // Predicated region
    $region22: #{tpu_custom_call.1} parent=1 // pred_check
      _
    $region23: #{tpu_custom_call.1} parent=1 // pred_check_branch
      %57 = sbr.rel (0) target = $region25
    $region24: #{tpu_custom_call.1} parent=1 // pred_region
      _
    $region25: #{tpu_custom_call.1} parent=1 // pred_fallthru
      _
    // Predicated region
    $region26: #{tpu_custom_call.1} parent=1 // pred_check
      _
    $region27: #{tpu_custom_call.1} parent=1 // pred_check_branch
      %59 = sbr.rel (0) target = $region29
    $region28: #{tpu_custom_call.1} parent=1 // pred_region
      _
    $region29: #{tpu_custom_call.1} parent=1 // pred_fallthru
      _
    // Predicated region
    $region30: #{tpu_custom_call.1} parent=1 // pred_check
      _
    $region31: #{tpu_custom_call.1} parent=1 // pred_check_branch
      %61 = sbr.rel (0) target = $region33
    $region32: #{tpu_custom_call.1} parent=1 // pred_region
      %62 = dma.done [#allocation8], 1024
    $region33: #{tpu_custom_call.1} parent=1 // pred_fallthru
      _
    // Predicated region
    $region34: #{tpu_custom_call.1} parent=1 // pred_check
      _
    $region35: #{tpu_custom_call.1} parent=1 // pred_check_branch
      %64 = sbr.rel (0) target = $region37
    $region36: #{tpu_custom_call.1} parent=1 // pred_region
      %65 = dma.done [#allocation10], 512
    $region37: #{tpu_custom_call.1} parent=1 // pred_fallthru
      _
    // Predicated region
    $region38: #{tpu_custom_call.1} parent=1 // pred_check
      _
    $region39: #{tpu_custom_call.1} parent=1 // pred_check_branch
      %67 = sbr.rel (0) target = $region41
    $region40: #{tpu_custom_call.1} parent=1 // pred_region
      %68 = dma.done [#allocation10], 512
    $region41: #{tpu_custom_call.1} parent=1 // pred_fallthru
      _
    %p69 = scmp.eq.s32.totalorder 0, 0
    // Predicated region
    $region42: #{tpu_custom_call.1} parent=1 // pred_check
      %p70 = pneg %p69
    $region43: #{tpu_custom_call.1} parent=1 // pred_check_branch
      %72 = sbr.rel (%p70) target = $region45
    $region44: #{tpu_custom_call.1} parent=1 // pred_region
      %vm73 = vcmask 261120
      %74 = vst.msk [vmem:[#allocation4] sm:$0xff] %vm73, 0.0
      %75 = vst.msk [vmem:[#allocation4 + $0x8] sm:$0xff] %vm73, 0.0
      %76 = vst.msk [vmem:[#allocation5] sm:$0xff] %vm73, 0.0
      %77 = vst.msk [vmem:[#allocation5 + $0x8] sm:$0xff] %vm73, 0.0
    $region45: #{tpu_custom_call.1} parent=1 // pred_fallthru
      _
    %v78 = vlaneseq
    %v79 = vand.u32 %v78, 127
    %vm80 = vcmp.ge.s32.totalorder %v79, 64
    %vm81 = vcmp.lt.s32.totalorder %v79, 96
    %vm82 = vmand %vm80, %vm81
    %v83 = vld [vmem:[%s1] sm:$0xff]
    %v84 = vld [vmem:[%s1 + $0x8] sm:$0xff]
    %v85 = vld [vmem:[%s1 + $0x10] sm:$0xff]
    %v86 = vld [vmem:[%s1 + $0x18] sm:$0xff]
    %v87 = vld [vmem:[#allocation4] sm:$0xff]
    %v88 = vld [vmem:[#allocation5] sm:$0xff]
    %v89 = vld [vmem:[#allocation7] sm:$0xff]
    %vm90 = vcmask 261120
    %v92 = vsel %vm90, %v87, 0
    %94 = vmatprep.subr.mxu0 0.0
    %95 = vmatpush1.msra.mxu0 %v83
    %96 = vmatprep.subr.mxu0 0.0
    %97 = vmatpush1.msra.mxu0 %v84
    %98 = vmatprep.subr.mxu0 0.0
    %99 = vmatpush1.msra.mxu0 %v85
    %100 = vmatprep.subr.mxu0 0.0
    %101 = vmatpush1.msra.mxu0 %v86
    %102 = vmatprep.subr.mxu0 0.0
    %103 = vmatpush1.msra.mxu0 0.0
    %104 = vmatprep.subr.mxu0 0.0
    %105 = vmatpush1.msra.mxu0 0.0
    %106 = vmatprep.subr.mxu0 0.0
    %107 = vmatpush1.msra.mxu0 0.0
    %108 = vmatprep.subr.mxu0 0.0
    %109 = vmatpush1.msra.mxu0 0.0
    %110 = vmatprep.subr.mxu0 0.0
    %111 = vmatpush1.msra.mxu0 0.0
    %112 = vmatprep.subr.mxu0 0.0
    %113 = vmatpush1.msra.mxu0 0.0
    %114 = vmatprep.subr.mxu0 0.0
    %115 = vmatpush1.msra.mxu0 0.0
    %116 = vmatprep.subr.mxu0 0.0
    %117 = vmatpush1.msra.mxu0 0.0
    %118 = vmatprep.subr.mxu0 0.0
    %119 = vmatpush1.msra.mxu0 0.0
    %120 = vmatprep.subr.mxu0 0.0
    %121 = vmatpush1.msra.mxu0 0.0
    %122 = vmatprep.subr.mxu0 0.0
    %123 = vmatpush1.msra.mxu0 0.0
    %124 = vmatprep.subr.mxu0 0.0
    %125 = vmatpush1.msra.mxu0 0.0
    %126 = vmatprep.subr.mxu0 0.0
    %127 = vmatpush1.msra.mxu0 0.0
    %128 = vmatprep.subr.mxu0 0.0
    %129 = vmatpush1.msra.mxu0 0.0
    %130 = vmatprep.subr.mxu0 0.0
    %131 = vmatpush1.msra.mxu0 0.0
    %132 = vmatprep.subr.mxu0 0.0
    %133 = vmatpush1.msra.mxu0 0.0
    %134 = vmatprep.subr.mxu0 0.0
    %135 = vmatpush1.msra.mxu0 0.0
    %136 = vmatprep.subr.mxu0 0.0
    %137 = vmatpush1.msra.mxu0 0.0
    %138 = vmatprep.subr.mxu0 0.0
    %139 = vmatpush1.msra.mxu0 0.0
    %140 = vmatprep.subr.mxu0 0.0
    %141 = vmatpush1.msra.mxu0 0.0
    %142 = vmatprep.subr.mxu0 0.0
    %143 = vmatpush1.msra.mxu0 0.0
    %144 = vmatprep.subr.mxu0 0.0
    %145 = vmatpush1.msra.mxu0 0.0
    %146 = vmatprep.subr.mxu0 0.0
    %147 = vmatpush1.msra.mxu0 0.0
    %148 = vmatprep.subr.mxu0 0.0
    %149 = vmatpush1.msra.mxu0 0.0
    %150 = vmatprep.subr.mxu0 0.0
    %151 = vmatpush1.msra.mxu0 0.0
    %152 = vmatprep.subr.mxu0 0.0
    %153 = vmatpush1.msra.mxu0 0.0
    %154 = vmatprep.subr.mxu0 0.0
    %155 = vmatpush1.msra.mxu0 0.0
    %156 = vmatprep.subr.mxu0 0.0
    %157 = vmatpush1.msra.mxu0 0.0
    %158 = vmatprep.mubr.f32.mxu0 0.0
    %159 = vmatmul.mubr.f32.gmra.mrb[0].mxu0 %v92
    %v160 = vpop.f32.mrb[0].mxu0
    %v161 = vadd.f32 0.0, %v160
    %v162 = vpop.f32.mrb[0].mxu0
    %163 = vdwg.mxu0
    %v164 = vadd.f32 %v89, %v161
    %v165 = vtanh.pop %v164
    %v166 = vxor.u32 %v164, 2147483648
    %v167 = vmul.f32 %v166, 1.442695
    %v168 = vpow.pop %v167
    %v169 = vadd.f32 %v168, 1.0
    %v170 = vrcp.pop %v169
    %v171 = vmul.f32 1.0, %v170
    %v172 = vsel %vm82, %v165, %v171
    %174 = vrot.lane.b32.xlu0 %v88, 32
    %v175 = vpop.permute.xlu0 %174
    %v177 = vmul.f32 %v172, %v175
    %179 = vrot.lane.b32.xlu0 %v172, 64
    %v180 = vpop.permute.xlu0 %179
    %v182 = vmul.f32 %v172, %v180
    %184 = vrot.lane.b32.xlu0 %v182, 32
    %v185 = vpop.permute.xlu0 %184
    %v187 = vadd.f32 %v177, %v185
    %v188 = vtanh.pop %v187
    %190 = vrot.lane.b32.xlu0 %v188, 64
    %v191 = vpop.permute.xlu0 %190
    %v193 = vmul.f32 %v172, %v191
    %195 = vrot.lane.b32.xlu0 %v193, 32
    %v196 = vpop.permute.xlu0 %195
    %198 = vst.msk [vmem:[#allocation3] sm:$0xff] %vm90, %v196
    %s199 = scalar_lea.vmem [#allocation7], 8
    %v200 = vld [vmem:[%s199] sm:$0xff]
    %v201 = vsel %vm90, %v196, 0
    %203 = vmatprep.subr.mxu0 0.0
    %204 = vmatpush1.msra.mxu0 %v83
    %205 = vmatprep.subr.mxu0 0.0
    %206 = vmatpush1.msra.mxu0 %v84
    %207 = vmatprep.subr.mxu0 0.0
    %208 = vmatpush1.msra.mxu0 %v85
    %209 = vmatprep.subr.mxu0 0.0
    %210 = vmatpush1.msra.mxu0 %v86
    %211 = vmatprep.subr.mxu0 0.0
    %212 = vmatpush1.msra.mxu0 0.0
    %213 = vmatprep.subr.mxu0 0.0
    %214 = vmatpush1.msra.mxu0 0.0
    %215 = vmatprep.subr.mxu0 0.0
    %216 = vmatpush1.msra.mxu0 0.0
    %217 = vmatprep.subr.mxu0 0.0
    %218 = vmatpush1.msra.mxu0 0.0
    %219 = vmatprep.subr.mxu0 0.0
    %220 = vmatpush1.msra.mxu0 0.0
    %221 = vmatprep.subr.mxu0 0.0
    %222 = vmatpush1.msra.mxu0 0.0
    %223 = vmatprep.subr.mxu0 0.0
    %224 = vmatpush1.msra.mxu0 0.0
    %225 = vmatprep.subr.mxu0 0.0
    %226 = vmatpush1.msra.mxu0 0.0
    %227 = vmatprep.subr.mxu0 0.0
    %228 = vmatpush1.msra.mxu0 0.0
    %229 = vmatprep.subr.mxu0 0.0
    %230 = vmatpush1.msra.mxu0 0.0
    %231 = vmatprep.subr.mxu0 0.0
    %232 = vmatpush1.msra.mxu0 0.0
    %233 = vmatprep.subr.mxu0 0.0
    %234 = vmatpush1.msra.mxu0 0.0
    %235 = vmatprep.subr.mxu0 0.0
    %236 = vmatpush1.msra.mxu0 0.0
    %237 = vmatprep.subr.mxu0 0.0
    %238 = vmatpush1.msra.mxu0 0.0
    %239 = vmatprep.subr.mxu0 0.0
    %240 = vmatpush1.msra.mxu0 0.0
    %241 = vmatprep.subr.mxu0 0.0
    %242 = vmatpush1.msra.mxu0 0.0
    %243 = vmatprep.subr.mxu0 0.0
    %244 = vmatpush1.msra.mxu0 0.0
    %245 = vmatprep.subr.mxu0 0.0
    %246 = vmatpush1.msra.mxu0 0.0
    %247 = vmatprep.subr.mxu0 0.0
    %248 = vmatpush1.msra.mxu0 0.0
    %249 = vmatprep.subr.mxu0 0.0
    %250 = vmatpush1.msra.mxu0 0.0
    %251 = vmatprep.subr.mxu0 0.0
    %252 = vmatpush1.msra.mxu0 0.0
    %253 = vmatprep.subr.mxu0 0.0
    %254 = vmatpush1.msra.mxu0 0.0
    %255 = vmatprep.subr.mxu0 0.0
    %256 = vmatpush1.msra.mxu0 0.0
    %257 = vmatprep.subr.mxu0 0.0
    %258 = vmatpush1.msra.mxu0 0.0
    %259 = vmatprep.subr.mxu0 0.0
    %260 = vmatpush1.msra.mxu0 0.0
    %261 = vmatprep.subr.mxu0 0.0
    %262 = vmatpush1.msra.mxu0 0.0
    %263 = vmatprep.subr.mxu0 0.0
    %264 = vmatpush1.msra.mxu0 0.0
    %265 = vmatprep.subr.mxu0 0.0
    %266 = vmatpush1.msra.mxu0 0.0
    %267 = vmatprep.mubr.f32.mxu0 0.0
    %268 = vmatmul.mubr.f32.gmra.mrb[0].mxu0 %v201
    %v269 = vpop.f32.mrb[0].mxu0
    %v270 = vadd.f32 0.0, %v269
    %v271 = vpop.f32.mrb[0].mxu0
    %272 = vdwg.mxu0
    %v273 = vadd.f32 %v200, %v270
    %v274 = vtanh.pop %v273
    %v275 = vxor.u32 %v273, 2147483648
    %v276 = vmul.f32 %v275, 1.442695
    %v277 = vpow.pop %v276
    %v278 = vadd.f32 %v277, 1.0
    %v279 = vrcp.pop %v278
    %v280 = vmul.f32 1.0, %v279
    %v281 = vsel %vm82, %v274, %v280
    %v282 = vmul.f32 %v281, %v187
    %284 = vrot.lane.b32.xlu0 %v281, 64
    %v285 = vpop.permute.xlu0 %284
    %v287 = vmul.f32 %v281, %v285
    %289 = vrot.lane.b32.xlu0 %v287, 32
    %v290 = vpop.permute.xlu0 %289
    %v292 = vadd.f32 %v282, %v290
    %v293 = vtanh.pop %v292
    %295 = vrot.lane.b32.xlu0 %v293, 64
    %v296 = vpop.permute.xlu0 %295
    %v298 = vmul.f32 %v281, %v296
    %300 = vrot.lane.b32.xlu0 %v298, 32
    %v301 = vpop.permute.xlu0 %300
    %s303 = scalar_lea.vmem [#allocation3], 8
    %304 = vst.msk [vmem:[%s303] sm:$0xff] %vm90, %v301
    %s305 = scalar_lea.vmem [#allocation7], 16
    %v306 = vld [vmem:[%s305] sm:$0xff]
    %v307 = vsel %vm90, %v301, 0
    %309 = vmatprep.subr.mxu0 0.0
    %310 = vmatpush1.msra.mxu0 %v83
    %311 = vmatprep.subr.mxu0 0.0
    %312 = vmatpush1.msra.mxu0 %v84
    %313 = vmatprep.subr.mxu0 0.0
    %314 = vmatpush1.msra.mxu0 %v85
    %315 = vmatprep.subr.mxu0 0.0
    %316 = vmatpush1.msra.mxu0 %v86
    %317 = vmatprep.subr.mxu0 0.0
    %318 = vmatpush1.msra.mxu0 0.0
    %319 = vmatprep.subr.mxu0 0.0
    %320 = vmatpush1.msra.mxu0 0.0
    %321 = vmatprep.subr.mxu0 0.0
    %322 = vmatpush1.msra.mxu0 0.0
    %323 = vmatprep.subr.mxu0 0.0
    %324 = vmatpush1.msra.mxu0 0.0
    %325 = vmatprep.subr.mxu0 0.0
    %326 = vmatpush1.msra.mxu0 0.0
    %327 = vmatprep.subr.mxu0 0.0
    %328 = vmatpush1.msra.mxu0 0.0
    %329 = vmatprep.subr.mxu0 0.0
    %330 = vmatpush1.msra.mxu0 0.0
    %331 = vmatprep.subr.mxu0 0.0
    %332 = vmatpush1.msra.mxu0 0.0
    %333 = vmatprep.subr.mxu0 0.0
    %334 = vmatpush1.msra.mxu0 0.0
    %335 = vmatprep.subr.mxu0 0.0
    %336 = vmatpush1.msra.mxu0 0.0
    %337 = vmatprep.subr.mxu0 0.0
    %338 = vmatpush1.msra.mxu0 0.0
    %339 = vmatprep.subr.mxu0 0.0
    %340 = vmatpush1.msra.mxu0 0.0
    %341 = vmatprep.subr.mxu0 0.0
    %342 = vmatpush1.msra.mxu0 0.0
    %343 = vmatprep.subr.mxu0 0.0
    %344 = vmatpush1.msra.mxu0 0.0
    %345 = vmatprep.subr.mxu0 0.0
    %346 = vmatpush1.msra.mxu0 0.0
    %347 = vmatprep.subr.mxu0 0.0
    %348 = vmatpush1.msra.mxu0 0.0
    %349 = vmatprep.subr.mxu0 0.0
    %350 = vmatpush1.msra.mxu0 0.0
    %351 = vmatprep.subr.mxu0 0.0
    %352 = vmatpush1.msra.mxu0 0.0
    %353 = vmatprep.subr.mxu0 0.0
    %354 = vmatpush1.msra.mxu0 0.0
    %355 = vmatprep.subr.mxu0 0.0
    %356 = vmatpush1.msra.mxu0 0.0
    %357 = vmatprep.subr.mxu0 0.0
    %358 = vmatpush1.msra.mxu0 0.0
    %359 = vmatprep.subr.mxu0 0.0
    %360 = vmatpush1.msra.mxu0 0.0
    %361 = vmatprep.subr.mxu0 0.0
    %362 = vmatpush1.msra.mxu0 0.0
    %363 = vmatprep.subr.mxu0 0.0
    %364 = vmatpush1.msra.mxu0 0.0
    %365 = vmatprep.subr.mxu0 0.0
    %366 = vmatpush1.msra.mxu0 0.0
    %367 = vmatprep.subr.mxu0 0.0
    %368 = vmatpush1.msra.mxu0 0.0
    %369 = vmatprep.subr.mxu0 0.0
    %370 = vmatpush1.msra.mxu0 0.0
    %371 = vmatprep.subr.mxu0 0.0
    %372 = vmatpush1.msra.mxu0 0.0
    %373 = vmatprep.mubr.f32.mxu0 0.0
    %374 = vmatmul.mubr.f32.gmra.mrb[0].mxu0 %v307
    %v375 = vpop.f32.mrb[0].mxu0
    %v376 = vadd.f32 0.0, %v375
    %v377 = vpop.f32.mrb[0].mxu0
    %378 = vdwg.mxu0
    %v379 = vadd.f32 %v306, %v376
    %v380 = vtanh.pop %v379
    %v381 = vxor.u32 %v379, 2147483648
    %v382 = vmul.f32 %v381, 1.442695
    %v383 = vpow.pop %v382
    %v384 = vadd.f32 %v383, 1.0
    %v385 = vrcp.pop %v384
    %v386 = vmul.f32 1.0, %v385
    %v387 = vsel %vm82, %v380, %v386
    %v388 = vmul.f32 %v387, %v292
    %390 = vrot.lane.b32.xlu0 %v387, 64
    %v391 = vpop.permute.xlu0 %390
    %v393 = vmul.f32 %v387, %v391
    %395 = vrot.lane.b32.xlu0 %v393, 32
    %v396 = vpop.permute.xlu0 %395
    %v398 = vadd.f32 %v388, %v396
    %v399 = vtanh.pop %v398
    %401 = vrot.lane.b32.xlu0 %v399, 64
    %v402 = vpop.permute.xlu0 %401
    %v404 = vmul.f32 %v387, %v402
    %406 = vrot.lane.b32.xlu0 %v404, 32
    %v407 = vpop.permute.xlu0 %406
    %s409 = scalar_lea.vmem [#allocation3], 16
    %410 = vst.msk [vmem:[%s409] sm:$0xff] %vm90, %v407
    %s411 = scalar_lea.vmem [#allocation7], 24
    %v412 = vld [vmem:[%s411] sm:$0xff]
    %v413 = vsel %vm90, %v407, 0
    %415 = vmatprep.subr.mxu0 0.0
    %416 = vmatpush1.msra.mxu0 %v83
    %417 = vmatprep.subr.mxu0 0.0
    %418 = vmatpush1.msra.mxu0 %v84
    %419 = vmatprep.subr.mxu0 0.0
    %420 = vmatpush1.msra.mxu0 %v85
    %421 = vmatprep.subr.mxu0 0.0
    %422 = vmatpush1.msra.mxu0 %v86
    %423 = vmatprep.subr.mxu0 0.0
    %424 = vmatpush1.msra.mxu0 0.0
    %425 = vmatprep.subr.mxu0 0.0
    %426 = vmatpush1.msra.mxu0 0.0
    %427 = vmatprep.subr.mxu0 0.0
    %428 = vmatpush1.msra.mxu0 0.0
    %429 = vmatprep.subr.mxu0 0.0
    %430 = vmatpush1.msra.mxu0 0.0
    %431 = vmatprep.subr.mxu0 0.0
    %432 = vmatpush1.msra.mxu0 0.0
    %433 = vmatprep.subr.mxu0 0.0
    %434 = vmatpush1.msra.mxu0 0.0
    %435 = vmatprep.subr.mxu0 0.0
    %436 = vmatpush1.msra.mxu0 0.0
    %437 = vmatprep.subr.mxu0 0.0
    %438 = vmatpush1.msra.mxu0 0.0
    %439 = vmatprep.subr.mxu0 0.0
    %440 = vmatpush1.msra.mxu0 0.0
    %441 = vmatprep.subr.mxu0 0.0
    %442 = vmatpush1.msra.mxu0 0.0
    %443 = vmatprep.subr.mxu0 0.0
    %444 = vmatpush1.msra.mxu0 0.0
    %445 = vmatprep.subr.mxu0 0.0
    %446 = vmatpush1.msra.mxu0 0.0
    %447 = vmatprep.subr.mxu0 0.0
    %448 = vmatpush1.msra.mxu0 0.0
    %449 = vmatprep.subr.mxu0 0.0
    %450 = vmatpush1.msra.mxu0 0.0
    %451 = vmatprep.subr.mxu0 0.0
    %452 = vmatpush1.msra.mxu0 0.0
    %453 = vmatprep.subr.mxu0 0.0
    %454 = vmatpush1.msra.mxu0 0.0
    %455 = vmatprep.subr.mxu0 0.0
    %456 = vmatpush1.msra.mxu0 0.0
    %457 = vmatprep.subr.mxu0 0.0
    %458 = vmatpush1.msra.mxu0 0.0
    %459 = vmatprep.subr.mxu0 0.0
    %460 = vmatpush1.msra.mxu0 0.0
    %461 = vmatprep.subr.mxu0 0.0
    %462 = vmatpush1.msra.mxu0 0.0
    %463 = vmatprep.subr.mxu0 0.0
    %464 = vmatpush1.msra.mxu0 0.0
    %465 = vmatprep.subr.mxu0 0.0
    %466 = vmatpush1.msra.mxu0 0.0
    %467 = vmatprep.subr.mxu0 0.0
    %468 = vmatpush1.msra.mxu0 0.0
    %469 = vmatprep.subr.mxu0 0.0
    %470 = vmatpush1.msra.mxu0 0.0
    %471 = vmatprep.subr.mxu0 0.0
    %472 = vmatpush1.msra.mxu0 0.0
    %473 = vmatprep.subr.mxu0 0.0
    %474 = vmatpush1.msra.mxu0 0.0
    %475 = vmatprep.subr.mxu0 0.0
    %476 = vmatpush1.msra.mxu0 0.0
    %477 = vmatprep.subr.mxu0 0.0
    %478 = vmatpush1.msra.mxu0 0.0
    %479 = vmatprep.mubr.f32.mxu0 0.0
    %480 = vmatmul.mubr.f32.gmra.mrb[0].mxu0 %v413
    %v481 = vpop.f32.mrb[0].mxu0
    %v482 = vadd.f32 0.0, %v481
    %v483 = vpop.f32.mrb[0].mxu0
    %484 = vdwg.mxu0
    %v485 = vadd.f32 %v412, %v482
    %v486 = vtanh.pop %v485
    %v487 = vxor.u32 %v485, 2147483648
    %v488 = vmul.f32 %v487, 1.442695
    %v489 = vpow.pop %v488
    %v490 = vadd.f32 %v489, 1.0
    %v491 = vrcp.pop %v490
    %v492 = vmul.f32 1.0, %v491
    %v493 = vsel %vm82, %v486, %v492
    %v494 = vmul.f32 %v493, %v398
    %496 = vrot.lane.b32.xlu0 %v493, 64
    %v497 = vpop.permute.xlu0 %496
    %v499 = vmul.f32 %v493, %v497
    %501 = vrot.lane.b32.xlu0 %v499, 32
    %v502 = vpop.permute.xlu0 %501
    %v504 = vadd.f32 %v494, %v502
    %v505 = vtanh.pop %v504
    %507 = vrot.lane.b32.xlu0 %v505, 64
    %v508 = vpop.permute.xlu0 %507
    %v510 = vmul.f32 %v493, %v508
    %512 = vrot.lane.b32.xlu0 %v510, 32
    %v513 = vpop.permute.xlu0 %512
    %s515 = scalar_lea.vmem [#allocation3], 24
    %516 = vst.msk [vmem:[%s515] sm:$0xff] %vm90, %v513
    %s517 = scalar_lea.vmem [#allocation7], 32
    %v518 = vld [vmem:[%s517] sm:$0xff]
    %v519 = vsel %vm90, %v513, 0
    %521 = vmatprep.subr.mxu0 0.0
    %522 = vmatpush1.msra.mxu0 %v83
    %523 = vmatprep.subr.mxu0 0.0
    %524 = vmatpush1.msra.mxu0 %v84
    %525 = vmatprep.subr.mxu0 0.0
    %526 = vmatpush1.msra.mxu0 %v85
    %527 = vmatprep.subr.mxu0 0.0
    %528 = vmatpush1.msra.mxu0 %v86
    %529 = vmatprep.subr.mxu0 0.0
    %530 = vmatpush1.msra.mxu0 0.0
    %531 = vmatprep.subr.mxu0 0.0
    %532 = vmatpush1.msra.mxu0 0.0
    %533 = vmatprep.subr.mxu0 0.0
    %534 = vmatpush1.msra.mxu0 0.0
    %535 = vmatprep.subr.mxu0 0.0
    %536 = vmatpush1.msra.mxu0 0.0
    %537 = vmatprep.subr.mxu0 0.0
    %538 = vmatpush1.msra.mxu0 0.0
    %539 = vmatprep.subr.mxu0 0.0
    %540 = vmatpush1.msra.mxu0 0.0
    %541 = vmatprep.subr.mxu0 0.0
    %542 = vmatpush1.msra.mxu0 0.0
    %543 = vmatprep.subr.mxu0 0.0
    %544 = vmatpush1.msra.mxu0 0.0
    %545 = vmatprep.subr.mxu0 0.0
    %546 = vmatpush1.msra.mxu0 0.0
    %547 = vmatprep.subr.mxu0 0.0
    %548 = vmatpush1.msra.mxu0 0.0
    %549 = vmatprep.subr.mxu0 0.0
    %550 = vmatpush1.msra.mxu0 0.0
    %551 = vmatprep.subr.mxu0 0.0
    %552 = vmatpush1.msra.mxu0 0.0
    %553 = vmatprep.subr.mxu0 0.0
    %554 = vmatpush1.msra.mxu0 0.0
    %555 = vmatprep.subr.mxu0 0.0
    %556 = vmatpush1.msra.mxu0 0.0
    %557 = vmatprep.subr.mxu0 0.0
    %558 = vmatpush1.msra.mxu0 0.0
    %559 = vmatprep.subr.mxu0 0.0
    %560 = vmatpush1.msra.mxu0 0.0
    %561 = vmatprep.subr.mxu0 0.0
    %562 = vmatpush1.msra.mxu0 0.0
    %563 = vmatprep.subr.mxu0 0.0
    %564 = vmatpush1.msra.mxu0 0.0
    %565 = vmatprep.subr.mxu0 0.0
    %566 = vmatpush1.msra.mxu0 0.0
    %567 = vmatprep.subr.mxu0 0.0
    %568 = vmatpush1.msra.mxu0 0.0
    %569 = vmatprep.subr.mxu0 0.0
    %570 = vmatpush1.msra.mxu0 0.0
    %571 = vmatprep.subr.mxu0 0.0
    %572 = vmatpush1.msra.mxu0 0.0
    %573 = vmatprep.subr.mxu0 0.0
    %574 = vmatpush1.msra.mxu0 0.0
    %575 = vmatprep.subr.mxu0 0.0
    %576 = vmatpush1.msra.mxu0 0.0
    %577 = vmatprep.subr.mxu0 0.0
    %578 = vmatpush1.msra.mxu0 0.0
    %579 = vmatprep.subr.mxu0 0.0
    %580 = vmatpush1.msra.mxu0 0.0
    %581 = vmatprep.subr.mxu0 0.0
    %582 = vmatpush1.msra.mxu0 0.0
    %583 = vmatprep.subr.mxu0 0.0
    %584 = vmatpush1.msra.mxu0 0.0
    %585 = vmatprep.mubr.f32.mxu0 0.0
    %586 = vmatmul.mubr.f32.gmra.mrb[0].mxu0 %v519
    %v587 = vpop.f32.mrb[0].mxu0
    %v588 = vadd.f32 0.0, %v587
    %v589 = vpop.f32.mrb[0].mxu0
    %590 = vdwg.mxu0
    %v591 = vadd.f32 %v518, %v588
    %v592 = vtanh.pop %v591
    %v593 = vxor.u32 %v591, 2147483648
    %v594 = vmul.f32 %v593, 1.442695
    %v595 = vpow.pop %v594
    %v596 = vadd.f32 %v595, 1.0
    %v597 = vrcp.pop %v596
    %v598 = vmul.f32 1.0, %v597
    %v599 = vsel %vm82, %v592, %v598
    %v600 = vmul.f32 %v599, %v504
    %602 = vrot.lane.b32.xlu0 %v599, 64
    %v603 = vpop.permute.xlu0 %602
    %v605 = vmul.f32 %v599, %v603
    %607 = vrot.lane.b32.xlu0 %v605, 32
    %v608 = vpop.permute.xlu0 %607
    %v610 = vadd.f32 %v600, %v608
    %v611 = vtanh.pop %v610
    %613 = vrot.lane.b32.xlu0 %v611, 64
    %v614 = vpop.permute.xlu0 %613
    %v616 = vmul.f32 %v599, %v614
    %618 = vrot.lane.b32.xlu0 %v616, 32
    %v619 = vpop.permute.xlu0 %618
    %s621 = scalar_lea.vmem [#allocation3], 32
    %622 = vst.msk [vmem:[%s621] sm:$0xff] %vm90, %v619
    %s623 = scalar_lea.vmem [#allocation7], 40
    %v624 = vld [vmem:[%s623] sm:$0xff]
    %v625 = vsel %vm90, %v619, 0
    %627 = vmatprep.subr.mxu0 0.0
    %628 = vmatpush1.msra.mxu0 %v83
    %629 = vmatprep.subr.mxu0 0.0
    %630 = vmatpush1.msra.mxu0 %v84
    %631 = vmatprep.subr.mxu0 0.0
    %632 = vmatpush1.msra.mxu0 %v85
    %633 = vmatprep.subr.mxu0 0.0
    %634 = vmatpush1.msra.mxu0 %v86
    %635 = vmatprep.subr.mxu0 0.0
    %636 = vmatpush1.msra.mxu0 0.0
    %637 = vmatprep.subr.mxu0 0.0
    %638 = vmatpush1.msra.mxu0 0.0
    %639 = vmatprep.subr.mxu0 0.0
    %640 = vmatpush1.msra.mxu0 0.0
    %641 = vmatprep.subr.mxu0 0.0
    %642 = vmatpush1.msra.mxu0 0.0
    %643 = vmatprep.subr.mxu0 0.0
    %644 = vmatpush1.msra.mxu0 0.0
    %645 = vmatprep.subr.mxu0 0.0
    %646 = vmatpush1.msra.mxu0 0.0
    %647 = vmatprep.subr.mxu0 0.0
    %648 = vmatpush1.msra.mxu0 0.0
    %649 = vmatprep.subr.mxu0 0.0
    %650 = vmatpush1.msra.mxu0 0.0
    %651 = vmatprep.subr.mxu0 0.0
    %652 = vmatpush1.msra.mxu0 0.0
    %653 = vmatprep.subr.mxu0 0.0
    %654 = vmatpush1.msra.mxu0 0.0
    %655 = vmatprep.subr.mxu0 0.0
    %656 = vmatpush1.msra.mxu0 0.0
    %657 = vmatprep.subr.mxu0 0.0
    %658 = vmatpush1.msra.mxu0 0.0
    %659 = vmatprep.subr.mxu0 0.0
    %660 = vmatpush1.msra.mxu0 0.0
    %661 = vmatprep.subr.mxu0 0.0
    %662 = vmatpush1.msra.mxu0 0.0
    %663 = vmatprep.subr.mxu0 0.0
    %664 = vmatpush1.msra.mxu0 0.0
    %665 = vmatprep.subr.mxu0 0.0
    %666 = vmatpush1.msra.mxu0 0.0
    %667 = vmatprep.subr.mxu0 0.0
    %668 = vmatpush1.msra.mxu0 0.0
    %669 = vmatprep.subr.mxu0 0.0
    %670 = vmatpush1.msra.mxu0 0.0
    %671 = vmatprep.subr.mxu0 0.0
    %672 = vmatpush1.msra.mxu0 0.0
    %673 = vmatprep.subr.mxu0 0.0
    %674 = vmatpush1.msra.mxu0 0.0
    %675 = vmatprep.subr.mxu0 0.0
    %676 = vmatpush1.msra.mxu0 0.0
    %677 = vmatprep.subr.mxu0 0.0
    %678 = vmatpush1.msra.mxu0 0.0
    %679 = vmatprep.subr.mxu0 0.0
    %680 = vmatpush1.msra.mxu0 0.0
    %681 = vmatprep.subr.mxu0 0.0
    %682 = vmatpush1.msra.mxu0 0.0
    %683 = vmatprep.subr.mxu0 0.0
    %684 = vmatpush1.msra.mxu0 0.0
    %685 = vmatprep.subr.mxu0 0.0
    %686 = vmatpush1.msra.mxu0 0.0
    %687 = vmatprep.subr.mxu0 0.0
    %688 = vmatpush1.msra.mxu0 0.0
    %689 = vmatprep.subr.mxu0 0.0
    %690 = vmatpush1.msra.mxu0 0.0
    %691 = vmatprep.mubr.f32.mxu0 0.0
    %692 = vmatmul.mubr.f32.gmra.mrb[0].mxu0 %v625
    %v693 = vpop.f32.mrb[0].mxu0
    %v694 = vadd.f32 0.0, %v693
    %v695 = vpop.f32.mrb[0].mxu0
    %696 = vdwg.mxu0
    %v697 = vadd.f32 %v624, %v694
    %v698 = vtanh.pop %v697
    %v699 = vxor.u32 %v697, 2147483648
    %v700 = vmul.f32 %v699, 1.442695
    %v701 = vpow.pop %v700
    %v702 = vadd.f32 %v701, 1.0
    %v703 = vrcp.pop %v702
    %v704 = vmul.f32 1.0, %v703
    %v705 = vsel %vm82, %v698, %v704
    %v706 = vmul.f32 %v705, %v610
    %708 = vrot.lane.b32.xlu0 %v705, 64
    %v709 = vpop.permute.xlu0 %708
    %v711 = vmul.f32 %v705, %v709
    %713 = vrot.lane.b32.xlu0 %v711, 32
    %v714 = vpop.permute.xlu0 %713
    %v716 = vadd.f32 %v706, %v714
    %v717 = vtanh.pop %v716
    %719 = vrot.lane.b32.xlu0 %v717, 64
    %v720 = vpop.permute.xlu0 %719
    %v722 = vmul.f32 %v705, %v720
    %724 = vrot.lane.b32.xlu0 %v722, 32
    %v725 = vpop.permute.xlu0 %724
    %s727 = scalar_lea.vmem [#allocation3], 40
    %728 = vst.msk [vmem:[%s727] sm:$0xff] %vm90, %v725
    %s729 = scalar_lea.vmem [#allocation7], 48
    %v730 = vld [vmem:[%s729] sm:$0xff]
    %v731 = vsel %vm90, %v725, 0
    %733 = vmatprep.subr.mxu0 0.0
    %734 = vmatpush1.msra.mxu0 %v83
    %735 = vmatprep.subr.mxu0 0.0
    %736 = vmatpush1.msra.mxu0 %v84
    %737 = vmatprep.subr.mxu0 0.0
    %738 = vmatpush1.msra.mxu0 %v85
    %739 = vmatprep.subr.mxu0 0.0
    %740 = vmatpush1.msra.mxu0 %v86
    %741 = vmatprep.subr.mxu0 0.0
    %742 = vmatpush1.msra.mxu0 0.0
    %743 = vmatprep.subr.mxu0 0.0
    %744 = vmatpush1.msra.mxu0 0.0
    %745 = vmatprep.subr.mxu0 0.0
    %746 = vmatpush1.msra.mxu0 0.0
    %747 = vmatprep.subr.mxu0 0.0
    %748 = vmatpush1.msra.mxu0 0.0
    %749 = vmatprep.subr.mxu0 0.0
    %750 = vmatpush1.msra.mxu0 0.0
    %751 = vmatprep.subr.mxu0 0.0
    %752 = vmatpush1.msra.mxu0 0.0
    %753 = vmatprep.subr.mxu0 0.0
    %754 = vmatpush1.msra.mxu0 0.0
    %755 = vmatprep.subr.mxu0 0.0
    %756 = vmatpush1.msra.mxu0 0.0
    %757 = vmatprep.subr.mxu0 0.0
    %758 = vmatpush1.msra.mxu0 0.0
    %759 = vmatprep.subr.mxu0 0.0
    %760 = vmatpush1.msra.mxu0 0.0
    %761 = vmatprep.subr.mxu0 0.0
    %762 = vmatpush1.msra.mxu0 0.0
    %763 = vmatprep.subr.mxu0 0.0
    %764 = vmatpush1.msra.mxu0 0.0
    %765 = vmatprep.subr.mxu0 0.0
    %766 = vmatpush1.msra.mxu0 0.0
    %767 = vmatprep.subr.mxu0 0.0
    %768 = vmatpush1.msra.mxu0 0.0
    %769 = vmatprep.subr.mxu0 0.0
    %770 = vmatpush1.msra.mxu0 0.0
    %771 = vmatprep.subr.mxu0 0.0
    %772 = vmatpush1.msra.mxu0 0.0
    %773 = vmatprep.subr.mxu0 0.0
    %774 = vmatpush1.msra.mxu0 0.0
    %775 = vmatprep.subr.mxu0 0.0
    %776 = vmatpush1.msra.mxu0 0.0
    %777 = vmatprep.subr.mxu0 0.0
    %778 = vmatpush1.msra.mxu0 0.0
    %779 = vmatprep.subr.mxu0 0.0
    %780 = vmatpush1.msra.mxu0 0.0
    %781 = vmatprep.subr.mxu0 0.0
    %782 = vmatpush1.msra.mxu0 0.0
    %783 = vmatprep.subr.mxu0 0.0
    %784 = vmatpush1.msra.mxu0 0.0
    %785 = vmatprep.subr.mxu0 0.0
    %786 = vmatpush1.msra.mxu0 0.0
    %787 = vmatprep.subr.mxu0 0.0
    %788 = vmatpush1.msra.mxu0 0.0
    %789 = vmatprep.subr.mxu0 0.0
    %790 = vmatpush1.msra.mxu0 0.0
    %791 = vmatprep.subr.mxu0 0.0
    %792 = vmatpush1.msra.mxu0 0.0
    %793 = vmatprep.subr.mxu0 0.0
    %794 = vmatpush1.msra.mxu0 0.0
    %795 = vmatprep.subr.mxu0 0.0
    %796 = vmatpush1.msra.mxu0 0.0
    %797 = vmatprep.mubr.f32.mxu0 0.0
    %798 = vmatmul.mubr.f32.gmra.mrb[0].mxu0 %v731
    %v799 = vpop.f32.mrb[0].mxu0
    %v800 = vadd.f32 0.0, %v799
    %v801 = vpop.f32.mrb[0].mxu0
    %802 = vdwg.mxu0
    %v803 = vadd.f32 %v730, %v800
    %v804 = vtanh.pop %v803
    %v805 = vxor.u32 %v803, 2147483648
    %v806 = vmul.f32 %v805, 1.442695
    %v807 = vpow.pop %v806
    %v808 = vadd.f32 %v807, 1.0
    %v809 = vrcp.pop %v808
    %v810 = vmul.f32 1.0, %v809
    %v811 = vsel %vm82, %v804, %v810
    %v812 = vmul.f32 %v811, %v716
    %814 = vrot.lane.b32.xlu0 %v811, 64
    %v815 = vpop.permute.xlu0 %814
    %v817 = vmul.f32 %v811, %v815
    %819 = vrot.lane.b32.xlu0 %v817, 32
    %v820 = vpop.permute.xlu0 %819
    %v822 = vadd.f32 %v812, %v820
    %v823 = vtanh.pop %v822
    %825 = vrot.lane.b32.xlu0 %v823, 64
    %v826 = vpop.permute.xlu0 %825
    %v828 = vmul.f32 %v811, %v826
    %830 = vrot.lane.b32.xlu0 %v828, 32
    %v831 = vpop.permute.xlu0 %830
    %s833 = scalar_lea.vmem [#allocation3], 48
    %834 = vst.msk [vmem:[%s833] sm:$0xff] %vm90, %v831
    %s835 = scalar_lea.vmem [#allocation7], 56
    %v836 = vld [vmem:[%s835] sm:$0xff]
    %v837 = vsel %vm90, %v831, 0
    %839 = vmatprep.subr.mxu0 0.0
    %840 = vmatpush1.msra.mxu0 %v83
    %841 = vmatprep.subr.mxu0 0.0
    %842 = vmatpush1.msra.mxu0 %v84
    %843 = vmatprep.subr.mxu0 0.0
    %844 = vmatpush1.msra.mxu0 %v85
    %845 = vmatprep.subr.mxu0 0.0
    %846 = vmatpush1.msra.mxu0 %v86
    %847 = vmatprep.subr.mxu0 0.0
    %848 = vmatpush1.msra.mxu0 0.0
    %849 = vmatprep.subr.mxu0 0.0
    %850 = vmatpush1.msra.mxu0 0.0
    %851 = vmatprep.subr.mxu0 0.0
    %852 = vmatpush1.msra.mxu0 0.0
    %853 = vmatprep.subr.mxu0 0.0
    %854 = vmatpush1.msra.mxu0 0.0
    %855 = vmatprep.subr.mxu0 0.0
    %856 = vmatpush1.msra.mxu0 0.0
    %857 = vmatprep.subr.mxu0 0.0
    %858 = vmatpush1.msra.mxu0 0.0
    %859 = vmatprep.subr.mxu0 0.0
    %860 = vmatpush1.msra.mxu0 0.0
    %861 = vmatprep.subr.mxu0 0.0
    %862 = vmatpush1.msra.mxu0 0.0
    %863 = vmatprep.subr.mxu0 0.0
    %864 = vmatpush1.msra.mxu0 0.0
    %865 = vmatprep.subr.mxu0 0.0
    %866 = vmatpush1.msra.mxu0 0.0
    %867 = vmatprep.subr.mxu0 0.0
    %868 = vmatpush1.msra.mxu0 0.0
    %869 = vmatprep.subr.mxu0 0.0
    %870 = vmatpush1.msra.mxu0 0.0
    %871 = vmatprep.subr.mxu0 0.0
    %872 = vmatpush1.msra.mxu0 0.0
    %873 = vmatprep.subr.mxu0 0.0
    %874 = vmatpush1.msra.mxu0 0.0
    %875 = vmatprep.subr.mxu0 0.0
    %876 = vmatpush1.msra.mxu0 0.0
    %877 = vmatprep.subr.mxu0 0.0
    %878 = vmatpush1.msra.mxu0 0.0
    %879 = vmatprep.subr.mxu0 0.0
    %880 = vmatpush1.msra.mxu0 0.0
    %881 = vmatprep.subr.mxu0 0.0
    %882 = vmatpush1.msra.mxu0 0.0
    %883 = vmatprep.subr.mxu0 0.0
    %884 = vmatpush1.msra.mxu0 0.0
    %885 = vmatprep.subr.mxu0 0.0
    %886 = vmatpush1.msra.mxu0 0.0
    %887 = vmatprep.subr.mxu0 0.0
    %888 = vmatpush1.msra.mxu0 0.0
    %889 = vmatprep.subr.mxu0 0.0
    %890 = vmatpush1.msra.mxu0 0.0
    %891 = vmatprep.subr.mxu0 0.0
    %892 = vmatpush1.msra.mxu0 0.0
    %893 = vmatprep.subr.mxu0 0.0
    %894 = vmatpush1.msra.mxu0 0.0
    %895 = vmatprep.subr.mxu0 0.0
    %896 = vmatpush1.msra.mxu0 0.0
    %897 = vmatprep.subr.mxu0 0.0
    %898 = vmatpush1.msra.mxu0 0.0
    %899 = vmatprep.subr.mxu0 0.0
    %900 = vmatpush1.msra.mxu0 0.0
    %901 = vmatprep.subr.mxu0 0.0
    %902 = vmatpush1.msra.mxu0 0.0
    %903 = vmatprep.mubr.f32.mxu0 0.0
    %904 = vmatmul.mubr.f32.gmra.mrb[0].mxu0 %v837
    %v905 = vpop.f32.mrb[0].mxu0
    %v906 = vadd.f32 0.0, %v905
    %v907 = vpop.f32.mrb[0].mxu0
    %908 = vdwg.mxu0
    %v909 = vadd.f32 %v836, %v906
    %v910 = vtanh.pop %v909
    %v911 = vxor.u32 %v909, 2147483648
    %v912 = vmul.f32 %v911, 1.442695
    %v913 = vpow.pop %v912
    %v914 = vadd.f32 %v913, 1.0
    %v915 = vrcp.pop %v914
    %v916 = vmul.f32 1.0, %v915
    %v917 = vsel %vm82, %v910, %v916
    %v918 = vmul.f32 %v917, %v822
    %920 = vrot.lane.b32.xlu0 %v917, 64
    %v921 = vpop.permute.xlu0 %920
    %v923 = vmul.f32 %v917, %v921
    %925 = vrot.lane.b32.xlu0 %v923, 32
    %v926 = vpop.permute.xlu0 %925
    %v928 = vadd.f32 %v918, %v926
    %v929 = vtanh.pop %v928
    %931 = vrot.lane.b32.xlu0 %v929, 64
    %v932 = vpop.permute.xlu0 %931
    %v934 = vmul.f32 %v917, %v932
    %936 = vrot.lane.b32.xlu0 %v934, 32
    %v937 = vpop.permute.xlu0 %936
    %s939 = scalar_lea.vmem [#allocation3], 56
    %940 = vst.msk [vmem:[%s939] sm:$0xff] %vm90, %v937
    %941 = vst.msk [vmem:[#allocation4] sm:$0xff] %vm90, %v937
    %943 = vrot.lane.b32.xlu0 %v928, 96
    %v944 = vpop.permute.xlu0 %943
    %946 = vst.msk [vmem:[#allocation5] sm:$0xff] %vm90, %v944
    %v947 = vld [vmem:[#allocation3] sm:$0xff]
    %v948 = vld [vmem:[#allocation3 + $0x8] sm:$0xff]
    %v949 = vld [vmem:[#allocation3 + $0x10] sm:$0xff]
    %v950 = vld [vmem:[#allocation3 + $0x18] sm:$0xff]
    %v951 = vld [vmem:[#allocation3 + $0x20] sm:$0xff]
    %v952 = vld [vmem:[#allocation3 + $0x28] sm:$0xff]
    %v953 = vld [vmem:[#allocation3 + $0x30] sm:$0xff]
    %v954 = vld [vmem:[#allocation3 + $0x38] sm:$0xff]
    %v955 = vld [vmem:[#allocation9] sm:$0xff]
    %v956 = vld [vmem:[#allocation9 + $0x8] sm:$0xff]
    %v957 = vld [vmem:[#allocation9 + $0x10] sm:$0xff]
    %v958 = vld [vmem:[#allocation9 + $0x18] sm:$0xff]
    %v959 = vld [vmem:[%s4] sm:$0x1]
    %v961 = vlaneseq
    %v962 = vshrl.u32 %v961, 7
    %v963 = vsub.s32 0, %v962
    %v964 = vrot.slane %v959, %v963
    %v967 = vsel %vm90, %v947, 0
    %v970 = vsel %vm90, %v948, 0
    %v973 = vsel %vm90, %v949, 0
    %v976 = vsel %vm90, %v950, 0
    %v979 = vsel %vm90, %v951, 0
    %v982 = vsel %vm90, %v952, 0
    %v985 = vsel %vm90, %v953, 0
    %v988 = vsel %vm90, %v954, 0
    %990 = vmatprep.subr.mxu0 0.0
    %991 = vmatpush1.msra.mxu0 %v955
    %992 = vmatprep.subr.mxu0 0.0
    %993 = vmatpush1.msra.mxu0 %v956
    %994 = vmatprep.subr.mxu0 0.0
    %995 = vmatpush1.msra.mxu0 %v957
    %996 = vmatprep.subr.mxu0 0.0
    %997 = vmatpush1.msra.mxu0 %v958
    %998 = vmatprep.subr.mxu0 0.0
    %999 = vmatpush1.msra.mxu0 0.0
    %1000 = vmatprep.subr.mxu0 0.0
    %1001 = vmatpush1.msra.mxu0 0.0
    %1002 = vmatprep.subr.mxu0 0.0
    %1003 = vmatpush1.msra.mxu0 0.0
    %1004 = vmatprep.subr.mxu0 0.0
    %1005 = vmatpush1.msra.mxu0 0.0
    %1006 = vmatprep.subr.mxu0 0.0
    %1007 = vmatpush1.msra.mxu0 0.0
    %1008 = vmatprep.subr.mxu0 0.0
    %1009 = vmatpush1.msra.mxu0 0.0
    %1010 = vmatprep.subr.mxu0 0.0
    %1011 = vmatpush1.msra.mxu0 0.0
    %1012 = vmatprep.subr.mxu0 0.0
    %1013 = vmatpush1.msra.mxu0 0.0
    %1014 = vmatprep.subr.mxu0 0.0
    %1015 = vmatpush1.msra.mxu0 0.0
    %1016 = vmatprep.subr.mxu0 0.0
    %1017 = vmatpush1.msra.mxu0 0.0
    %1018 = vmatprep.subr.mxu0 0.0
    %1019 = vmatpush1.msra.mxu0 0.0
    %1020 = vmatprep.subr.mxu0 0.0
    %1021 = vmatpush1.msra.mxu0 0.0
    %1022 = vmatprep.subr.mxu0 0.0
    %1023 = vmatpush1.msra.mxu0 0.0
    %1024 = vmatprep.subr.mxu0 0.0
    %1025 = vmatpush1.msra.mxu0 0.0
    %1026 = vmatprep.subr.mxu0 0.0
    %1027 = vmatpush1.msra.mxu0 0.0
    %1028 = vmatprep.subr.mxu0 0.0
    %1029 = vmatpush1.msra.mxu0 0.0
    %1030 = vmatprep.subr.mxu0 0.0
    %1031 = vmatpush1.msra.mxu0 0.0
    %1032 = vmatprep.subr.mxu0 0.0
    %1033 = vmatpush1.msra.mxu0 0.0
    %1034 = vmatprep.subr.mxu0 0.0
    %1035 = vmatpush1.msra.mxu0 0.0
    %1036 = vmatprep.subr.mxu0 0.0
    %1037 = vmatpush1.msra.mxu0 0.0
    %1038 = vmatprep.subr.mxu0 0.0
    %1039 = vmatpush1.msra.mxu0 0.0
    %1040 = vmatprep.subr.mxu0 0.0
    %1041 = vmatpush1.msra.mxu0 0.0
    %1042 = vmatprep.subr.mxu0 0.0
    %1043 = vmatpush1.msra.mxu0 0.0
    %1044 = vmatprep.subr.mxu0 0.0
    %1045 = vmatpush1.msra.mxu0 0.0
    %1046 = vmatprep.subr.mxu0 0.0
    %1047 = vmatpush1.msra.mxu0 0.0
    %1048 = vmatprep.subr.mxu0 0.0
    %1049 = vmatpush1.msra.mxu0 0.0
    %1050 = vmatprep.subr.mxu0 0.0
    %1051 = vmatpush1.msra.mxu0 0.0
    %1052 = vmatprep.subr.mxu0 0.0
    %1053 = vmatpush1.msra.mxu0 0.0
    %1054 = vmatprep.mubr.f32.mxu0 0.0
    %1055 = vmatmul.mubr.f32.gmra.mrb[0].mxu0 %v967
    %v1056 = vpop.f32.mrb[0].mxu0
    %v1057 = vadd.f32 %v964, %v1056
    %v1058 = vpop.f32.mrb[0].mxu0
    %1059 = vmatprep.mubr.f32.mxu0 0.0
    %1060 = vmatmul.mubr.f32.gmra.mrb[0].mxu0 %v970
    %v1061 = vpop.f32.mrb[0].mxu0
    %v1062 = vadd.f32 %v964, %v1061
    %v1063 = vpop.f32.mrb[0].mxu0
    %1064 = vmatprep.mubr.f32.mxu0 0.0
    %1065 = vmatmul.mubr.f32.gmra.mrb[0].mxu0 %v973
    %v1066 = vpop.f32.mrb[0].mxu0
    %v1067 = vadd.f32 %v964, %v1066
    %v1068 = vpop.f32.mrb[0].mxu0
    %1069 = vmatprep.mubr.f32.mxu0 0.0
    %1070 = vmatmul.mubr.f32.gmra.mrb[0].mxu0 %v976
    %v1071 = vpop.f32.mrb[0].mxu0
    %v1072 = vadd.f32 %v964, %v1071
    %v1073 = vpop.f32.mrb[0].mxu0
    %1074 = vmatprep.mubr.f32.mxu0 0.0
    %1075 = vmatmul.mubr.f32.gmra.mrb[0].mxu0 %v979
    %v1076 = vpop.f32.mrb[0].mxu0
    %v1077 = vadd.f32 %v964, %v1076
    %v1078 = vpop.f32.mrb[0].mxu0
    %1079 = vmatprep.mubr.f32.mxu0 0.0
    %1080 = vmatmul.mubr.f32.gmra.mrb[0].mxu0 %v982
    %v1081 = vpop.f32.mrb[0].mxu0
    %v1082 = vadd.f32 %v964, %v1081
    %v1083 = vpop.f32.mrb[0].mxu0
    %1084 = vmatprep.mubr.f32.mxu0 0.0
    %1085 = vmatmul.mubr.f32.gmra.mrb[0].mxu0 %v985
    %v1086 = vpop.f32.mrb[0].mxu0
    %v1087 = vadd.f32 %v964, %v1086
    %v1088 = vpop.f32.mrb[0].mxu0
    %1089 = vmatprep.mubr.f32.mxu0 0.0
    %1090 = vmatmul.mubr.f32.gmra.mrb[0].mxu0 %v988
    %v1091 = vpop.f32.mrb[0].mxu0
    %v1092 = vadd.f32 %v964, %v1091
    %v1093 = vpop.f32.mrb[0].mxu0
    %1094 = vdwg.mxu0
    %1095 = vst [vmem:[#allocation2] sm:$0xff] %v1057
    %1096 = vst [vmem:[#allocation2 + $0x8] sm:$0xff] %v1062
    %1097 = vst [vmem:[#allocation2 + $0x10] sm:$0xff] %v1067
    %1098 = vst [vmem:[#allocation2 + $0x18] sm:$0xff] %v1072
    %1099 = vst [vmem:[#allocation2 + $0x20] sm:$0xff] %v1077
    %1100 = vst [vmem:[#allocation2 + $0x28] sm:$0xff] %v1082
    %1101 = vst [vmem:[#allocation2 + $0x30] sm:$0xff] %v1087
    %1102 = vst [vmem:[#allocation2 + $0x38] sm:$0xff] %v1092
    %v1103 = vld [vmem:[#allocation11] sm:$0xff]
    %v1104 = vld [vmem:[#allocation11 + $0x8] sm:$0xff]
    %v1105 = vld [vmem:[#allocation11 + $0x10] sm:$0xff]
    %v1106 = vld [vmem:[#allocation11 + $0x18] sm:$0xff]
    %s1107 = scalar_lea.vmem [#allocation4], 8
    %v1108 = vld [vmem:[%s1107] sm:$0xff]
    %s1109 = scalar_lea.vmem [#allocation5], 8
    %v1110 = vld [vmem:[%s1109] sm:$0xff]
    %v1111 = vld [vmem:[#allocation2] sm:$0xff]
    %v1113 = vsel %vm90, %v1108, 0
    %1115 = vmatprep.subr.mxu0 0.0
    %1116 = vmatpush1.msra.mxu0 %v1103
    %1117 = vmatprep.subr.mxu0 0.0
    %1118 = vmatpush1.msra.mxu0 %v1104
    %1119 = vmatprep.subr.mxu0 0.0
    %1120 = vmatpush1.msra.mxu0 %v1105
    %1121 = vmatprep.subr.mxu0 0.0
    %1122 = vmatpush1.msra.mxu0 %v1106
    %1123 = vmatprep.subr.mxu0 0.0
    %1124 = vmatpush1.msra.mxu0 0.0
    %1125 = vmatprep.subr.mxu0 0.0
    %1126 = vmatpush1.msra.mxu0 0.0
    %1127 = vmatprep.subr.mxu0 0.0
    %1128 = vmatpush1.msra.mxu0 0.0
    %1129 = vmatprep.subr.mxu0 0.0
    %1130 = vmatpush1.msra.mxu0 0.0
    %1131 = vmatprep.subr.mxu0 0.0
    %1132 = vmatpush1.msra.mxu0 0.0
    %1133 = vmatprep.subr.mxu0 0.0
    %1134 = vmatpush1.msra.mxu0 0.0
    %1135 = vmatprep.subr.mxu0 0.0
    %1136 = vmatpush1.msra.mxu0 0.0
    %1137 = vmatprep.subr.mxu0 0.0
    %1138 = vmatpush1.msra.mxu0 0.0
    %1139 = vmatprep.subr.mxu0 0.0
    %1140 = vmatpush1.msra.mxu0 0.0
    %1141 = vmatprep.subr.mxu0 0.0
    %1142 = vmatpush1.msra.mxu0 0.0
    %1143 = vmatprep.subr.mxu0 0.0
    %1144 = vmatpush1.msra.mxu0 0.0
    %1145 = vmatprep.subr.mxu0 0.0
    %1146 = vmatpush1.msra.mxu0 0.0
    %1147 = vmatprep.subr.mxu0 0.0
    %1148 = vmatpush1.msra.mxu0 0.0
    %1149 = vmatprep.subr.mxu0 0.0
    %1150 = vmatpush1.msra.mxu0 0.0
    %1151 = vmatprep.subr.mxu0 0.0
    %1152 = vmatpush1.msra.mxu0 0.0
    %1153 = vmatprep.subr.mxu0 0.0
    %1154 = vmatpush1.msra.mxu0 0.0
    %1155 = vmatprep.subr.mxu0 0.0
    %1156 = vmatpush1.msra.mxu0 0.0
    %1157 = vmatprep.subr.mxu0 0.0
    %1158 = vmatpush1.msra.mxu0 0.0
    %1159 = vmatprep.subr.mxu0 0.0
    %1160 = vmatpush1.msra.mxu0 0.0
    %1161 = vmatprep.subr.mxu0 0.0
    %1162 = vmatpush1.msra.mxu0 0.0
    %1163 = vmatprep.subr.mxu0 0.0
    %1164 = vmatpush1.msra.mxu0 0.0
    %1165 = vmatprep.subr.mxu0 0.0
    %1166 = vmatpush1.msra.mxu0 0.0
    %1167 = vmatprep.subr.mxu0 0.0
    %1168 = vmatpush1.msra.mxu0 0.0
    %1169 = vmatprep.subr.mxu0 0.0
    %1170 = vmatpush1.msra.mxu0 0.0
    %1171 = vmatprep.subr.mxu0 0.0
    %1172 = vmatpush1.msra.mxu0 0.0
    %1173 = vmatprep.subr.mxu0 0.0
    %1174 = vmatpush1.msra.mxu0 0.0
    %1175 = vmatprep.subr.mxu0 0.0
    %1176 = vmatpush1.msra.mxu0 0.0
    %1177 = vmatprep.subr.mxu0 0.0
    %1178 = vmatpush1.msra.mxu0 0.0
    %1179 = vmatprep.mubr.f32.mxu0 0.0
    %1180 = vmatmul.mubr.f32.gmra.mrb[0].mxu0 %v1113
    %v1181 = vpop.f32.mrb[0].mxu0
    %v1182 = vadd.f32 0.0, %v1181
    %v1183 = vpop.f32.mrb[0].mxu0
    %1184 = vdwg.mxu0
    %v1185 = vadd.f32 %v1111, %v1182
    %v1186 = vtanh.pop %v1185
    %v1187 = vxor.u32 %v1185, 2147483648
    %v1188 = vmul.f32 %v1187, 1.442695
    %v1189 = vpow.pop %v1188
    %v1190 = vadd.f32 %v1189, 1.0
    %v1191 = vrcp.pop %v1190
    %v1192 = vmul.f32 1.0, %v1191
    %v1193 = vsel %vm82, %v1186, %v1192
    %1195 = vrot.lane.b32.xlu0 %v1110, 32
    %v1196 = vpop.permute.xlu0 %1195
    %v1198 = vmul.f32 %v1193, %v1196
    %1200 = vrot.lane.b32.xlu0 %v1193, 64
    %v1201 = vpop.permute.xlu0 %1200
    %v1203 = vmul.f32 %v1193, %v1201
    %1205 = vrot.lane.b32.xlu0 %v1203, 32
    %v1206 = vpop.permute.xlu0 %1205
    %v1208 = vadd.f32 %v1198, %v1206
    %v1209 = vtanh.pop %v1208
    %1211 = vrot.lane.b32.xlu0 %v1209, 64
    %v1212 = vpop.permute.xlu0 %1211
    %v1214 = vmul.f32 %v1193, %v1212
    %s1215 = scalar_lea.vmem [#allocation2], 8
    %v1216 = vld [vmem:[%s1215] sm:$0xff]
    %1218 = vrot.lane.b32.xlu0 %v1214, 32
    %v1219 = vpop.permute.xlu0 %1218
    %v1220 = vsel %vm90, %v1219, 0
    %1222 = vmatprep.subr.mxu0 0.0
    %1223 = vmatpush1.msra.mxu0 %v1103
    %1224 = vmatprep.subr.mxu0 0.0
    %1225 = vmatpush1.msra.mxu0 %v1104
    %1226 = vmatprep.subr.mxu0 0.0
    %1227 = vmatpush1.msra.mxu0 %v1105
    %1228 = vmatprep.subr.mxu0 0.0
    %1229 = vmatpush1.msra.mxu0 %v1106
    %1230 = vmatprep.subr.mxu0 0.0
    %1231 = vmatpush1.msra.mxu0 0.0
    %1232 = vmatprep.subr.mxu0 0.0
    %1233 = vmatpush1.msra.mxu0 0.0
    %1234 = vmatprep.subr.mxu0 0.0
    %1235 = vmatpush1.msra.mxu0 0.0
    %1236 = vmatprep.subr.mxu0 0.0
    %1237 = vmatpush1.msra.mxu0 0.0
    %1238 = vmatprep.subr.mxu0 0.0
    %1239 = vmatpush1.msra.mxu0 0.0
    %1240 = vmatprep.subr.mxu0 0.0
    %1241 = vmatpush1.msra.mxu0 0.0
    %1242 = vmatprep.subr.mxu0 0.0
    %1243 = vmatpush1.msra.mxu0 0.0
    %1244 = vmatprep.subr.mxu0 0.0
    %1245 = vmatpush1.msra.mxu0 0.0
    %1246 = vmatprep.subr.mxu0 0.0
    %1247 = vmatpush1.msra.mxu0 0.0
    %1248 = vmatprep.subr.mxu0 0.0
    %1249 = vmatpush1.msra.mxu0 0.0
    %1250 = vmatprep.subr.mxu0 0.0
    %1251 = vmatpush1.msra.mxu0 0.0
    %1252 = vmatprep.subr.mxu0 0.0
    %1253 = vmatpush1.msra.mxu0 0.0
    %1254 = vmatprep.subr.mxu0 0.0
    %1255 = vmatpush1.msra.mxu0 0.0
    %1256 = vmatprep.subr.mxu0 0.0
    %1257 = vmatpush1.msra.mxu0 0.0
    %1258 = vmatprep.subr.mxu0 0.0
    %1259 = vmatpush1.msra.mxu0 0.0
    %1260 = vmatprep.subr.mxu0 0.0
    %1261 = vmatpush1.msra.mxu0 0.0
    %1262 = vmatprep.subr.mxu0 0.0
    %1263 = vmatpush1.msra.mxu0 0.0
    %1264 = vmatprep.subr.mxu0 0.0
    %1265 = vmatpush1.msra.mxu0 0.0
    %1266 = vmatprep.subr.mxu0 0.0
    %1267 = vmatpush1.msra.mxu0 0.0
    %1268 = vmatprep.subr.mxu0 0.0
    %1269 = vmatpush1.msra.mxu0 0.0
    %1270 = vmatprep.subr.mxu0 0.0
    %1271 = vmatpush1.msra.mxu0 0.0
    %1272 = vmatprep.subr.mxu0 0.0
    %1273 = vmatpush1.msra.mxu0 0.0
    %1274 = vmatprep.subr.mxu0 0.0
    %1275 = vmatpush1.msra.mxu0 0.0
    %1276 = vmatprep.subr.mxu0 0.0
    %1277 = vmatpush1.msra.mxu0 0.0
    %1278 = vmatprep.subr.mxu0 0.0
    %1279 = vmatpush1.msra.mxu0 0.0
    %1280 = vmatprep.subr.mxu0 0.0
    %1281 = vmatpush1.msra.mxu0 0.0
    %1282 = vmatprep.subr.mxu0 0.0
    %1283 = vmatpush1.msra.mxu0 0.0
    %1284 = vmatprep.subr.mxu0 0.0
    %1285 = vmatpush1.msra.mxu0 0.0
    %1286 = vmatprep.mubr.f32.mxu0 0.0
    %1287 = vmatmul.mubr.f32.gmra.mrb[0].mxu0 %v1220
    %v1288 = vpop.f32.mrb[0].mxu0
    %v1289 = vadd.f32 0.0, %v1288
    %v1290 = vpop.f32.mrb[0].mxu0
    %1291 = vdwg.mxu0
    %v1292 = vadd.f32 %v1216, %v1289
    %v1293 = vtanh.pop %v1292
    %v1294 = vxor.u32 %v1292, 2147483648
    %v1295 = vmul.f32 %v1294, 1.442695
    %v1296 = vpow.pop %v1295
    %v1297 = vadd.f32 %v1296, 1.0
    %v1298 = vrcp.pop %v1297
    %v1299 = vmul.f32 1.0, %v1298
    %v1300 = vsel %vm82, %v1293, %v1299
    %v1301 = vmul.f32 %v1300, %v1208
    %1303 = vrot.lane.b32.xlu0 %v1300, 64
    %v1304 = vpop.permute.xlu0 %1303
    %v1306 = vmul.f32 %v1300, %v1304
    %1308 = vrot.lane.b32.xlu0 %v1306, 32
    %v1309 = vpop.permute.xlu0 %1308
    %v1311 = vadd.f32 %v1301, %v1309
    %v1312 = vtanh.pop %v1311
    %1314 = vrot.lane.b32.xlu0 %v1312, 64
    %v1315 = vpop.permute.xlu0 %1314
    %v1317 = vmul.f32 %v1300, %v1315
    %s1318 = scalar_lea.vmem [#allocation2], 16
    %v1319 = vld [vmem:[%s1318] sm:$0xff]
    %1321 = vrot.lane.b32.xlu0 %v1317, 32
    %v1322 = vpop.permute.xlu0 %1321
    %v1323 = vsel %vm90, %v1322, 0
    %1325 = vmatprep.subr.mxu0 0.0
    %1326 = vmatpush1.msra.mxu0 %v1103
    %1327 = vmatprep.subr.mxu0 0.0
    %1328 = vmatpush1.msra.mxu0 %v1104
    %1329 = vmatprep.subr.mxu0 0.0
    %1330 = vmatpush1.msra.mxu0 %v1105
    %1331 = vmatprep.subr.mxu0 0.0
    %1332 = vmatpush1.msra.mxu0 %v1106
    %1333 = vmatprep.subr.mxu0 0.0
    %1334 = vmatpush1.msra.mxu0 0.0
    %1335 = vmatprep.subr.mxu0 0.0
    %1336 = vmatpush1.msra.mxu0 0.0
    %1337 = vmatprep.subr.mxu0 0.0
    %1338 = vmatpush1.msra.mxu0 0.0
    %1339 = vmatprep.subr.mxu0 0.0
    %1340 = vmatpush1.msra.mxu0 0.0
    %1341 = vmatprep.subr.mxu0 0.0
    %1342 = vmatpush1.msra.mxu0 0.0
    %1343 = vmatprep.subr.mxu0 0.0
    %1344 = vmatpush1.msra.mxu0 0.0
    %1345 = vmatprep.subr.mxu0 0.0
    %1346 = vmatpush1.msra.mxu0 0.0
    %1347 = vmatprep.subr.mxu0 0.0
    %1348 = vmatpush1.msra.mxu0 0.0
    %1349 = vmatprep.subr.mxu0 0.0
    %1350 = vmatpush1.msra.mxu0 0.0
    %1351 = vmatprep.subr.mxu0 0.0
    %1352 = vmatpush1.msra.mxu0 0.0
    %1353 = vmatprep.subr.mxu0 0.0
    %1354 = vmatpush1.msra.mxu0 0.0
    %1355 = vmatprep.subr.mxu0 0.0
    %1356 = vmatpush1.msra.mxu0 0.0
    %1357 = vmatprep.subr.mxu0 0.0
    %1358 = vmatpush1.msra.mxu0 0.0
    %1359 = vmatprep.subr.mxu0 0.0
    %1360 = vmatpush1.msra.mxu0 0.0
    %1361 = vmatprep.subr.mxu0 0.0
    %1362 = vmatpush1.msra.mxu0 0.0
    %1363 = vmatprep.subr.mxu0 0.0
    %1364 = vmatpush1.msra.mxu0 0.0
    %1365 = vmatprep.subr.mxu0 0.0
    %1366 = vmatpush1.msra.mxu0 0.0
    %1367 = vmatprep.subr.mxu0 0.0
    %1368 = vmatpush1.msra.mxu0 0.0
    %1369 = vmatprep.subr.mxu0 0.0
    %1370 = vmatpush1.msra.mxu0 0.0
    %1371 = vmatprep.subr.mxu0 0.0
    %1372 = vmatpush1.msra.mxu0 0.0
    %1373 = vmatprep.subr.mxu0 0.0
    %1374 = vmatpush1.msra.mxu0 0.0
    %1375 = vmatprep.subr.mxu0 0.0
    %1376 = vmatpush1.msra.mxu0 0.0
    %1377 = vmatprep.subr.mxu0 0.0
    %1378 = vmatpush1.msra.mxu0 0.0
    %1379 = vmatprep.subr.mxu0 0.0
    %1380 = vmatpush1.msra.mxu0 0.0
    %1381 = vmatprep.subr.mxu0 0.0
    %1382 = vmatpush1.msra.mxu0 0.0
    %1383 = vmatprep.subr.mxu0 0.0
    %1384 = vmatpush1.msra.mxu0 0.0
    %1385 = vmatprep.subr.mxu0 0.0
    %1386 = vmatpush1.msra.mxu0 0.0
    %1387 = vmatprep.subr.mxu0 0.0
    %1388 = vmatpush1.msra.mxu0 0.0
    %1389 = vmatprep.mubr.f32.mxu0 0.0
    %1390 = vmatmul.mubr.f32.gmra.mrb[0].mxu0 %v1323
    %v1391 = vpop.f32.mrb[0].mxu0
    %v1392 = vadd.f32 0.0, %v1391
    %v1393 = vpop.f32.mrb[0].mxu0
    %1394 = vdwg.mxu0
    %v1395 = vadd.f32 %v1319, %v1392
    %v1396 = vtanh.pop %v1395
    %v1397 = vxor.u32 %v1395, 2147483648
    %v1398 = vmul.f32 %v1397, 1.442695
    %v1399 = vpow.pop %v1398
    %v1400 = vadd.f32 %v1399, 1.0
    %v1401 = vrcp.pop %v1400
    %v1402 = vmul.f32 1.0, %v1401
    %v1403 = vsel %vm82, %v1396, %v1402
    %v1404 = vmul.f32 %v1403, %v1311
    %1406 = vrot.lane.b32.xlu0 %v1403, 64
    %v1407 = vpop.permute.xlu0 %1406
    %v1409 = vmul.f32 %v1403, %v1407
    %1411 = vrot.lane.b32.xlu0 %v1409, 32
    %v1412 = vpop.permute.xlu0 %1411
    %v1414 = vadd.f32 %v1404, %v1412
    %v1415 = vtanh.pop %v1414
    %1417 = vrot.lane.b32.xlu0 %v1415, 64
    %v1418 = vpop.permute.xlu0 %1417
    %v1420 = vmul.f32 %v1403, %v1418
    %s1421 = scalar_lea.vmem [#allocation2], 24
    %v1422 = vld [vmem:[%s1421] sm:$0xff]
    %1424 = vrot.lane.b32.xlu0 %v1420, 32
    %v1425 = vpop.permute.xlu0 %1424
    %v1426 = vsel %vm90, %v1425, 0
    %1428 = vmatprep.subr.mxu0 0.0
    %1429 = vmatpush1.msra.mxu0 %v1103
    %1430 = vmatprep.subr.mxu0 0.0
    %1431 = vmatpush1.msra.mxu0 %v1104
    %1432 = vmatprep.subr.mxu0 0.0
    %1433 = vmatpush1.msra.mxu0 %v1105
    %1434 = vmatprep.subr.mxu0 0.0
    %1435 = vmatpush1.msra.mxu0 %v1106
    %1436 = vmatprep.subr.mxu0 0.0
    %1437 = vmatpush1.msra.mxu0 0.0
    %1438 = vmatprep.subr.mxu0 0.0
    %1439 = vmatpush1.msra.mxu0 0.0
    %1440 = vmatprep.subr.mxu0 0.0
    %1441 = vmatpush1.msra.mxu0 0.0
    %1442 = vmatprep.subr.mxu0 0.0
    %1443 = vmatpush1.msra.mxu0 0.0
    %1444 = vmatprep.subr.mxu0 0.0
    %1445 = vmatpush1.msra.mxu0 0.0
    %1446 = vmatprep.subr.mxu0 0.0
    %1447 = vmatpush1.msra.mxu0 0.0
    %1448 = vmatprep.subr.mxu0 0.0
    %1449 = vmatpush1.msra.mxu0 0.0
    %1450 = vmatprep.subr.mxu0 0.0
    %1451 = vmatpush1.msra.mxu0 0.0
    %1452 = vmatprep.subr.mxu0 0.0
    %1453 = vmatpush1.msra.mxu0 0.0
    %1454 = vmatprep.subr.mxu0 0.0
    %1455 = vmatpush1.msra.mxu0 0.0
    %1456 = vmatprep.subr.mxu0 0.0
    %1457 = vmatpush1.msra.mxu0 0.0
    %1458 = vmatprep.subr.mxu0 0.0
    %1459 = vmatpush1.msra.mxu0 0.0
    %1460 = vmatprep.subr.mxu0 0.0
    %1461 = vmatpush1.msra.mxu0 0.0
    %1462 = vmatprep.subr.mxu0 0.0
    %1463 = vmatpush1.msra.mxu0 0.0
    %1464 = vmatprep.subr.mxu0 0.0
    %1465 = vmatpush1.msra.mxu0 0.0
    %1466 = vmatprep.subr.mxu0 0.0
    %1467 = vmatpush1.msra.mxu0 0.0
    %1468 = vmatprep.subr.mxu0 0.0
    %1469 = vmatpush1.msra.mxu0 0.0
    %1470 = vmatprep.subr.mxu0 0.0
    %1471 = vmatpush1.msra.mxu0 0.0
    %1472 = vmatprep.subr.mxu0 0.0
    %1473 = vmatpush1.msra.mxu0 0.0
    %1474 = vmatprep.subr.mxu0 0.0
    %1475 = vmatpush1.msra.mxu0 0.0
    %1476 = vmatprep.subr.mxu0 0.0
    %1477 = vmatpush1.msra.mxu0 0.0
    %1478 = vmatprep.subr.mxu0 0.0
    %1479 = vmatpush1.msra.mxu0 0.0
    %1480 = vmatprep.subr.mxu0 0.0
    %1481 = vmatpush1.msra.mxu0 0.0
    %1482 = vmatprep.subr.mxu0 0.0
    %1483 = vmatpush1.msra.mxu0 0.0
    %1484 = vmatprep.subr.mxu0 0.0
    %1485 = vmatpush1.msra.mxu0 0.0
    %1486 = vmatprep.subr.mxu0 0.0
    %1487 = vmatpush1.msra.mxu0 0.0
    %1488 = vmatprep.subr.mxu0 0.0
    %1489 = vmatpush1.msra.mxu0 0.0
    %1490 = vmatprep.subr.mxu0 0.0
    %1491 = vmatpush1.msra.mxu0 0.0
    %1492 = vmatprep.mubr.f32.mxu0 0.0
    %1493 = vmatmul.mubr.f32.gmra.mrb[0].mxu0 %v1426
    %v1494 = vpop.f32.mrb[0].mxu0
    %v1495 = vadd.f32 0.0, %v1494
    %v1496 = vpop.f32.mrb[0].mxu0
    %1497 = vdwg.mxu0
    %v1498 = vadd.f32 %v1422, %v1495
    %v1499 = vtanh.pop %v1498
    %v1500 = vxor.u32 %v1498, 2147483648
    %v1501 = vmul.f32 %v1500, 1.442695
    %v1502 = vpow.pop %v1501
    %v1503 = vadd.f32 %v1502, 1.0
    %v1504 = vrcp.pop %v1503
    %v1505 = vmul.f32 1.0, %v1504
    %v1506 = vsel %vm82, %v1499, %v1505
    %v1507 = vmul.f32 %v1506, %v1414
    %1509 = vrot.lane.b32.xlu0 %v1506, 64
    %v1510 = vpop.permute.xlu0 %1509
    %v1512 = vmul.f32 %v1506, %v1510
    %1514 = vrot.lane.b32.xlu0 %v1512, 32
    %v1515 = vpop.permute.xlu0 %1514
    %v1517 = vadd.f32 %v1507, %v1515
    %v1518 = vtanh.pop %v1517
    %1520 = vrot.lane.b32.xlu0 %v1518, 64
    %v1521 = vpop.permute.xlu0 %1520
    %v1523 = vmul.f32 %v1506, %v1521
    %s1524 = scalar_lea.vmem [#allocation2], 32
    %v1525 = vld [vmem:[%s1524] sm:$0xff]
    %1527 = vrot.lane.b32.xlu0 %v1523, 32
    %v1528 = vpop.permute.xlu0 %1527
    %v1529 = vsel %vm90, %v1528, 0
    %1531 = vmatprep.subr.mxu0 0.0
    %1532 = vmatpush1.msra.mxu0 %v1103
    %1533 = vmatprep.subr.mxu0 0.0
    %1534 = vmatpush1.msra.mxu0 %v1104
    %1535 = vmatprep.subr.mxu0 0.0
    %1536 = vmatpush1.msra.mxu0 %v1105
    %1537 = vmatprep.subr.mxu0 0.0
    %1538 = vmatpush1.msra.mxu0 %v1106
    %1539 = vmatprep.subr.mxu0 0.0
    %1540 = vmatpush1.msra.mxu0 0.0
    %1541 = vmatprep.subr.mxu0 0.0
    %1542 = vmatpush1.msra.mxu0 0.0
    %1543 = vmatprep.subr.mxu0 0.0
    %1544 = vmatpush1.msra.mxu0 0.0
    %1545 = vmatprep.subr.mxu0 0.0
    %1546 = vmatpush1.msra.mxu0 0.0
    %1547 = vmatprep.subr.mxu0 0.0
    %1548 = vmatpush1.msra.mxu0 0.0
    %1549 = vmatprep.subr.mxu0 0.0
    %1550 = vmatpush1.msra.mxu0 0.0
    %1551 = vmatprep.subr.mxu0 0.0
    %1552 = vmatpush1.msra.mxu0 0.0
    %1553 = vmatprep.subr.mxu0 0.0
    %1554 = vmatpush1.msra.mxu0 0.0
    %1555 = vmatprep.subr.mxu0 0.0
    %1556 = vmatpush1.msra.mxu0 0.0
    %1557 = vmatprep.subr.mxu0 0.0
    %1558 = vmatpush1.msra.mxu0 0.0
    %1559 = vmatprep.subr.mxu0 0.0
    %1560 = vmatpush1.msra.mxu0 0.0
    %1561 = vmatprep.subr.mxu0 0.0
    %1562 = vmatpush1.msra.mxu0 0.0
    %1563 = vmatprep.subr.mxu0 0.0
    %1564 = vmatpush1.msra.mxu0 0.0
    %1565 = vmatprep.subr.mxu0 0.0
    %1566 = vmatpush1.msra.mxu0 0.0
    %1567 = vmatprep.subr.mxu0 0.0
    %1568 = vmatpush1.msra.mxu0 0.0
    %1569 = vmatprep.subr.mxu0 0.0
    %1570 = vmatpush1.msra.mxu0 0.0
    %1571 = vmatprep.subr.mxu0 0.0
    %1572 = vmatpush1.msra.mxu0 0.0
    %1573 = vmatprep.subr.mxu0 0.0
    %1574 = vmatpush1.msra.mxu0 0.0
    %1575 = vmatprep.subr.mxu0 0.0
    %1576 = vmatpush1.msra.mxu0 0.0
    %1577 = vmatprep.subr.mxu0 0.0
    %1578 = vmatpush1.msra.mxu0 0.0
    %1579 = vmatprep.subr.mxu0 0.0
    %1580 = vmatpush1.msra.mxu0 0.0
    %1581 = vmatprep.subr.mxu0 0.0
    %1582 = vmatpush1.msra.mxu0 0.0
    %1583 = vmatprep.subr.mxu0 0.0
    %1584 = vmatpush1.msra.mxu0 0.0
    %1585 = vmatprep.subr.mxu0 0.0
    %1586 = vmatpush1.msra.mxu0 0.0
    %1587 = vmatprep.subr.mxu0 0.0
    %1588 = vmatpush1.msra.mxu0 0.0
    %1589 = vmatprep.subr.mxu0 0.0
    %1590 = vmatpush1.msra.mxu0 0.0
    %1591 = vmatprep.subr.mxu0 0.0
    %1592 = vmatpush1.msra.mxu0 0.0
    %1593 = vmatprep.subr.mxu0 0.0
    %1594 = vmatpush1.msra.mxu0 0.0
    %1595 = vmatprep.mubr.f32.mxu0 0.0
    %1596 = vmatmul.mubr.f32.gmra.mrb[0].mxu0 %v1529
    %v1597 = vpop.f32.mrb[0].mxu0
    %v1598 = vadd.f32 0.0, %v1597
    %v1599 = vpop.f32.mrb[0].mxu0
    %1600 = vdwg.mxu0
    %v1601 = vadd.f32 %v1525, %v1598
    %v1602 = vtanh.pop %v1601
    %v1603 = vxor.u32 %v1601, 2147483648
    %v1604 = vmul.f32 %v1603, 1.442695
    %v1605 = vpow.pop %v1604
    %v1606 = vadd.f32 %v1605, 1.0
    %v1607 = vrcp.pop %v1606
    %v1608 = vmul.f32 1.0, %v1607
    %v1609 = vsel %vm82, %v1602, %v1608
    %v1610 = vmul.f32 %v1609, %v1517
    %1612 = vrot.lane.b32.xlu0 %v1609, 64
    %v1613 = vpop.permute.xlu0 %1612
    %v1615 = vmul.f32 %v1609, %v1613
    %1617 = vrot.lane.b32.xlu0 %v1615, 32
    %v1618 = vpop.permute.xlu0 %1617
    %v1620 = vadd.f32 %v1610, %v1618
    %v1621 = vtanh.pop %v1620
    %1623 = vrot.lane.b32.xlu0 %v1621, 64
    %v1624 = vpop.permute.xlu0 %1623
    %v1626 = vmul.f32 %v1609, %v1624
    %s1627 = scalar_lea.vmem [#allocation2], 40
    %v1628 = vld [vmem:[%s1627] sm:$0xff]
    %1630 = vrot.lane.b32.xlu0 %v1626, 32
    %v1631 = vpop.permute.xlu0 %1630
    %v1632 = vsel %vm90, %v1631, 0
    %1634 = vmatprep.subr.mxu0 0.0
    %1635 = vmatpush1.msra.mxu0 %v1103
    %1636 = vmatprep.subr.mxu0 0.0
    %1637 = vmatpush1.msra.mxu0 %v1104
    %1638 = vmatprep.subr.mxu0 0.0
    %1639 = vmatpush1.msra.mxu0 %v1105
    %1640 = vmatprep.subr.mxu0 0.0
    %1641 = vmatpush1.msra.mxu0 %v1106
    %1642 = vmatprep.subr.mxu0 0.0
    %1643 = vmatpush1.msra.mxu0 0.0
    %1644 = vmatprep.subr.mxu0 0.0
    %1645 = vmatpush1.msra.mxu0 0.0
    %1646 = vmatprep.subr.mxu0 0.0
    %1647 = vmatpush1.msra.mxu0 0.0
    %1648 = vmatprep.subr.mxu0 0.0
    %1649 = vmatpush1.msra.mxu0 0.0
    %1650 = vmatprep.subr.mxu0 0.0
    %1651 = vmatpush1.msra.mxu0 0.0
    %1652 = vmatprep.subr.mxu0 0.0
    %1653 = vmatpush1.msra.mxu0 0.0
    %1654 = vmatprep.subr.mxu0 0.0
    %1655 = vmatpush1.msra.mxu0 0.0
    %1656 = vmatprep.subr.mxu0 0.0
    %1657 = vmatpush1.msra.mxu0 0.0
    %1658 = vmatprep.subr.mxu0 0.0
    %1659 = vmatpush1.msra.mxu0 0.0
    %1660 = vmatprep.subr.mxu0 0.0
    %1661 = vmatpush1.msra.mxu0 0.0
    %1662 = vmatprep.subr.mxu0 0.0
    %1663 = vmatpush1.msra.mxu0 0.0
    %1664 = vmatprep.subr.mxu0 0.0
    %1665 = vmatpush1.msra.mxu0 0.0
    %1666 = vmatprep.subr.mxu0 0.0
    %1667 = vmatpush1.msra.mxu0 0.0
    %1668 = vmatprep.subr.mxu0 0.0
    %1669 = vmatpush1.msra.mxu0 0.0
    %1670 = vmatprep.subr.mxu0 0.0
    %1671 = vmatpush1.msra.mxu0 0.0
    %1672 = vmatprep.subr.mxu0 0.0
    %1673 = vmatpush1.msra.mxu0 0.0
    %1674 = vmatprep.subr.mxu0 0.0
    %1675 = vmatpush1.msra.mxu0 0.0
    %1676 = vmatprep.subr.mxu0 0.0
    %1677 = vmatpush1.msra.mxu0 0.0
    %1678 = vmatprep.subr.mxu0 0.0
    %1679 = vmatpush1.msra.mxu0 0.0
    %1680 = vmatprep.subr.mxu0 0.0
    %1681 = vmatpush1.msra.mxu0 0.0
    %1682 = vmatprep.subr.mxu0 0.0
    %1683 = vmatpush1.msra.mxu0 0.0
    %1684 = vmatprep.subr.mxu0 0.0
    %1685 = vmatpush1.msra.mxu0 0.0
    %1686 = vmatprep.subr.mxu0 0.0
    %1687 = vmatpush1.msra.mxu0 0.0
    %1688 = vmatprep.subr.mxu0 0.0
    %1689 = vmatpush1.msra.mxu0 0.0
    %1690 = vmatprep.subr.mxu0 0.0
    %1691 = vmatpush1.msra.mxu0 0.0
    %1692 = vmatprep.subr.mxu0 0.0
    %1693 = vmatpush1.msra.mxu0 0.0
    %1694 = vmatprep.subr.mxu0 0.0
    %1695 = vmatpush1.msra.mxu0 0.0
    %1696 = vmatprep.subr.mxu0 0.0
    %1697 = vmatpush1.msra.mxu0 0.0
    %1698 = vmatprep.mubr.f32.mxu0 0.0
    %1699 = vmatmul.mubr.f32.gmra.mrb[0].mxu0 %v1632
    %v1700 = vpop.f32.mrb[0].mxu0
    %v1701 = vadd.f32 0.0, %v1700
    %v1702 = vpop.f32.mrb[0].mxu0
    %1703 = vdwg.mxu0
    %v1704 = vadd.f32 %v1628, %v1701
    %v1705 = vtanh.pop %v1704
    %v1706 = vxor.u32 %v1704, 2147483648
    %v1707 = vmul.f32 %v1706, 1.442695
    %v1708 = vpow.pop %v1707
    %v1709 = vadd.f32 %v1708, 1.0
    %v1710 = vrcp.pop %v1709
    %v1711 = vmul.f32 1.0, %v1710
    %v1712 = vsel %vm82, %v1705, %v1711
    %v1713 = vmul.f32 %v1712, %v1620
    %1715 = vrot.lane.b32.xlu0 %v1712, 64
    %v1716 = vpop.permute.xlu0 %1715
    %v1718 = vmul.f32 %v1712, %v1716
    %1720 = vrot.lane.b32.xlu0 %v1718, 32
    %v1721 = vpop.permute.xlu0 %1720
    %v1723 = vadd.f32 %v1713, %v1721
    %v1724 = vtanh.pop %v1723
    %1726 = vrot.lane.b32.xlu0 %v1724, 64
    %v1727 = vpop.permute.xlu0 %1726
    %v1729 = vmul.f32 %v1712, %v1727
    %s1730 = scalar_lea.vmem [#allocation2], 48
    %v1731 = vld [vmem:[%s1730] sm:$0xff]
    %1733 = vrot.lane.b32.xlu0 %v1729, 32
    %v1734 = vpop.permute.xlu0 %1733
    %v1735 = vsel %vm90, %v1734, 0
    %1737 = vmatprep.subr.mxu0 0.0
    %1738 = vmatpush1.msra.mxu0 %v1103
    %1739 = vmatprep.subr.mxu0 0.0
    %1740 = vmatpush1.msra.mxu0 %v1104
    %1741 = vmatprep.subr.mxu0 0.0
    %1742 = vmatpush1.msra.mxu0 %v1105
    %1743 = vmatprep.subr.mxu0 0.0
    %1744 = vmatpush1.msra.mxu0 %v1106
    %1745 = vmatprep.subr.mxu0 0.0
    %1746 = vmatpush1.msra.mxu0 0.0
    %1747 = vmatprep.subr.mxu0 0.0
    %1748 = vmatpush1.msra.mxu0 0.0
    %1749 = vmatprep.subr.mxu0 0.0
    %1750 = vmatpush1.msra.mxu0 0.0
    %1751 = vmatprep.subr.mxu0 0.0
    %1752 = vmatpush1.msra.mxu0 0.0
    %1753 = vmatprep.subr.mxu0 0.0
    %1754 = vmatpush1.msra.mxu0 0.0
    %1755 = vmatprep.subr.mxu0 0.0
    %1756 = vmatpush1.msra.mxu0 0.0
    %1757 = vmatprep.subr.mxu0 0.0
    %1758 = vmatpush1.msra.mxu0 0.0
    %1759 = vmatprep.subr.mxu0 0.0
    %1760 = vmatpush1.msra.mxu0 0.0
    %1761 = vmatprep.subr.mxu0 0.0
    %1762 = vmatpush1.msra.mxu0 0.0
    %1763 = vmatprep.subr.mxu0 0.0
    %1764 = vmatpush1.msra.mxu0 0.0
    %1765 = vmatprep.subr.mxu0 0.0
    %1766 = vmatpush1.msra.mxu0 0.0
    %1767 = vmatprep.subr.mxu0 0.0
    %1768 = vmatpush1.msra.mxu0 0.0
    %1769 = vmatprep.subr.mxu0 0.0
    %1770 = vmatpush1.msra.mxu0 0.0
    %1771 = vmatprep.subr.mxu0 0.0
    %1772 = vmatpush1.msra.mxu0 0.0
    %1773 = vmatprep.subr.mxu0 0.0
    %1774 = vmatpush1.msra.mxu0 0.0
    %1775 = vmatprep.subr.mxu0 0.0
    %1776 = vmatpush1.msra.mxu0 0.0
    %1777 = vmatprep.subr.mxu0 0.0
    %1778 = vmatpush1.msra.mxu0 0.0
    %1779 = vmatprep.subr.mxu0 0.0
    %1780 = vmatpush1.msra.mxu0 0.0
    %1781 = vmatprep.subr.mxu0 0.0
    %1782 = vmatpush1.msra.mxu0 0.0
    %1783 = vmatprep.subr.mxu0 0.0
    %1784 = vmatpush1.msra.mxu0 0.0
    %1785 = vmatprep.subr.mxu0 0.0
    %1786 = vmatpush1.msra.mxu0 0.0
    %1787 = vmatprep.subr.mxu0 0.0
    %1788 = vmatpush1.msra.mxu0 0.0
    %1789 = vmatprep.subr.mxu0 0.0
    %1790 = vmatpush1.msra.mxu0 0.0
    %1791 = vmatprep.subr.mxu0 0.0
    %1792 = vmatpush1.msra.mxu0 0.0
    %1793 = vmatprep.subr.mxu0 0.0
    %1794 = vmatpush1.msra.mxu0 0.0
    %1795 = vmatprep.subr.mxu0 0.0
    %1796 = vmatpush1.msra.mxu0 0.0
    %1797 = vmatprep.subr.mxu0 0.0
    %1798 = vmatpush1.msra.mxu0 0.0
    %1799 = vmatprep.subr.mxu0 0.0
    %1800 = vmatpush1.msra.mxu0 0.0
    %1801 = vmatprep.mubr.f32.mxu0 0.0
    %1802 = vmatmul.mubr.f32.gmra.mrb[0].mxu0 %v1735
    %v1803 = vpop.f32.mrb[0].mxu0
    %v1804 = vadd.f32 0.0, %v1803
    %v1805 = vpop.f32.mrb[0].mxu0
    %1806 = vdwg.mxu0
    %v1807 = vadd.f32 %v1731, %v1804
    %v1808 = vtanh.pop %v1807
    %v1809 = vxor.u32 %v1807, 2147483648
    %v1810 = vmul.f32 %v1809, 1.442695
    %v1811 = vpow.pop %v1810
    %v1812 = vadd.f32 %v1811, 1.0
    %v1813 = vrcp.pop %v1812
    %v1814 = vmul.f32 1.0, %v1813
    %v1815 = vsel %vm82, %v1808, %v1814
    %v1816 = vmul.f32 %v1815, %v1723
    %1818 = vrot.lane.b32.xlu0 %v1815, 64
    %v1819 = vpop.permute.xlu0 %1818
    %v1821 = vmul.f32 %v1815, %v1819
    %1823 = vrot.lane.b32.xlu0 %v1821, 32
    %v1824 = vpop.permute.xlu0 %1823
    %v1826 = vadd.f32 %v1816, %v1824
    %v1827 = vtanh.pop %v1826
    %1829 = vrot.lane.b32.xlu0 %v1827, 64
    %v1830 = vpop.permute.xlu0 %1829
    %v1832 = vmul.f32 %v1815, %v1830
    %s1833 = scalar_lea.vmem [#allocation2], 56
    %v1834 = vld [vmem:[%s1833] sm:$0xff]
    %1836 = vrot.lane.b32.xlu0 %v1832, 32
    %v1837 = vpop.permute.xlu0 %1836
    %v1838 = vsel %vm90, %v1837, 0
    %1840 = vmatprep.subr.mxu0 0.0
    %1841 = vmatpush1.msra.mxu0 %v1103
    %1842 = vmatprep.subr.mxu0 0.0
    %1843 = vmatpush1.msra.mxu0 %v1104
    %1844 = vmatprep.subr.mxu0 0.0
    %1845 = vmatpush1.msra.mxu0 %v1105
    %1846 = vmatprep.subr.mxu0 0.0
    %1847 = vmatpush1.msra.mxu0 %v1106
    %1848 = vmatprep.subr.mxu0 0.0
    %1849 = vmatpush1.msra.mxu0 0.0
    %1850 = vmatprep.subr.mxu0 0.0
    %1851 = vmatpush1.msra.mxu0 0.0
    %1852 = vmatprep.subr.mxu0 0.0
    %1853 = vmatpush1.msra.mxu0 0.0
    %1854 = vmatprep.subr.mxu0 0.0
    %1855 = vmatpush1.msra.mxu0 0.0
    %1856 = vmatprep.subr.mxu0 0.0
    %1857 = vmatpush1.msra.mxu0 0.0
    %1858 = vmatprep.subr.mxu0 0.0
    %1859 = vmatpush1.msra.mxu0 0.0
    %1860 = vmatprep.subr.mxu0 0.0
    %1861 = vmatpush1.msra.mxu0 0.0
    %1862 = vmatprep.subr.mxu0 0.0
    %1863 = vmatpush1.msra.mxu0 0.0
    %1864 = vmatprep.subr.mxu0 0.0
    %1865 = vmatpush1.msra.mxu0 0.0
    %1866 = vmatprep.subr.mxu0 0.0
    %1867 = vmatpush1.msra.mxu0 0.0
    %1868 = vmatprep.subr.mxu0 0.0
    %1869 = vmatpush1.msra.mxu0 0.0
    %1870 = vmatprep.subr.mxu0 0.0
    %1871 = vmatpush1.msra.mxu0 0.0
    %1872 = vmatprep.subr.mxu0 0.0
    %1873 = vmatpush1.msra.mxu0 0.0
    %1874 = vmatprep.subr.mxu0 0.0
    %1875 = vmatpush1.msra.mxu0 0.0
    %1876 = vmatprep.subr.mxu0 0.0
    %1877 = vmatpush1.msra.mxu0 0.0
    %1878 = vmatprep.subr.mxu0 0.0
    %1879 = vmatpush1.msra.mxu0 0.0
    %1880 = vmatprep.subr.mxu0 0.0
    %1881 = vmatpush1.msra.mxu0 0.0
    %1882 = vmatprep.subr.mxu0 0.0
    %1883 = vmatpush1.msra.mxu0 0.0
    %1884 = vmatprep.subr.mxu0 0.0
    %1885 = vmatpush1.msra.mxu0 0.0
    %1886 = vmatprep.subr.mxu0 0.0
    %1887 = vmatpush1.msra.mxu0 0.0
    %1888 = vmatprep.subr.mxu0 0.0
    %1889 = vmatpush1.msra.mxu0 0.0
    %1890 = vmatprep.subr.mxu0 0.0
    %1891 = vmatpush1.msra.mxu0 0.0
    %1892 = vmatprep.subr.mxu0 0.0
    %1893 = vmatpush1.msra.mxu0 0.0
    %1894 = vmatprep.subr.mxu0 0.0
    %1895 = vmatpush1.msra.mxu0 0.0
    %1896 = vmatprep.subr.mxu0 0.0
    %1897 = vmatpush1.msra.mxu0 0.0
    %1898 = vmatprep.subr.mxu0 0.0
    %1899 = vmatpush1.msra.mxu0 0.0
    %1900 = vmatprep.subr.mxu0 0.0
    %1901 = vmatpush1.msra.mxu0 0.0
    %1902 = vmatprep.subr.mxu0 0.0
    %1903 = vmatpush1.msra.mxu0 0.0
    %1904 = vmatprep.mubr.f32.mxu0 0.0
    %1905 = vmatmul.mubr.f32.gmra.mrb[0].mxu0 %v1838
    %v1906 = vpop.f32.mrb[0].mxu0
    %v1907 = vadd.f32 0.0, %v1906
    %v1908 = vpop.f32.mrb[0].mxu0
    %1909 = vdwg.mxu0
    %v1910 = vadd.f32 %v1834, %v1907
    %v1911 = vtanh.pop %v1910
    %v1912 = vxor.u32 %v1910, 2147483648
    %v1913 = vmul.f32 %v1912, 1.442695
    %v1914 = vpow.pop %v1913
    %v1915 = vadd.f32 %v1914, 1.0
    %v1916 = vrcp.pop %v1915
    %v1917 = vmul.f32 1.0, %v1916
    %v1918 = vsel %vm82, %v1911, %v1917
    %v1919 = vmul.f32 %v1918, %v1826
    %1921 = vrot.lane.b32.xlu0 %v1918, 64
    %v1922 = vpop.permute.xlu0 %1921
    %v1924 = vmul.f32 %v1918, %v1922
    %1926 = vrot.lane.b32.xlu0 %v1924, 32
    %v1927 = vpop.permute.xlu0 %1926
    %v1929 = vadd.f32 %v1919, %v1927
    %v1930 = vtanh.pop %v1929
    %1932 = vrot.lane.b32.xlu0 %v1930, 64
    %v1933 = vpop.permute.xlu0 %1932
    %v1935 = vmul.f32 %v1918, %v1933
    %1937 = vrot.lane.b32.xlu0 %v1935, 32
    %v1938 = vpop.permute.xlu0 %1937
    %1940 = vst.msk [vmem:[%s1107] sm:$0xff] %vm90, %v1938
    %1942 = vrot.lane.b32.xlu0 %v1929, 96
    %v1943 = vpop.permute.xlu0 %1942
    %1945 = vst.msk [vmem:[%s1109] sm:$0xff] %vm90, %v1943
    // Predicated region
    $region46: #{tpu_custom_call.1} parent=1 // pred_check
      %p1946 = pneg %p69
    $region47: #{tpu_custom_call.1} parent=1 // pred_check_branch
      %1948 = sbr.rel (%p1946) target = $region49
    $region48: #{tpu_custom_call.1} parent=1 // pred_region
      %v1949 = vld [vmem:[%s1107] sm:$0xff]
      %v1950 = vld [vmem:[%s5] sm:$0xff]
      %v1951 = vld [vmem:[%s5 + $0x8] sm:$0xff]
      %v1952 = vld [vmem:[%s5 + $0x10] sm:$0xff]
      %v1953 = vld [vmem:[%s5 + $0x18] sm:$0xff]
      %v1954 = vld [vmem:[#allocation6] sm:$0x1]
      %v1956 = vlaneseq
      %v1957 = vshrl.u32 %v1956, 7
      %v1958 = vsub.s32 0, %v1957
      %v1959 = vrot.slane %v1954, %v1958
      %v1962 = vsel %vm90, %v1949, 0
      %1964 = vmatprep.subr.mxu0 0.0
      %1965 = vmatpush1.msra.mxu0 %v1950
      %1966 = vmatprep.subr.mxu0 0.0
      %1967 = vmatpush1.msra.mxu0 %v1951
      %1968 = vmatprep.subr.mxu0 0.0
      %1969 = vmatpush1.msra.mxu0 %v1952
      %1970 = vmatprep.subr.mxu0 0.0
      %1971 = vmatpush1.msra.mxu0 %v1953
      %1972 = vmatprep.subr.mxu0 0.0
      %1973 = vmatpush1.msra.mxu0 0.0
      %1974 = vmatprep.subr.mxu0 0.0
      %1975 = vmatpush1.msra.mxu0 0.0
      %1976 = vmatprep.subr.mxu0 0.0
      %1977 = vmatpush1.msra.mxu0 0.0
      %1978 = vmatprep.subr.mxu0 0.0
      %1979 = vmatpush1.msra.mxu0 0.0
      %1980 = vmatprep.subr.mxu0 0.0
      %1981 = vmatpush1.msra.mxu0 0.0
      %1982 = vmatprep.subr.mxu0 0.0
      %1983 = vmatpush1.msra.mxu0 0.0
      %1984 = vmatprep.subr.mxu0 0.0
      %1985 = vmatpush1.msra.mxu0 0.0
      %1986 = vmatprep.subr.mxu0 0.0
      %1987 = vmatpush1.msra.mxu0 0.0
      %1988 = vmatprep.subr.mxu0 0.0
      %1989 = vmatpush1.msra.mxu0 0.0
      %1990 = vmatprep.subr.mxu0 0.0
      %1991 = vmatpush1.msra.mxu0 0.0
      %1992 = vmatprep.subr.mxu0 0.0
      %1993 = vmatpush1.msra.mxu0 0.0
      %1994 = vmatprep.subr.mxu0 0.0
      %1995 = vmatpush1.msra.mxu0 0.0
      %1996 = vmatprep.subr.mxu0 0.0
      %1997 = vmatpush1.msra.mxu0 0.0
      %1998 = vmatprep.subr.mxu0 0.0
      %1999 = vmatpush1.msra.mxu0 0.0
      %2000 = vmatprep.subr.mxu0 0.0
      %2001 = vmatpush1.msra.mxu0 0.0
      %2002 = vmatprep.subr.mxu0 0.0
      %2003 = vmatpush1.msra.mxu0 0.0
      %2004 = vmatprep.subr.mxu0 0.0
      %2005 = vmatpush1.msra.mxu0 0.0
      %2006 = vmatprep.subr.mxu0 0.0
      %2007 = vmatpush1.msra.mxu0 0.0
      %2008 = vmatprep.subr.mxu0 0.0
      %2009 = vmatpush1.msra.mxu0 0.0
      %2010 = vmatprep.subr.mxu0 0.0
      %2011 = vmatpush1.msra.mxu0 0.0
      %2012 = vmatprep.subr.mxu0 0.0
      %2013 = vmatpush1.msra.mxu0 0.0
      %2014 = vmatprep.subr.mxu0 0.0
      %2015 = vmatpush1.msra.mxu0 0.0
      %2016 = vmatprep.subr.mxu0 0.0
      %2017 = vmatpush1.msra.mxu0 0.0
      %2018 = vmatprep.subr.mxu0 0.0
      %2019 = vmatpush1.msra.mxu0 0.0
      %2020 = vmatprep.subr.mxu0 0.0
      %2021 = vmatpush1.msra.mxu0 0.0
      %2022 = vmatprep.subr.mxu0 0.0
      %2023 = vmatpush1.msra.mxu0 0.0
      %2024 = vmatprep.subr.mxu0 0.0
      %2025 = vmatpush1.msra.mxu0 0.0
      %2026 = vmatprep.subr.mxu0 0.0
      %2027 = vmatpush1.msra.mxu0 0.0
      %2028 = vmatprep.mubr.f32.mxu0 0.0
      %2029 = vmatmul.mubr.f32.gmra.mrb[0].mxu0 %v1962
      %v2030 = vpop.f32.mrb[0].mxu0
      %v2031 = vadd.f32 %v1959, %v2030
      %v2032 = vpop.f32.mrb[0].mxu0
      %2033 = vdwg.mxu0
      %vm2034 = vcmask 7168
      %2035 = vst.msk [vmem:[%s7] sm:$0xff] %vm2034, %v2031
    $region49: #{tpu_custom_call.1} parent=1 // pred_fallthru
      _
    // Predicated region
    $region50: #{tpu_custom_call.1} parent=1 // pred_check
      _
    $region51: #{tpu_custom_call.1} parent=1 // pred_check_branch
      %2037 = sbr.rel (0) target = $region53
    $region52: #{tpu_custom_call.1} parent=1 // pred_region
      _
    $region53: #{tpu_custom_call.1} parent=1 // pred_fallthru
      _
    // Predicated region
    $region54: #{tpu_custom_call.1} parent=1 // pred_check
      _
    $region55: #{tpu_custom_call.1} parent=1 // pred_check_branch
      %2039 = sbr.rel (0) target = $region57
    $region56: #{tpu_custom_call.1} parent=1 // pred_region
      _
    $region57: #{tpu_custom_call.1} parent=1 // pred_fallthru
      _
    %2040 = vsyncpa [#allocation8], 1
    %2041 = vsyncpa [#allocation10], 1

</llo_original>
